<compile_context>
chip_gen: v6e
topology: v6e:2x2x1
jax: 0.10.0
libtpu: 0.0.40
codegen_flags: <defaults>
</compile_context>

<pallas_src>
import functools

import jax
import jax.numpy as jnp
from jax.experimental import pallas as pl
from jax.experimental.pallas import tpu as pltpu


def lstm_kernel(num_layers, hidden_size, time_chunk, x_ref, *refs):
    # refs layout:
    #   [w_ih_0, w_hh_0, b_0, ..., w_ih_{L-1}, w_hh_{L-1}, b_{L-1},
    #    out_ref, h_ref, c_ref, gates_ref, seq_ref]
    H = hidden_size
    tc = time_chunk
    layer_refs = refs[: 3 * num_layers]
    out_ref, h_ref, c_ref, gates_ref, seq_ref = refs[3 * num_layers:]
    B = x_ref.shape[1]
    chunk = pl.program_id(0)

    @pl.when(chunk == 0)
    def _():
        h_ref[...] = jnp.zeros_like(h_ref)
        c_ref[...] = jnp.zeros_like(c_ref)

    def sigmoid(x):
        # sigmoid(x) == 0.5 * tanh(0.5 * x) + 0.5 : one EUP op instead of
        # exp + divide.
        return 0.5 * jnp.tanh(0.5 * x) + 0.5

    last_h = None
    for l in range(num_layers):
        w_ih = layer_refs[3 * l][...]      # (D_in, 4H)  bf16, resident
        w_hh = layer_refs[3 * l + 1][...]  # (H,   4H)  bf16, resident
        b = layer_refs[3 * l + 2][...]     # (1,   4H)  f32

        if l == 0:
            layer_in = x_ref[...].astype(jnp.bfloat16)   # (tc, B, D)
        else:
            layer_in = seq_ref[...]                      # (tc, B, H) bf16
        d_in = layer_in.shape[-1]

        # Batched input-to-hidden projection for the whole chunk: M = tc*B.
        # Bias folded here (single broadcast per layer per chunk).
        gates_in = jnp.dot(
            layer_in.reshape(tc * B, d_in), w_ih,
            preferred_element_type=jnp.float32) + b
        gates_ref[...] = gates_in.reshape(tc, B, 4 * H)

        # Sequential recurrence: only the (B,H) @ (H,4H) matmul remains here.
        def step(k, carry):
            h, c = carry
            g = gates_ref[k] + jnp.dot(
                h.astype(jnp.bfloat16), w_hh,
                preferred_element_type=jnp.float32)
            # PyTorch gate order: i, f, g, o.
            i = sigmoid(g[:, 0 * H:1 * H])
            f = sigmoid(g[:, 1 * H:2 * H])
            gg = jnp.tanh(g[:, 2 * H:3 * H])
            o = sigmoid(g[:, 3 * H:4 * H])
            c = f * c + i * gg
            h = o * jnp.tanh(c)
            # Per-timestep output feeds the next layer's batched projection.
            seq_ref[k] = h.astype(jnp.bfloat16)
            return h, c

        unroll = True if tc <= 16 else 8
        h, c = jax.lax.fori_loop(0, tc, step, (h_ref[l], c_ref[l]),
                                 unroll=unroll)

        # Persist state for the next chunk.
        h_ref[l] = h
        c_ref[l] = c
        last_h = h

    @pl.when(chunk == pl.num_programs(0) - 1)
    def _():
        # Last-layer hidden state at the final timestep (lane-dense (B, H)).
        out_ref[...] = last_h


def lstm_forward(x_btd, params, num_layers, hidden_size, num_classes,
                 time_chunk=16):
    """x_btd: (B, T, D) batch-first input, like nn.LSTM(batch_first=True)."""
    B, T, D = x_btd.shape
    H = hidden_size
    # Time-major so per-timestep slabs inside the kernel are contiguous,
    # (sublane, lane)-aligned views (one cheap XLA transpose outside).
    x = jnp.transpose(x_btd, (1, 0, 2)).astype(jnp.float32)  # (T, B, D)

    # Largest divisor of T that is <= time_chunk.  The leading block dim is not
    # subject to the (8,128) constraint (last two dims are the full (B, D)).
    time_chunk = max(1, time_chunk)
    tc = max(d for d in range(1, min(time_chunk, T) + 1) if T % d == 0)
    n_chunks = T // tc

    def weight_spec(shape):
        # Block index constant across the grid -> single buffer is enough.
        return pl.BlockSpec(shape, lambda c: (0, 0),
                            pipeline_mode=pl.Buffered(1))

    flat_inputs = [x]
    in_specs = [pl.BlockSpec((tc, B, D), lambda c: (c, 0, 0))]
    for l in range(num_layers):
        w_ih, w_hh, b = params["layers"][l]
        flat_inputs += [w_ih, w_hh, b]
        in_specs += [weight_spec(w_ih.shape), weight_spec(w_hh.shape),
                     weight_spec(b.shape)]

    kernel = functools.partial(lstm_kernel, num_layers, H, tc)
    h_last = pl.pallas_call(
        kernel,
        out_shape=jax.ShapeDtypeStruct((B, H), jnp.float32),
        grid_spec=pltpu.PrefetchScalarGridSpec(
            num_scalar_prefetch=0,
            grid=(n_chunks,),
            in_specs=in_specs,
            out_specs=pl.BlockSpec((B, H), lambda c: (0, 0)),
            scratch_shapes=[
                pltpu.VMEM((num_layers, B, H), jnp.float32),  # h carry
                pltpu.VMEM((num_layers, B, H), jnp.float32),  # c carry
                pltpu.VMEM((tc, B, 4 * H), jnp.float32),      # batched gates_in
                pltpu.VMEM((tc, B, H), jnp.bfloat16),         # layer outputs
            ],
        ),
        compiler_params=pltpu.CompilerParams(
            dimension_semantics=("arbitrary",),      # time is sequential
            vmem_limit_bytes=48 * 1024 * 1024,       # headroom under v7x 64MiB
        ),
    )(*flat_inputs)

    # Final classifier (num_classes << 128): plain XLA to avoid lane-sparse
    # masked stores inside the kernel.
    wd_T, bd = params["dense"]
    return h_last @ wd_T + bd


def init_params(key, input_size, hidden_size, num_layers, num_classes):
    """PyTorch-style U(-1/sqrt(H), 1/sqrt(H)) init, packed for the kernel."""
    k = 1.0 / jnp.sqrt(jnp.float32(hidden_size))
    layers = []
    for l in range(num_layers):
        d_in = input_size if l == 0 else hidden_size
        key, k1, k2, k3, k4 = jax.random.split(key, 5)
        w_ih = jax.random.uniform(k1, (4 * hidden_size, d_in), jnp.float32, -k, k)
        w_hh = jax.random.uniform(k2, (4 * hidden_size, hidden_size), jnp.float32, -k, k)
        b_ih = jax.random.uniform(k3, (4 * hidden_size,), jnp.float32, -k, k)
        b_hh = jax.random.uniform(k4, (4 * hidden_size,), jnp.float32, -k, k)
        layers.append((
            w_ih.T.astype(jnp.bfloat16),                 # (d_in, 4H) MXU operand
            w_hh.T.astype(jnp.bfloat16),                 # (H,    4H) MXU operand
            (b_ih + b_hh).reshape(1, 4 * hidden_size),   # f32, biases folded
        ))
    key, k5, k6 = jax.random.split(key, 3)
    w_d = jax.random.uniform(k5, (num_classes, hidden_size), jnp.float32, -k, k)
    b_d = jax.random.uniform(k6, (num_classes,), jnp.float32, -k, k)
    return {"layers": layers, "dense": (w_d.T, b_d.reshape(1, num_classes))}


def lstm_reference(x_btd, params, num_layers, hidden_size):
    """Pure-JAX reference (lax.scan) with the same bf16-operand matmuls."""
    B, T, D = x_btd.shape
    H = hidden_size
    x = jnp.transpose(x_btd, (1, 0, 2)).astype(jnp.float32)  # (T, B, D)
    h0 = jnp.zeros((num_layers, B, H), jnp.float32)
    c0 = jnp.zeros((num_layers, B, H), jnp.float32)

    def step(carry, xt):
        h, c = carry
        inp = xt
        hs, cs = [], []
        for l in range(num_layers):
            w_ih, w_hh, b = params["layers"][l]
            gates = (jnp.dot(inp.astype(jnp.bfloat16), w_ih,
                             preferred_element_type=jnp.float32)
                     + b
                     + jnp.dot(h[l].astype(jnp.bfloat16), w_hh,
                               preferred_element_type=jnp.float32))
            i = jax.nn.sigmoid(gates[:, 0:H])
            f = jax.nn.sigmoid(gates[:, H:2 * H])
            g = jnp.tanh(gates[:, 2 * H:3 * H])
            o = jax.nn.sigmoid(gates[:, 3 * H:4 * H])
            cn = f * c[l] + i * g
            hn = o * jnp.tanh(cn)
            hs.append(hn)
            cs.append(cn)
            inp = hn
        return (jnp.stack(hs), jnp.stack(cs)), inp

    (_, _), outs = jax.lax.scan(step, (h0, c0), x)
    wd_T, bd = params["dense"]
    return outs[-1] @ wd_T + bd


if __name__ == "__main__":
    # Small but (8, 128)-aligned shapes so gate slices / vregs are dense.
    B, T = 8, 16
    input_size, hidden_size, num_layers, num_classes = 128, 128, 2, 8

    root = jax.random.PRNGKey(0)
    key_x, key_p = jax.random.split(root)
    x = jax.random.normal(key_x, (B, T, input_size), jnp.float32)
    params = init_params(key_p, input_size, hidden_size, num_layers, num_classes)

    # time_chunk=8 -> 2 chunks: exercises the cross-chunk h/c state carry.
    out = lstm_forward(x, params, num_layers, hidden_size, num_classes,
                       time_chunk=8)
    out = jax.block_until_ready(out)

    ref = lstm_reference(x, params, num_layers, hidden_size)
    assert out.shape == (B, num_classes)
    max_err = jnp.max(jnp.abs(out - ref))
    assert jnp.allclose(out, ref, atol=2e-4, rtol=2e-4), (
        f"max abs err = {max_err}"
    )
    print("KERNEL_OK")
</pallas_src>

<mosaic_0001>
module attributes {stable_mosaic.version = 11 : i64} {
  func.func @lstm_kernel(%arg0: i32, %arg1: memref<8x8x128xf32, #tpu.memory_space<vmem>>, %arg2: memref<128x512xbf16, #tpu.memory_space<vmem>>, %arg3: memref<128x512xbf16, #tpu.memory_space<vmem>>, %arg4: memref<1x512xf32, #tpu.memory_space<vmem>>, %arg5: memref<128x512xbf16, #tpu.memory_space<vmem>>, %arg6: memref<128x512xbf16, #tpu.memory_space<vmem>>, %arg7: memref<1x512xf32, #tpu.memory_space<vmem>>, %arg8: memref<8x128xf32, #tpu.memory_space<vmem>>, %arg9: memref<2x8x128xf32, #tpu.memory_space<vmem>>, %arg10: memref<2x8x128xf32, #tpu.memory_space<vmem>>, %arg11: memref<8x8x512xf32, #tpu.memory_space<vmem>>, %arg12: memref<8x8x128xbf16, #tpu.memory_space<vmem>>) attributes {dimension_semantics = [#tpu.dimension_semantics<arbitrary>], iteration_bounds = array<i64: 2>, scalar_prefetch = 0 : i64, scratch_operands = 4 : i64, tpu.core_type = #tpu.core_type<tc>, window_params = [{transform_indices = @transform_0, window_bounds = array<i64: 8, 8, 128>}, {pipeline_mode = #tpu.pipeline_mode<synchronous>, transform_indices = @transform_1, window_bounds = array<i64: 128, 512>}, {pipeline_mode = #tpu.pipeline_mode<synchronous>, transform_indices = @transform_2, window_bounds = array<i64: 128, 512>}, {pipeline_mode = #tpu.pipeline_mode<synchronous>, transform_indices = @transform_3, window_bounds = array<i64: 1, 512>}, {pipeline_mode = #tpu.pipeline_mode<synchronous>, transform_indices = @transform_4, window_bounds = array<i64: 128, 512>}, {pipeline_mode = #tpu.pipeline_mode<synchronous>, transform_indices = @transform_5, window_bounds = array<i64: 128, 512>}, {pipeline_mode = #tpu.pipeline_mode<synchronous>, transform_indices = @transform_6, window_bounds = array<i64: 1, 512>}, {pipeline_mode = #tpu.pipeline_mode<synchronous>, transform_indices = @transform_7, window_bounds = array<i64: 8, 128>}]} {
    %c0_i32 = arith.constant 0 : i32
    %0 = arith.cmpi eq, %arg0, %c0_i32 : i32
    %1 = arith.extui %0 : i1 to i32
    %c0_i32_0 = arith.constant 0 : i32
    %2 = arith.cmpi ne, %1, %c0_i32_0 : i32
    scf.if %2 {
      %cst_284 = arith.constant 0.000000e+00 : f32
      %719 = vector.broadcast %cst_284 : f32 to vector<2x8x128xf32>
      %c0_285 = arith.constant 0 : index
      %c0_286 = arith.constant 0 : index
      %c0_287 = arith.constant 0 : index
      %720 = vector.load %arg9[%c0_285, %c0_286, %c0_287] : memref<2x8x128xf32, #tpu.memory_space<vmem>>, vector<2x8x128xf32>
      tpu.vector_store %arg9[%c0_285, %c0_286, %c0_287], %719 {strides = array<i32>} : memref<2x8x128xf32, #tpu.memory_space<vmem>>, vector<2x8x128xf32>,
      %cst_288 = arith.constant 0.000000e+00 : f32
      %721 = vector.broadcast %cst_288 : f32 to vector<2x8x128xf32>
      %c0_289 = arith.constant 0 : index
      %c0_290 = arith.constant 0 : index
      %c0_291 = arith.constant 0 : index
      %722 = vector.load %arg10[%c0_289, %c0_290, %c0_291] : memref<2x8x128xf32, #tpu.memory_space<vmem>>, vector<2x8x128xf32>
      tpu.vector_store %arg10[%c0_289, %c0_290, %c0_291], %721 {strides = array<i32>} : memref<2x8x128xf32, #tpu.memory_space<vmem>>, vector<2x8x128xf32>,
    } else {
    }
    %c0 = arith.constant 0 : index
    %c0_1 = arith.constant 0 : index
    %3 = vector.load %arg2[%c0, %c0_1] : memref<128x512xbf16, #tpu.memory_space<vmem>>, vector<128x512xbf16>
    %c0_2 = arith.constant 0 : index
    %c0_3 = arith.constant 0 : index
    %4 = vector.load %arg3[%c0_2, %c0_3] : memref<128x512xbf16, #tpu.memory_space<vmem>>, vector<128x512xbf16>
    %c0_4 = arith.constant 0 : index
    %c0_5 = arith.constant 0 : index
    %5 = vector.load %arg4[%c0_4, %c0_5] : memref<1x512xf32, #tpu.memory_space<vmem>>, vector<1x512xf32>
    %c0_6 = arith.constant 0 : index
    %c0_7 = arith.constant 0 : index
    %c0_8 = arith.constant 0 : index
    %6 = vector.load %arg1[%c0_6, %c0_7, %c0_8] : memref<8x8x128xf32, #tpu.memory_space<vmem>>, vector<8x8x128xf32>
    %7 = arith.truncf %6 : vector<8x8x128xf32> to vector<8x8x128xbf16>
    %8 = vector.shape_cast %7 : vector<8x8x128xbf16> to vector<64x128xbf16>
    %cst = arith.constant dense<0.000000e+00> : vector<64x512xf32>
    %9 = tpu.matmul %8, %3, %cst {dimension_numbers = #tpu.dot_dimension_numbers<[1], [0], [0], [1], [0, 0, 1, 1], [], []>} : vector<64x128xbf16>, vector<128x512xbf16>, vector<64x512xf32> -> vector<64x512xf32>
    %10 = vector.broadcast %5 : vector<1x512xf32> to vector<64x512xf32>
    %11 = arith.addf %9, %10 : vector<64x512xf32>
    %12 = vector.shape_cast %11 : vector<64x512xf32> to vector<8x8x512xf32>
    %c0_9 = arith.constant 0 : index
    %c0_10 = arith.constant 0 : index
    %c0_11 = arith.constant 0 : index
    %13 = vector.load %arg11[%c0_9, %c0_10, %c0_11] : memref<8x8x512xf32, #tpu.memory_space<vmem>>, vector<8x8x512xf32>
    tpu.vector_store %arg11[%c0_9, %c0_10, %c0_11], %12 {strides = array<i32>} : memref<8x8x512xf32, #tpu.memory_space<vmem>>, vector<8x8x512xf32>,
    %c0_12 = arith.constant 0 : index
    %c0_13 = arith.constant 0 : index
    %c0_14 = arith.constant 0 : index
    %14 = vector.load %arg9[%c0_12, %c0_13, %c0_14] : memref<2x8x128xf32, #tpu.memory_space<vmem>>, vector<1x8x128xf32>
    %15 = vector.shape_cast %14 : vector<1x8x128xf32> to vector<8x128xf32>
    %c0_15 = arith.constant 0 : index
    %c0_16 = arith.constant 0 : index
    %c0_17 = arith.constant 0 : index
    %16 = vector.load %arg10[%c0_15, %c0_16, %c0_17] : memref<2x8x128xf32, #tpu.memory_space<vmem>>, vector<1x8x128xf32>
    %17 = vector.shape_cast %16 : vector<1x8x128xf32> to vector<8x128xf32>
    %c0_i32_18 = arith.constant 0 : i32
    %18 = arith.index_cast %c0_i32_18 : i32 to index
    %c0_19 = arith.constant 0 : index
    %c0_20 = arith.constant 0 : index
    %19 = vector.load %arg11[%18, %c0_19, %c0_20] : memref<8x8x512xf32, #tpu.memory_space<vmem>>, vector<1x8x512xf32>
    %20 = vector.shape_cast %19 : vector<1x8x512xf32> to vector<8x512xf32>
    %21 = arith.truncf %15 : vector<8x128xf32> to vector<8x128xbf16>
    %cst_21 = arith.constant dense<0.000000e+00> : vector<8x512xf32>
    %22 = tpu.matmul %21, %4, %cst_21 {dimension_numbers = #tpu.dot_dimension_numbers<[1], [0], [0], [1], [0, 0, 1, 1], [], []>} : vector<8x128xbf16>, vector<128x512xbf16>, vector<8x512xf32> -> vector<8x512xf32>
    %23 = arith.addf %20, %22 : vector<8x512xf32>
    %24 = vector.extract_strided_slice %23 {offsets = [0, 0], sizes = [8, 128], strides = [1, 1]} : vector<8x512xf32> to vector<8x128xf32>
    %cst_22 = arith.constant 5.000000e-01 : f32
    %25 = vector.broadcast %cst_22 : f32 to vector<8x128xf32>
    %26 = arith.mulf %25, %24 : vector<8x128xf32>
    %27 = math.tanh %26 : vector<8x128xf32>
    %cst_23 = arith.constant 5.000000e-01 : f32
    %28 = vector.broadcast %cst_23 : f32 to vector<8x128xf32>
    %29 = arith.mulf %28, %27 : vector<8x128xf32>
    %cst_24 = arith.constant 5.000000e-01 : f32
    %30 = vector.broadcast %cst_24 : f32 to vector<8x128xf32>
    %31 = arith.addf %29, %30 : vector<8x128xf32>
    %32 = vector.extract_strided_slice %23 {offsets = [0, 128], sizes = [8, 128], strides = [1, 1]} : vector<8x512xf32> to vector<8x128xf32>
    %cst_25 = arith.constant 5.000000e-01 : f32
    %33 = vector.broadcast %cst_25 : f32 to vector<8x128xf32>
    %34 = arith.mulf %33, %32 : vector<8x128xf32>
    %35 = math.tanh %34 : vector<8x128xf32>
    %cst_26 = arith.constant 5.000000e-01 : f32
    %36 = vector.broadcast %cst_26 : f32 to vector<8x128xf32>
    %37 = arith.mulf %36, %35 : vector<8x128xf32>
    %cst_27 = arith.constant 5.000000e-01 : f32
    %38 = vector.broadcast %cst_27 : f32 to vector<8x128xf32>
    %39 = arith.addf %37, %38 : vector<8x128xf32>
    %40 = vector.extract_strided_slice %23 {offsets = [0, 256], sizes = [8, 128], strides = [1, 1]} : vector<8x512xf32> to vector<8x128xf32>
    %41 = math.tanh %40 : vector<8x128xf32>
    %42 = vector.extract_strided_slice %23 {offsets = [0, 384], sizes = [8, 128], strides = [1, 1]} : vector<8x512xf32> to vector<8x128xf32>
    %cst_28 = arith.constant 5.000000e-01 : f32
    %43 = vector.broadcast %cst_28 : f32 to vector<8x128xf32>
    %44 = arith.mulf %43, %42 : vector<8x128xf32>
    %45 = math.tanh %44 : vector<8x128xf32>
    %cst_29 = arith.constant 5.000000e-01 : f32
    %46 = vector.broadcast %cst_29 : f32 to vector<8x128xf32>
    %47 = arith.mulf %46, %45 : vector<8x128xf32>
    %cst_30 = arith.constant 5.000000e-01 : f32
    %48 = vector.broadcast %cst_30 : f32 to vector<8x128xf32>
    %49 = arith.addf %47, %48 : vector<8x128xf32>
    %50 = arith.mulf %39, %17 : vector<8x128xf32>
    %51 = arith.mulf %31, %41 : vector<8x128xf32>
    %52 = arith.addf %50, %51 : vector<8x128xf32>
    %53 = math.tanh %52 : vector<8x128xf32>
    %54 = arith.mulf %49, %53 : vector<8x128xf32>
    %55 = arith.truncf %54 : vector<8x128xf32> to vector<8x128xbf16>
    %56 = arith.index_cast %c0_i32_18 : i32 to index
    %c0_31 = arith.constant 0 : index
    %c0_32 = arith.constant 0 : index
    %57 = vector.load %arg12[%56, %c0_31, %c0_32] : memref<8x8x128xbf16, #tpu.memory_space<vmem>>, vector<1x8x128xbf16>
    %58 = vector.shape_cast %57 : vector<1x8x128xbf16> to vector<8x128xbf16>
    %59 = vector.shape_cast %55 : vector<8x128xbf16> to vector<1x8x128xbf16>
    tpu.vector_store %arg12[%56, %c0_31, %c0_32], %59 {strides = array<i32>} : memref<8x8x128xbf16, #tpu.memory_space<vmem>>, vector<1x8x128xbf16>,
    %c1_i32 = arith.constant 1 : i32
    %60 = arith.index_cast %c1_i32 : i32 to index
    %c0_33 = arith.constant 0 : index
    %c0_34 = arith.constant 0 : index
    %61 = vector.load %arg11[%60, %c0_33, %c0_34] : memref<8x8x512xf32, #tpu.memory_space<vmem>>, vector<1x8x512xf32>
    %62 = vector.shape_cast %61 : vector<1x8x512xf32> to vector<8x512xf32>
    %63 = arith.truncf %54 : vector<8x128xf32> to vector<8x128xbf16>
    %cst_35 = arith.constant dense<0.000000e+00> : vector<8x512xf32>
    %64 = tpu.matmul %63, %4, %cst_35 {dimension_numbers = #tpu.dot_dimension_numbers<[1], [0], [0], [1], [0, 0, 1, 1], [], []>} : vector<8x128xbf16>, vector<128x512xbf16>, vector<8x512xf32> -> vector<8x512xf32>
    %65 = arith.addf %62, %64 : vector<8x512xf32>
    %66 = vector.extract_strided_slice %65 {offsets = [0, 0], sizes = [8, 128], strides = [1, 1]} : vector<8x512xf32> to vector<8x128xf32>
    %cst_36 = arith.constant 5.000000e-01 : f32
    %67 = vector.broadcast %cst_36 : f32 to vector<8x128xf32>
    %68 = arith.mulf %67, %66 : vector<8x128xf32>
    %69 = math.tanh %68 : vector<8x128xf32>
    %cst_37 = arith.constant 5.000000e-01 : f32
    %70 = vector.broadcast %cst_37 : f32 to vector<8x128xf32>
    %71 = arith.mulf %70, %69 : vector<8x128xf32>
    %cst_38 = arith.constant 5.000000e-01 : f32
    %72 = vector.broadcast %cst_38 : f32 to vector<8x128xf32>
    %73 = arith.addf %71, %72 : vector<8x128xf32>
    %74 = vector.extract_strided_slice %65 {offsets = [0, 128], sizes = [8, 128], strides = [1, 1]} : vector<8x512xf32> to vector<8x128xf32>
    %cst_39 = arith.constant 5.000000e-01 : f32
    %75 = vector.broadcast %cst_39 : f32 to vector<8x128xf32>
    %76 = arith.mulf %75, %74 : vector<8x128xf32>
    %77 = math.tanh %76 : vector<8x128xf32>
    %cst_40 = arith.constant 5.000000e-01 : f32
    %78 = vector.broadcast %cst_40 : f32 to vector<8x128xf32>
    %79 = arith.mulf %78, %77 : vector<8x128xf32>
    %cst_41 = arith.constant 5.000000e-01 : f32
    %80 = vector.broadcast %cst_41 : f32 to vector<8x128xf32>
    %81 = arith.addf %79, %80 : vector<8x128xf32>
    %82 = vector.extract_strided_slice %65 {offsets = [0, 256], sizes = [8, 128], strides = [1, 1]} : vector<8x512xf32> to vector<8x128xf32>
    %83 = math.tanh %82 : vector<8x128xf32>
    %84 = vector.extract_strided_slice %65 {offsets = [0, 384], sizes = [8, 128], strides = [1, 1]} : vector<8x512xf32> to vector<8x128xf32>
    %cst_42 = arith.constant 5.000000e-01 : f32
    %85 = vector.broadcast %cst_42 : f32 to vector<8x128xf32>
    %86 = arith.mulf %85, %84 : vector<8x128xf32>
    %87 = math.tanh %86 : vector<8x128xf32>
    %cst_43 = arith.constant 5.000000e-01 : f32
    %88 = vector.broadcast %cst_43 : f32 to vector<8x128xf32>
    %89 = arith.mulf %88, %87 : vector<8x128xf32>
    %cst_44 = arith.constant 5.000000e-01 : f32
    %90 = vector.broadcast %cst_44 : f32 to vector<8x128xf32>
    %91 = arith.addf %89, %90 : vector<8x128xf32>
    %92 = arith.mulf %81, %52 : vector<8x128xf32>
    %93 = arith.mulf %73, %83 : vector<8x128xf32>
    %94 = arith.addf %92, %93 : vector<8x128xf32>
    %95 = math.tanh %94 : vector<8x128xf32>
    %96 = arith.mulf %91, %95 : vector<8x128xf32>
    %97 = arith.truncf %96 : vector<8x128xf32> to vector<8x128xbf16>
    %98 = arith.index_cast %c1_i32 : i32 to index
    %c0_45 = arith.constant 0 : index
    %c0_46 = arith.constant 0 : index
    %99 = vector.load %arg12[%98, %c0_45, %c0_46] : memref<8x8x128xbf16, #tpu.memory_space<vmem>>, vector<1x8x128xbf16>
    %100 = vector.shape_cast %99 : vector<1x8x128xbf16> to vector<8x128xbf16>
    %101 = vector.shape_cast %97 : vector<8x128xbf16> to vector<1x8x128xbf16>
    tpu.vector_store %arg12[%98, %c0_45, %c0_46], %101 {strides = array<i32>} : memref<8x8x128xbf16, #tpu.memory_space<vmem>>, vector<1x8x128xbf16>,
    %c2_i32 = arith.constant 2 : i32
    %102 = arith.index_cast %c2_i32 : i32 to index
    %c0_47 = arith.constant 0 : index
    %c0_48 = arith.constant 0 : index
    %103 = vector.load %arg11[%102, %c0_47, %c0_48] : memref<8x8x512xf32, #tpu.memory_space<vmem>>, vector<1x8x512xf32>
    %104 = vector.shape_cast %103 : vector<1x8x512xf32> to vector<8x512xf32>
    %105 = arith.truncf %96 : vector<8x128xf32> to vector<8x128xbf16>
    %cst_49 = arith.constant dense<0.000000e+00> : vector<8x512xf32>
    %106 = tpu.matmul %105, %4, %cst_49 {dimension_numbers = #tpu.dot_dimension_numbers<[1], [0], [0], [1], [0, 0, 1, 1], [], []>} : vector<8x128xbf16>, vector<128x512xbf16>, vector<8x512xf32> -> vector<8x512xf32>
    %107 = arith.addf %104, %106 : vector<8x512xf32>
    %108 = vector.extract_strided_slice %107 {offsets = [0, 0], sizes = [8, 128], strides = [1, 1]} : vector<8x512xf32> to vector<8x128xf32>
    %cst_50 = arith.constant 5.000000e-01 : f32
    %109 = vector.broadcast %cst_50 : f32 to vector<8x128xf32>
    %110 = arith.mulf %109, %108 : vector<8x128xf32>
    %111 = math.tanh %110 : vector<8x128xf32>
    %cst_51 = arith.constant 5.000000e-01 : f32
    %112 = vector.broadcast %cst_51 : f32 to vector<8x128xf32>
    %113 = arith.mulf %112, %111 : vector<8x128xf32>
    %cst_52 = arith.constant 5.000000e-01 : f32
    %114 = vector.broadcast %cst_52 : f32 to vector<8x128xf32>
    %115 = arith.addf %113, %114 : vector<8x128xf32>
    %116 = vector.extract_strided_slice %107 {offsets = [0, 128], sizes = [8, 128], strides = [1, 1]} : vector<8x512xf32> to vector<8x128xf32>
    %cst_53 = arith.constant 5.000000e-01 : f32
    %117 = vector.broadcast %cst_53 : f32 to vector<8x128xf32>
    %118 = arith.mulf %117, %116 : vector<8x128xf32>
    %119 = math.tanh %118 : vector<8x128xf32>
    %cst_54 = arith.constant 5.000000e-01 : f32
    %120 = vector.broadcast %cst_54 : f32 to vector<8x128xf32>
    %121 = arith.mulf %120, %119 : vector<8x128xf32>
    %cst_55 = arith.constant 5.000000e-01 : f32
    %122 = vector.broadcast %cst_55 : f32 to vector<8x128xf32>
    %123 = arith.addf %121, %122 : vector<8x128xf32>
    %124 = vector.extract_strided_slice %107 {offsets = [0, 256], sizes = [8, 128], strides = [1, 1]} : vector<8x512xf32> to vector<8x128xf32>
    %125 = math.tanh %124 : vector<8x128xf32>
    %126 = vector.extract_strided_slice %107 {offsets = [0, 384], sizes = [8, 128], strides = [1, 1]} : vector<8x512xf32> to vector<8x128xf32>
    %cst_56 = arith.constant 5.000000e-01 : f32
    %127 = vector.broadcast %cst_56 : f32 to vector<8x128xf32>
    %128 = arith.mulf %127, %126 : vector<8x128xf32>
    %129 = math.tanh %128 : vector<8x128xf32>
    %cst_57 = arith.constant 5.000000e-01 : f32
    %130 = vector.broadcast %cst_57 : f32 to vector<8x128xf32>
    %131 = arith.mulf %130, %129 : vector<8x128xf32>
    %cst_58 = arith.constant 5.000000e-01 : f32
    %132 = vector.broadcast %cst_58 : f32 to vector<8x128xf32>
    %133 = arith.addf %131, %132 : vector<8x128xf32>
    %134 = arith.mulf %123, %94 : vector<8x128xf32>
    %135 = arith.mulf %115, %125 : vector<8x128xf32>
    %136 = arith.addf %134, %135 : vector<8x128xf32>
    %137 = math.tanh %136 : vector<8x128xf32>
    %138 = arith.mulf %133, %137 : vector<8x128xf32>
    %139 = arith.truncf %138 : vector<8x128xf32> to vector<8x128xbf16>
    %140 = arith.index_cast %c2_i32 : i32 to index
    %c0_59 = arith.constant 0 : index
    %c0_60 = arith.constant 0 : index
    %141 = vector.load %arg12[%140, %c0_59, %c0_60] : memref<8x8x128xbf16, #tpu.memory_space<vmem>>, vector<1x8x128xbf16>
    %142 = vector.shape_cast %141 : vector<1x8x128xbf16> to vector<8x128xbf16>
    %143 = vector.shape_cast %139 : vector<8x128xbf16> to vector<1x8x128xbf16>
    tpu.vector_store %arg12[%140, %c0_59, %c0_60], %143 {strides = array<i32>} : memref<8x8x128xbf16, #tpu.memory_space<vmem>>, vector<1x8x128xbf16>,
    %c3_i32 = arith.constant 3 : i32
    %144 = arith.index_cast %c3_i32 : i32 to index
    %c0_61 = arith.constant 0 : index
    %c0_62 = arith.constant 0 : index
    %145 = vector.load %arg11[%144, %c0_61, %c0_62] : memref<8x8x512xf32, #tpu.memory_space<vmem>>, vector<1x8x512xf32>
    %146 = vector.shape_cast %145 : vector<1x8x512xf32> to vector<8x512xf32>
    %147 = arith.truncf %138 : vector<8x128xf32> to vector<8x128xbf16>
    %cst_63 = arith.constant dense<0.000000e+00> : vector<8x512xf32>
    %148 = tpu.matmul %147, %4, %cst_63 {dimension_numbers = #tpu.dot_dimension_numbers<[1], [0], [0], [1], [0, 0, 1, 1], [], []>} : vector<8x128xbf16>, vector<128x512xbf16>, vector<8x512xf32> -> vector<8x512xf32>
    %149 = arith.addf %146, %148 : vector<8x512xf32>
    %150 = vector.extract_strided_slice %149 {offsets = [0, 0], sizes = [8, 128], strides = [1, 1]} : vector<8x512xf32> to vector<8x128xf32>
    %cst_64 = arith.constant 5.000000e-01 : f32
    %151 = vector.broadcast %cst_64 : f32 to vector<8x128xf32>
    %152 = arith.mulf %151, %150 : vector<8x128xf32>
    %153 = math.tanh %152 : vector<8x128xf32>
    %cst_65 = arith.constant 5.000000e-01 : f32
    %154 = vector.broadcast %cst_65 : f32 to vector<8x128xf32>
    %155 = arith.mulf %154, %153 : vector<8x128xf32>
    %cst_66 = arith.constant 5.000000e-01 : f32
    %156 = vector.broadcast %cst_66 : f32 to vector<8x128xf32>
    %157 = arith.addf %155, %156 : vector<8x128xf32>
    %158 = vector.extract_strided_slice %149 {offsets = [0, 128], sizes = [8, 128], strides = [1, 1]} : vector<8x512xf32> to vector<8x128xf32>
    %cst_67 = arith.constant 5.000000e-01 : f32
    %159 = vector.broadcast %cst_67 : f32 to vector<8x128xf32>
    %160 = arith.mulf %159, %158 : vector<8x128xf32>
    %161 = math.tanh %160 : vector<8x128xf32>
    %cst_68 = arith.constant 5.000000e-01 : f32
    %162 = vector.broadcast %cst_68 : f32 to vector<8x128xf32>
    %163 = arith.mulf %162, %161 : vector<8x128xf32>
    %cst_69 = arith.constant 5.000000e-01 : f32
    %164 = vector.broadcast %cst_69 : f32 to vector<8x128xf32>
    %165 = arith.addf %163, %164 : vector<8x128xf32>
    %166 = vector.extract_strided_slice %149 {offsets = [0, 256], sizes = [8, 128], strides = [1, 1]} : vector<8x512xf32> to vector<8x128xf32>
    %167 = math.tanh %166 : vector<8x128xf32>
    %168 = vector.extract_strided_slice %149 {offsets = [0, 384], sizes = [8, 128], strides = [1, 1]} : vector<8x512xf32> to vector<8x128xf32>
    %cst_70 = arith.constant 5.000000e-01 : f32
    %169 = vector.broadcast %cst_70 : f32 to vector<8x128xf32>
    %170 = arith.mulf %169, %168 : vector<8x128xf32>
    %171 = math.tanh %170 : vector<8x128xf32>
    %cst_71 = arith.constant 5.000000e-01 : f32
    %172 = vector.broadcast %cst_71 : f32 to vector<8x128xf32>
    %173 = arith.mulf %172, %171 : vector<8x128xf32>
    %cst_72 = arith.constant 5.000000e-01 : f32
    %174 = vector.broadcast %cst_72 : f32 to vector<8x128xf32>
    %175 = arith.addf %173, %174 : vector<8x128xf32>
    %176 = arith.mulf %165, %136 : vector<8x128xf32>
    %177 = arith.mulf %157, %167 : vector<8x128xf32>
    %178 = arith.addf %176, %177 : vector<8x128xf32>
    %179 = math.tanh %178 : vector<8x128xf32>
    %180 = arith.mulf %175, %179 : vector<8x128xf32>
    %181 = arith.truncf %180 : vector<8x128xf32> to vector<8x128xbf16>
    %182 = arith.index_cast %c3_i32 : i32 to index
    %c0_73 = arith.constant 0 : index
    %c0_74 = arith.constant 0 : index
    %183 = vector.load %arg12[%182, %c0_73, %c0_74] : memref<8x8x128xbf16, #tpu.memory_space<vmem>>, vector<1x8x128xbf16>
    %184 = vector.shape_cast %183 : vector<1x8x128xbf16> to vector<8x128xbf16>
    %185 = vector.shape_cast %181 : vector<8x128xbf16> to vector<1x8x128xbf16>
    tpu.vector_store %arg12[%182, %c0_73, %c0_74], %185 {strides = array<i32>} : memref<8x8x128xbf16, #tpu.memory_space<vmem>>, vector<1x8x128xbf16>,
    %c4_i32 = arith.constant 4 : i32
    %186 = arith.index_cast %c4_i32 : i32 to index
    %c0_75 = arith.constant 0 : index
    %c0_76 = arith.constant 0 : index
    %187 = vector.load %arg11[%186, %c0_75, %c0_76] : memref<8x8x512xf32, #tpu.memory_space<vmem>>, vector<1x8x512xf32>
    %188 = vector.shape_cast %187 : vector<1x8x512xf32> to vector<8x512xf32>
    %189 = arith.truncf %180 : vector<8x128xf32> to vector<8x128xbf16>
    %cst_77 = arith.constant dense<0.000000e+00> : vector<8x512xf32>
    %190 = tpu.matmul %189, %4, %cst_77 {dimension_numbers = #tpu.dot_dimension_numbers<[1], [0], [0], [1], [0, 0, 1, 1], [], []>} : vector<8x128xbf16>, vector<128x512xbf16>, vector<8x512xf32> -> vector<8x512xf32>
    %191 = arith.addf %188, %190 : vector<8x512xf32>
    %192 = vector.extract_strided_slice %191 {offsets = [0, 0], sizes = [8, 128], strides = [1, 1]} : vector<8x512xf32> to vector<8x128xf32>
    %cst_78 = arith.constant 5.000000e-01 : f32
    %193 = vector.broadcast %cst_78 : f32 to vector<8x128xf32>
    %194 = arith.mulf %193, %192 : vector<8x128xf32>
    %195 = math.tanh %194 : vector<8x128xf32>
    %cst_79 = arith.constant 5.000000e-01 : f32
    %196 = vector.broadcast %cst_79 : f32 to vector<8x128xf32>
    %197 = arith.mulf %196, %195 : vector<8x128xf32>
    %cst_80 = arith.constant 5.000000e-01 : f32
    %198 = vector.broadcast %cst_80 : f32 to vector<8x128xf32>
    %199 = arith.addf %197, %198 : vector<8x128xf32>
    %200 = vector.extract_strided_slice %191 {offsets = [0, 128], sizes = [8, 128], strides = [1, 1]} : vector<8x512xf32> to vector<8x128xf32>
    %cst_81 = arith.constant 5.000000e-01 : f32
    %201 = vector.broadcast %cst_81 : f32 to vector<8x128xf32>
    %202 = arith.mulf %201, %200 : vector<8x128xf32>
    %203 = math.tanh %202 : vector<8x128xf32>
    %cst_82 = arith.constant 5.000000e-01 : f32
    %204 = vector.broadcast %cst_82 : f32 to vector<8x128xf32>
    %205 = arith.mulf %204, %203 : vector<8x128xf32>
    %cst_83 = arith.constant 5.000000e-01 : f32
    %206 = vector.broadcast %cst_83 : f32 to vector<8x128xf32>
    %207 = arith.addf %205, %206 : vector<8x128xf32>
    %208 = vector.extract_strided_slice %191 {offsets = [0, 256], sizes = [8, 128], strides = [1, 1]} : vector<8x512xf32> to vector<8x128xf32>
    %209 = math.tanh %208 : vector<8x128xf32>
    %210 = vector.extract_strided_slice %191 {offsets = [0, 384], sizes = [8, 128], strides = [1, 1]} : vector<8x512xf32> to vector<8x128xf32>
    %cst_84 = arith.constant 5.000000e-01 : f32
    %211 = vector.broadcast %cst_84 : f32 to vector<8x128xf32>
    %212 = arith.mulf %211, %210 : vector<8x128xf32>
    %213 = math.tanh %212 : vector<8x128xf32>
    %cst_85 = arith.constant 5.000000e-01 : f32
    %214 = vector.broadcast %cst_85 : f32 to vector<8x128xf32>
    %215 = arith.mulf %214, %213 : vector<8x128xf32>
    %cst_86 = arith.constant 5.000000e-01 : f32
    %216 = vector.broadcast %cst_86 : f32 to vector<8x128xf32>
    %217 = arith.addf %215, %216 : vector<8x128xf32>
    %218 = arith.mulf %207, %178 : vector<8x128xf32>
    %219 = arith.mulf %199, %209 : vector<8x128xf32>
    %220 = arith.addf %218, %219 : vector<8x128xf32>
    %221 = math.tanh %220 : vector<8x128xf32>
    %222 = arith.mulf %217, %221 : vector<8x128xf32>
    %223 = arith.truncf %222 : vector<8x128xf32> to vector<8x128xbf16>
    %224 = arith.index_cast %c4_i32 : i32 to index
    %c0_87 = arith.constant 0 : index
    %c0_88 = arith.constant 0 : index
    %225 = vector.load %arg12[%224, %c0_87, %c0_88] : memref<8x8x128xbf16, #tpu.memory_space<vmem>>, vector<1x8x128xbf16>
    %226 = vector.shape_cast %225 : vector<1x8x128xbf16> to vector<8x128xbf16>
    %227 = vector.shape_cast %223 : vector<8x128xbf16> to vector<1x8x128xbf16>
    tpu.vector_store %arg12[%224, %c0_87, %c0_88], %227 {strides = array<i32>} : memref<8x8x128xbf16, #tpu.memory_space<vmem>>, vector<1x8x128xbf16>,
    %c5_i32 = arith.constant 5 : i32
    %228 = arith.index_cast %c5_i32 : i32 to index
    %c0_89 = arith.constant 0 : index
    %c0_90 = arith.constant 0 : index
    %229 = vector.load %arg11[%228, %c0_89, %c0_90] : memref<8x8x512xf32, #tpu.memory_space<vmem>>, vector<1x8x512xf32>
    %230 = vector.shape_cast %229 : vector<1x8x512xf32> to vector<8x512xf32>
    %231 = arith.truncf %222 : vector<8x128xf32> to vector<8x128xbf16>
    %cst_91 = arith.constant dense<0.000000e+00> : vector<8x512xf32>
    %232 = tpu.matmul %231, %4, %cst_91 {dimension_numbers = #tpu.dot_dimension_numbers<[1], [0], [0], [1], [0, 0, 1, 1], [], []>} : vector<8x128xbf16>, vector<128x512xbf16>, vector<8x512xf32> -> vector<8x512xf32>
    %233 = arith.addf %230, %232 : vector<8x512xf32>
    %234 = vector.extract_strided_slice %233 {offsets = [0, 0], sizes = [8, 128], strides = [1, 1]} : vector<8x512xf32> to vector<8x128xf32>
    %cst_92 = arith.constant 5.000000e-01 : f32
    %235 = vector.broadcast %cst_92 : f32 to vector<8x128xf32>
    %236 = arith.mulf %235, %234 : vector<8x128xf32>
    %237 = math.tanh %236 : vector<8x128xf32>
    %cst_93 = arith.constant 5.000000e-01 : f32
    %238 = vector.broadcast %cst_93 : f32 to vector<8x128xf32>
    %239 = arith.mulf %238, %237 : vector<8x128xf32>
    %cst_94 = arith.constant 5.000000e-01 : f32
    %240 = vector.broadcast %cst_94 : f32 to vector<8x128xf32>
    %241 = arith.addf %239, %240 : vector<8x128xf32>
    %242 = vector.extract_strided_slice %233 {offsets = [0, 128], sizes = [8, 128], strides = [1, 1]} : vector<8x512xf32> to vector<8x128xf32>
    %cst_95 = arith.constant 5.000000e-01 : f32
    %243 = vector.broadcast %cst_95 : f32 to vector<8x128xf32>
    %244 = arith.mulf %243, %242 : vector<8x128xf32>
    %245 = math.tanh %244 : vector<8x128xf32>
    %cst_96 = arith.constant 5.000000e-01 : f32
    %246 = vector.broadcast %cst_96 : f32 to vector<8x128xf32>
    %247 = arith.mulf %246, %245 : vector<8x128xf32>
    %cst_97 = arith.constant 5.000000e-01 : f32
    %248 = vector.broadcast %cst_97 : f32 to vector<8x128xf32>
    %249 = arith.addf %247, %248 : vector<8x128xf32>
    %250 = vector.extract_strided_slice %233 {offsets = [0, 256], sizes = [8, 128], strides = [1, 1]} : vector<8x512xf32> to vector<8x128xf32>
    %251 = math.tanh %250 : vector<8x128xf32>
    %252 = vector.extract_strided_slice %233 {offsets = [0, 384], sizes = [8, 128], strides = [1, 1]} : vector<8x512xf32> to vector<8x128xf32>
    %cst_98 = arith.constant 5.000000e-01 : f32
    %253 = vector.broadcast %cst_98 : f32 to vector<8x128xf32>
    %254 = arith.mulf %253, %252 : vector<8x128xf32>
    %255 = math.tanh %254 : vector<8x128xf32>
    %cst_99 = arith.constant 5.000000e-01 : f32
    %256 = vector.broadcast %cst_99 : f32 to vector<8x128xf32>
    %257 = arith.mulf %256, %255 : vector<8x128xf32>
    %cst_100 = arith.constant 5.000000e-01 : f32
    %258 = vector.broadcast %cst_100 : f32 to vector<8x128xf32>
    %259 = arith.addf %257, %258 : vector<8x128xf32>
    %260 = arith.mulf %249, %220 : vector<8x128xf32>
    %261 = arith.mulf %241, %251 : vector<8x128xf32>
    %262 = arith.addf %260, %261 : vector<8x128xf32>
    %263 = math.tanh %262 : vector<8x128xf32>
    %264 = arith.mulf %259, %263 : vector<8x128xf32>
    %265 = arith.truncf %264 : vector<8x128xf32> to vector<8x128xbf16>
    %266 = arith.index_cast %c5_i32 : i32 to index
    %c0_101 = arith.constant 0 : index
    %c0_102 = arith.constant 0 : index
    %267 = vector.load %arg12[%266, %c0_101, %c0_102] : memref<8x8x128xbf16, #tpu.memory_space<vmem>>, vector<1x8x128xbf16>
    %268 = vector.shape_cast %267 : vector<1x8x128xbf16> to vector<8x128xbf16>
    %269 = vector.shape_cast %265 : vector<8x128xbf16> to vector<1x8x128xbf16>
    tpu.vector_store %arg12[%266, %c0_101, %c0_102], %269 {strides = array<i32>} : memref<8x8x128xbf16, #tpu.memory_space<vmem>>, vector<1x8x128xbf16>,
    %c6_i32 = arith.constant 6 : i32
    %270 = arith.index_cast %c6_i32 : i32 to index
    %c0_103 = arith.constant 0 : index
    %c0_104 = arith.constant 0 : index
    %271 = vector.load %arg11[%270, %c0_103, %c0_104] : memref<8x8x512xf32, #tpu.memory_space<vmem>>, vector<1x8x512xf32>
    %272 = vector.shape_cast %271 : vector<1x8x512xf32> to vector<8x512xf32>
    %273 = arith.truncf %264 : vector<8x128xf32> to vector<8x128xbf16>
    %cst_105 = arith.constant dense<0.000000e+00> : vector<8x512xf32>
    %274 = tpu.matmul %273, %4, %cst_105 {dimension_numbers = #tpu.dot_dimension_numbers<[1], [0], [0], [1], [0, 0, 1, 1], [], []>} : vector<8x128xbf16>, vector<128x512xbf16>, vector<8x512xf32> -> vector<8x512xf32>
    %275 = arith.addf %272, %274 : vector<8x512xf32>
    %276 = vector.extract_strided_slice %275 {offsets = [0, 0], sizes = [8, 128], strides = [1, 1]} : vector<8x512xf32> to vector<8x128xf32>
    %cst_106 = arith.constant 5.000000e-01 : f32
    %277 = vector.broadcast %cst_106 : f32 to vector<8x128xf32>
    %278 = arith.mulf %277, %276 : vector<8x128xf32>
    %279 = math.tanh %278 : vector<8x128xf32>
    %cst_107 = arith.constant 5.000000e-01 : f32
    %280 = vector.broadcast %cst_107 : f32 to vector<8x128xf32>
    %281 = arith.mulf %280, %279 : vector<8x128xf32>
    %cst_108 = arith.constant 5.000000e-01 : f32
    %282 = vector.broadcast %cst_108 : f32 to vector<8x128xf32>
    %283 = arith.addf %281, %282 : vector<8x128xf32>
    %284 = vector.extract_strided_slice %275 {offsets = [0, 128], sizes = [8, 128], strides = [1, 1]} : vector<8x512xf32> to vector<8x128xf32>
    %cst_109 = arith.constant 5.000000e-01 : f32
    %285 = vector.broadcast %cst_109 : f32 to vector<8x128xf32>
    %286 = arith.mulf %285, %284 : vector<8x128xf32>
    %287 = math.tanh %286 : vector<8x128xf32>
    %cst_110 = arith.constant 5.000000e-01 : f32
    %288 = vector.broadcast %cst_110 : f32 to vector<8x128xf32>
    %289 = arith.mulf %288, %287 : vector<8x128xf32>
    %cst_111 = arith.constant 5.000000e-01 : f32
    %290 = vector.broadcast %cst_111 : f32 to vector<8x128xf32>
    %291 = arith.addf %289, %290 : vector<8x128xf32>
    %292 = vector.extract_strided_slice %275 {offsets = [0, 256], sizes = [8, 128], strides = [1, 1]} : vector<8x512xf32> to vector<8x128xf32>
    %293 = math.tanh %292 : vector<8x128xf32>
    %294 = vector.extract_strided_slice %275 {offsets = [0, 384], sizes = [8, 128], strides = [1, 1]} : vector<8x512xf32> to vector<8x128xf32>
    %cst_112 = arith.constant 5.000000e-01 : f32
    %295 = vector.broadcast %cst_112 : f32 to vector<8x128xf32>
    %296 = arith.mulf %295, %294 : vector<8x128xf32>
    %297 = math.tanh %296 : vector<8x128xf32>
    %cst_113 = arith.constant 5.000000e-01 : f32
    %298 = vector.broadcast %cst_113 : f32 to vector<8x128xf32>
    %299 = arith.mulf %298, %297 : vector<8x128xf32>
    %cst_114 = arith.constant 5.000000e-01 : f32
    %300 = vector.broadcast %cst_114 : f32 to vector<8x128xf32>
    %301 = arith.addf %299, %300 : vector<8x128xf32>
    %302 = arith.mulf %291, %262 : vector<8x128xf32>
    %303 = arith.mulf %283, %293 : vector<8x128xf32>
    %304 = arith.addf %302, %303 : vector<8x128xf32>
    %305 = math.tanh %304 : vector<8x128xf32>
    %306 = arith.mulf %301, %305 : vector<8x128xf32>
    %307 = arith.truncf %306 : vector<8x128xf32> to vector<8x128xbf16>
    %308 = arith.index_cast %c6_i32 : i32 to index
    %c0_115 = arith.constant 0 : index
    %c0_116 = arith.constant 0 : index
    %309 = vector.load %arg12[%308, %c0_115, %c0_116] : memref<8x8x128xbf16, #tpu.memory_space<vmem>>, vector<1x8x128xbf16>
    %310 = vector.shape_cast %309 : vector<1x8x128xbf16> to vector<8x128xbf16>
    %311 = vector.shape_cast %307 : vector<8x128xbf16> to vector<1x8x128xbf16>
    tpu.vector_store %arg12[%308, %c0_115, %c0_116], %311 {strides = array<i32>} : memref<8x8x128xbf16, #tpu.memory_space<vmem>>, vector<1x8x128xbf16>,
    %c7_i32 = arith.constant 7 : i32
    %312 = arith.index_cast %c7_i32 : i32 to index
    %c0_117 = arith.constant 0 : index
    %c0_118 = arith.constant 0 : index
    %313 = vector.load %arg11[%312, %c0_117, %c0_118] : memref<8x8x512xf32, #tpu.memory_space<vmem>>, vector<1x8x512xf32>
    %314 = vector.shape_cast %313 : vector<1x8x512xf32> to vector<8x512xf32>
    %315 = arith.truncf %306 : vector<8x128xf32> to vector<8x128xbf16>
    %cst_119 = arith.constant dense<0.000000e+00> : vector<8x512xf32>
    %316 = tpu.matmul %315, %4, %cst_119 {dimension_numbers = #tpu.dot_dimension_numbers<[1], [0], [0], [1], [0, 0, 1, 1], [], []>} : vector<8x128xbf16>, vector<128x512xbf16>, vector<8x512xf32> -> vector<8x512xf32>
    %317 = arith.addf %314, %316 : vector<8x512xf32>
    %318 = vector.extract_strided_slice %317 {offsets = [0, 0], sizes = [8, 128], strides = [1, 1]} : vector<8x512xf32> to vector<8x128xf32>
    %cst_120 = arith.constant 5.000000e-01 : f32
    %319 = vector.broadcast %cst_120 : f32 to vector<8x128xf32>
    %320 = arith.mulf %319, %318 : vector<8x128xf32>
    %321 = math.tanh %320 : vector<8x128xf32>
    %cst_121 = arith.constant 5.000000e-01 : f32
    %322 = vector.broadcast %cst_121 : f32 to vector<8x128xf32>
    %323 = arith.mulf %322, %321 : vector<8x128xf32>
    %cst_122 = arith.constant 5.000000e-01 : f32
    %324 = vector.broadcast %cst_122 : f32 to vector<8x128xf32>
    %325 = arith.addf %323, %324 : vector<8x128xf32>
    %326 = vector.extract_strided_slice %317 {offsets = [0, 128], sizes = [8, 128], strides = [1, 1]} : vector<8x512xf32> to vector<8x128xf32>
    %cst_123 = arith.constant 5.000000e-01 : f32
    %327 = vector.broadcast %cst_123 : f32 to vector<8x128xf32>
    %328 = arith.mulf %327, %326 : vector<8x128xf32>
    %329 = math.tanh %328 : vector<8x128xf32>
    %cst_124 = arith.constant 5.000000e-01 : f32
    %330 = vector.broadcast %cst_124 : f32 to vector<8x128xf32>
    %331 = arith.mulf %330, %329 : vector<8x128xf32>
    %cst_125 = arith.constant 5.000000e-01 : f32
    %332 = vector.broadcast %cst_125 : f32 to vector<8x128xf32>
    %333 = arith.addf %331, %332 : vector<8x128xf32>
    %334 = vector.extract_strided_slice %317 {offsets = [0, 256], sizes = [8, 128], strides = [1, 1]} : vector<8x512xf32> to vector<8x128xf32>
    %335 = math.tanh %334 : vector<8x128xf32>
    %336 = vector.extract_strided_slice %317 {offsets = [0, 384], sizes = [8, 128], strides = [1, 1]} : vector<8x512xf32> to vector<8x128xf32>
    %cst_126 = arith.constant 5.000000e-01 : f32
    %337 = vector.broadcast %cst_126 : f32 to vector<8x128xf32>
    %338 = arith.mulf %337, %336 : vector<8x128xf32>
    %339 = math.tanh %338 : vector<8x128xf32>
    %cst_127 = arith.constant 5.000000e-01 : f32
    %340 = vector.broadcast %cst_127 : f32 to vector<8x128xf32>
    %341 = arith.mulf %340, %339 : vector<8x128xf32>
    %cst_128 = arith.constant 5.000000e-01 : f32
    %342 = vector.broadcast %cst_128 : f32 to vector<8x128xf32>
    %343 = arith.addf %341, %342 : vector<8x128xf32>
    %344 = arith.mulf %333, %304 : vector<8x128xf32>
    %345 = arith.mulf %325, %335 : vector<8x128xf32>
    %346 = arith.addf %344, %345 : vector<8x128xf32>
    %347 = math.tanh %346 : vector<8x128xf32>
    %348 = arith.mulf %343, %347 : vector<8x128xf32>
    %349 = arith.truncf %348 : vector<8x128xf32> to vector<8x128xbf16>
    %350 = arith.index_cast %c7_i32 : i32 to index
    %c0_129 = arith.constant 0 : index
    %c0_130 = arith.constant 0 : index
    %351 = vector.load %arg12[%350, %c0_129, %c0_130] : memref<8x8x128xbf16, #tpu.memory_space<vmem>>, vector<1x8x128xbf16>
    %352 = vector.shape_cast %351 : vector<1x8x128xbf16> to vector<8x128xbf16>
    %353 = vector.shape_cast %349 : vector<8x128xbf16> to vector<1x8x128xbf16>
    tpu.vector_store %arg12[%350, %c0_129, %c0_130], %353 {strides = array<i32>} : memref<8x8x128xbf16, #tpu.memory_space<vmem>>, vector<1x8x128xbf16>,
    %c8_i32 = arith.constant 8 : i32
    %c0_131 = arith.constant 0 : index
    %c0_132 = arith.constant 0 : index
    %c0_133 = arith.constant 0 : index
    %354 = vector.load %arg9[%c0_131, %c0_132, %c0_133] : memref<2x8x128xf32, #tpu.memory_space<vmem>>, vector<1x8x128xf32>
    %355 = vector.shape_cast %354 : vector<1x8x128xf32> to vector<8x128xf32>
    %356 = vector.shape_cast %348 : vector<8x128xf32> to vector<1x8x128xf32>
    tpu.vector_store %arg9[%c0_131, %c0_132, %c0_133], %356 {strides = array<i32>} : memref<2x8x128xf32, #tpu.memory_space<vmem>>, vector<1x8x128xf32>,
    %c0_134 = arith.constant 0 : index
    %c0_135 = arith.constant 0 : index
    %c0_136 = arith.constant 0 : index
    %357 = vector.load %arg10[%c0_134, %c0_135, %c0_136] : memref<2x8x128xf32, #tpu.memory_space<vmem>>, vector<1x8x128xf32>
    %358 = vector.shape_cast %357 : vector<1x8x128xf32> to vector<8x128xf32>
    %359 = vector.shape_cast %346 : vector<8x128xf32> to vector<1x8x128xf32>
    tpu.vector_store %arg10[%c0_134, %c0_135, %c0_136], %359 {strides = array<i32>} : memref<2x8x128xf32, #tpu.memory_space<vmem>>, vector<1x8x128xf32>,
    %c0_137 = arith.constant 0 : index
    %c0_138 = arith.constant 0 : index
    %360 = vector.load %arg5[%c0_137, %c0_138] : memref<128x512xbf16, #tpu.memory_space<vmem>>, vector<128x512xbf16>
    %c0_139 = arith.constant 0 : index
    %c0_140 = arith.constant 0 : index
    %361 = vector.load %arg6[%c0_139, %c0_140] : memref<128x512xbf16, #tpu.memory_space<vmem>>, vector<128x512xbf16>
    %c0_141 = arith.constant 0 : index
    %c0_142 = arith.constant 0 : index
    %362 = vector.load %arg7[%c0_141, %c0_142] : memref<1x512xf32, #tpu.memory_space<vmem>>, vector<1x512xf32>
    %c0_143 = arith.constant 0 : index
    %c0_144 = arith.constant 0 : index
    %c0_145 = arith.constant 0 : index
    %363 = vector.load %arg12[%c0_143, %c0_144, %c0_145] : memref<8x8x128xbf16, #tpu.memory_space<vmem>>, vector<8x8x128xbf16>
    %364 = vector.shape_cast %363 : vector<8x8x128xbf16> to vector<64x128xbf16>
    %cst_146 = arith.constant dense<0.000000e+00> : vector<64x512xf32>
    %365 = tpu.matmul %364, %360, %cst_146 {dimension_numbers = #tpu.dot_dimension_numbers<[1], [0], [0], [1], [0, 0, 1, 1], [], []>} : vector<64x128xbf16>, vector<128x512xbf16>, vector<64x512xf32> -> vector<64x512xf32>
    %366 = vector.broadcast %362 : vector<1x512xf32> to vector<64x512xf32>
    %367 = arith.addf %365, %366 : vector<64x512xf32>
    %368 = vector.shape_cast %367 : vector<64x512xf32> to vector<8x8x512xf32>
    %c0_147 = arith.constant 0 : index
    %c0_148 = arith.constant 0 : index
    %c0_149 = arith.constant 0 : index
    %369 = vector.load %arg11[%c0_147, %c0_148, %c0_149] : memref<8x8x512xf32, #tpu.memory_space<vmem>>, vector<8x8x512xf32>
    tpu.vector_store %arg11[%c0_147, %c0_148, %c0_149], %368 {strides = array<i32>} : memref<8x8x512xf32, #tpu.memory_space<vmem>>, vector<8x8x512xf32>,
    %c1 = arith.constant 1 : index
    %c0_150 = arith.constant 0 : index
    %c0_151 = arith.constant 0 : index
    %370 = vector.load %arg9[%c1, %c0_150, %c0_151] : memref<2x8x128xf32, #tpu.memory_space<vmem>>, vector<1x8x128xf32>
    %371 = vector.shape_cast %370 : vector<1x8x128xf32> to vector<8x128xf32>
    %c1_152 = arith.constant 1 : index
    %c0_153 = arith.constant 0 : index
    %c0_154 = arith.constant 0 : index
    %372 = vector.load %arg10[%c1_152, %c0_153, %c0_154] : memref<2x8x128xf32, #tpu.memory_space<vmem>>, vector<1x8x128xf32>
    %373 = vector.shape_cast %372 : vector<1x8x128xf32> to vector<8x128xf32>
    %c0_i32_155 = arith.constant 0 : i32
    %374 = arith.index_cast %c0_i32_155 : i32 to index
    %c0_156 = arith.constant 0 : index
    %c0_157 = arith.constant 0 : index
    %375 = vector.load %arg11[%374, %c0_156, %c0_157] : memref<8x8x512xf32, #tpu.memory_space<vmem>>, vector<1x8x512xf32>
    %376 = vector.shape_cast %375 : vector<1x8x512xf32> to vector<8x512xf32>
    %377 = arith.truncf %371 : vector<8x128xf32> to vector<8x128xbf16>
    %cst_158 = arith.constant dense<0.000000e+00> : vector<8x512xf32>
    %378 = tpu.matmul %377, %361, %cst_158 {dimension_numbers = #tpu.dot_dimension_numbers<[1], [0], [0], [1], [0, 0, 1, 1], [], []>} : vector<8x128xbf16>, vector<128x512xbf16>, vector<8x512xf32> -> vector<8x512xf32>
    %379 = arith.addf %376, %378 : vector<8x512xf32>
    %380 = vector.extract_strided_slice %379 {offsets = [0, 0], sizes = [8, 128], strides = [1, 1]} : vector<8x512xf32> to vector<8x128xf32>
    %cst_159 = arith.constant 5.000000e-01 : f32
    %381 = vector.broadcast %cst_159 : f32 to vector<8x128xf32>
    %382 = arith.mulf %381, %380 : vector<8x128xf32>
    %383 = math.tanh %382 : vector<8x128xf32>
    %cst_160 = arith.constant 5.000000e-01 : f32
    %384 = vector.broadcast %cst_160 : f32 to vector<8x128xf32>
    %385 = arith.mulf %384, %383 : vector<8x128xf32>
    %cst_161 = arith.constant 5.000000e-01 : f32
    %386 = vector.broadcast %cst_161 : f32 to vector<8x128xf32>
    %387 = arith.addf %385, %386 : vector<8x128xf32>
    %388 = vector.extract_strided_slice %379 {offsets = [0, 128], sizes = [8, 128], strides = [1, 1]} : vector<8x512xf32> to vector<8x128xf32>
    %cst_162 = arith.constant 5.000000e-01 : f32
    %389 = vector.broadcast %cst_162 : f32 to vector<8x128xf32>
    %390 = arith.mulf %389, %388 : vector<8x128xf32>
    %391 = math.tanh %390 : vector<8x128xf32>
    %cst_163 = arith.constant 5.000000e-01 : f32
    %392 = vector.broadcast %cst_163 : f32 to vector<8x128xf32>
    %393 = arith.mulf %392, %391 : vector<8x128xf32>
    %cst_164 = arith.constant 5.000000e-01 : f32
    %394 = vector.broadcast %cst_164 : f32 to vector<8x128xf32>
    %395 = arith.addf %393, %394 : vector<8x128xf32>
    %396 = vector.extract_strided_slice %379 {offsets = [0, 256], sizes = [8, 128], strides = [1, 1]} : vector<8x512xf32> to vector<8x128xf32>
    %397 = math.tanh %396 : vector<8x128xf32>
    %398 = vector.extract_strided_slice %379 {offsets = [0, 384], sizes = [8, 128], strides = [1, 1]} : vector<8x512xf32> to vector<8x128xf32>
    %cst_165 = arith.constant 5.000000e-01 : f32
    %399 = vector.broadcast %cst_165 : f32 to vector<8x128xf32>
    %400 = arith.mulf %399, %398 : vector<8x128xf32>
    %401 = math.tanh %400 : vector<8x128xf32>
    %cst_166 = arith.constant 5.000000e-01 : f32
    %402 = vector.broadcast %cst_166 : f32 to vector<8x128xf32>
    %403 = arith.mulf %402, %401 : vector<8x128xf32>
    %cst_167 = arith.constant 5.000000e-01 : f32
    %404 = vector.broadcast %cst_167 : f32 to vector<8x128xf32>
    %405 = arith.addf %403, %404 : vector<8x128xf32>
    %406 = arith.mulf %395, %373 : vector<8x128xf32>
    %407 = arith.mulf %387, %397 : vector<8x128xf32>
    %408 = arith.addf %406, %407 : vector<8x128xf32>
    %409 = math.tanh %408 : vector<8x128xf32>
    %410 = arith.mulf %405, %409 : vector<8x128xf32>
    %411 = arith.truncf %410 : vector<8x128xf32> to vector<8x128xbf16>
    %412 = arith.index_cast %c0_i32_155 : i32 to index
    %c0_168 = arith.constant 0 : index
    %c0_169 = arith.constant 0 : index
    %413 = vector.load %arg12[%412, %c0_168, %c0_169] : memref<8x8x128xbf16, #tpu.memory_space<vmem>>, vector<1x8x128xbf16>
    %414 = vector.shape_cast %413 : vector<1x8x128xbf16> to vector<8x128xbf16>
    %415 = vector.shape_cast %411 : vector<8x128xbf16> to vector<1x8x128xbf16>
    tpu.vector_store %arg12[%412, %c0_168, %c0_169], %415 {strides = array<i32>} : memref<8x8x128xbf16, #tpu.memory_space<vmem>>, vector<1x8x128xbf16>,
    %c1_i32_170 = arith.constant 1 : i32
    %416 = arith.index_cast %c1_i32_170 : i32 to index
    %c0_171 = arith.constant 0 : index
    %c0_172 = arith.constant 0 : index
    %417 = vector.load %arg11[%416, %c0_171, %c0_172] : memref<8x8x512xf32, #tpu.memory_space<vmem>>, vector<1x8x512xf32>
    %418 = vector.shape_cast %417 : vector<1x8x512xf32> to vector<8x512xf32>
    %419 = arith.truncf %410 : vector<8x128xf32> to vector<8x128xbf16>
    %cst_173 = arith.constant dense<0.000000e+00> : vector<8x512xf32>
    %420 = tpu.matmul %419, %361, %cst_173 {dimension_numbers = #tpu.dot_dimension_numbers<[1], [0], [0], [1], [0, 0, 1, 1], [], []>} : vector<8x128xbf16>, vector<128x512xbf16>, vector<8x512xf32> -> vector<8x512xf32>
    %421 = arith.addf %418, %420 : vector<8x512xf32>
    %422 = vector.extract_strided_slice %421 {offsets = [0, 0], sizes = [8, 128], strides = [1, 1]} : vector<8x512xf32> to vector<8x128xf32>
    %cst_174 = arith.constant 5.000000e-01 : f32
    %423 = vector.broadcast %cst_174 : f32 to vector<8x128xf32>
    %424 = arith.mulf %423, %422 : vector<8x128xf32>
    %425 = math.tanh %424 : vector<8x128xf32>
    %cst_175 = arith.constant 5.000000e-01 : f32
    %426 = vector.broadcast %cst_175 : f32 to vector<8x128xf32>
    %427 = arith.mulf %426, %425 : vector<8x128xf32>
    %cst_176 = arith.constant 5.000000e-01 : f32
    %428 = vector.broadcast %cst_176 : f32 to vector<8x128xf32>
    %429 = arith.addf %427, %428 : vector<8x128xf32>
    %430 = vector.extract_strided_slice %421 {offsets = [0, 128], sizes = [8, 128], strides = [1, 1]} : vector<8x512xf32> to vector<8x128xf32>
    %cst_177 = arith.constant 5.000000e-01 : f32
    %431 = vector.broadcast %cst_177 : f32 to vector<8x128xf32>
    %432 = arith.mulf %431, %430 : vector<8x128xf32>
    %433 = math.tanh %432 : vector<8x128xf32>
    %cst_178 = arith.constant 5.000000e-01 : f32
    %434 = vector.broadcast %cst_178 : f32 to vector<8x128xf32>
    %435 = arith.mulf %434, %433 : vector<8x128xf32>
    %cst_179 = arith.constant 5.000000e-01 : f32
    %436 = vector.broadcast %cst_179 : f32 to vector<8x128xf32>
    %437 = arith.addf %435, %436 : vector<8x128xf32>
    %438 = vector.extract_strided_slice %421 {offsets = [0, 256], sizes = [8, 128], strides = [1, 1]} : vector<8x512xf32> to vector<8x128xf32>
    %439 = math.tanh %438 : vector<8x128xf32>
    %440 = vector.extract_strided_slice %421 {offsets = [0, 384], sizes = [8, 128], strides = [1, 1]} : vector<8x512xf32> to vector<8x128xf32>
    %cst_180 = arith.constant 5.000000e-01 : f32
    %441 = vector.broadcast %cst_180 : f32 to vector<8x128xf32>
    %442 = arith.mulf %441, %440 : vector<8x128xf32>
    %443 = math.tanh %442 : vector<8x128xf32>
    %cst_181 = arith.constant 5.000000e-01 : f32
    %444 = vector.broadcast %cst_181 : f32 to vector<8x128xf32>
    %445 = arith.mulf %444, %443 : vector<8x128xf32>
    %cst_182 = arith.constant 5.000000e-01 : f32
    %446 = vector.broadcast %cst_182 : f32 to vector<8x128xf32>
    %447 = arith.addf %445, %446 : vector<8x128xf32>
    %448 = arith.mulf %437, %408 : vector<8x128xf32>
    %449 = arith.mulf %429, %439 : vector<8x128xf32>
    %450 = arith.addf %448, %449 : vector<8x128xf32>
    %451 = math.tanh %450 : vector<8x128xf32>
    %452 = arith.mulf %447, %451 : vector<8x128xf32>
    %453 = arith.truncf %452 : vector<8x128xf32> to vector<8x128xbf16>
    %454 = arith.index_cast %c1_i32_170 : i32 to index
    %c0_183 = arith.constant 0 : index
    %c0_184 = arith.constant 0 : index
    %455 = vector.load %arg12[%454, %c0_183, %c0_184] : memref<8x8x128xbf16, #tpu.memory_space<vmem>>, vector<1x8x128xbf16>
    %456 = vector.shape_cast %455 : vector<1x8x128xbf16> to vector<8x128xbf16>
    %457 = vector.shape_cast %453 : vector<8x128xbf16> to vector<1x8x128xbf16>
    tpu.vector_store %arg12[%454, %c0_183, %c0_184], %457 {strides = array<i32>} : memref<8x8x128xbf16, #tpu.memory_space<vmem>>, vector<1x8x128xbf16>,
    %c2_i32_185 = arith.constant 2 : i32
    %458 = arith.index_cast %c2_i32_185 : i32 to index
    %c0_186 = arith.constant 0 : index
    %c0_187 = arith.constant 0 : index
    %459 = vector.load %arg11[%458, %c0_186, %c0_187] : memref<8x8x512xf32, #tpu.memory_space<vmem>>, vector<1x8x512xf32>
    %460 = vector.shape_cast %459 : vector<1x8x512xf32> to vector<8x512xf32>
    %461 = arith.truncf %452 : vector<8x128xf32> to vector<8x128xbf16>
    %cst_188 = arith.constant dense<0.000000e+00> : vector<8x512xf32>
    %462 = tpu.matmul %461, %361, %cst_188 {dimension_numbers = #tpu.dot_dimension_numbers<[1], [0], [0], [1], [0, 0, 1, 1], [], []>} : vector<8x128xbf16>, vector<128x512xbf16>, vector<8x512xf32> -> vector<8x512xf32>
    %463 = arith.addf %460, %462 : vector<8x512xf32>
    %464 = vector.extract_strided_slice %463 {offsets = [0, 0], sizes = [8, 128], strides = [1, 1]} : vector<8x512xf32> to vector<8x128xf32>
    %cst_189 = arith.constant 5.000000e-01 : f32
    %465 = vector.broadcast %cst_189 : f32 to vector<8x128xf32>
    %466 = arith.mulf %465, %464 : vector<8x128xf32>
    %467 = math.tanh %466 : vector<8x128xf32>
    %cst_190 = arith.constant 5.000000e-01 : f32
    %468 = vector.broadcast %cst_190 : f32 to vector<8x128xf32>
    %469 = arith.mulf %468, %467 : vector<8x128xf32>
    %cst_191 = arith.constant 5.000000e-01 : f32
    %470 = vector.broadcast %cst_191 : f32 to vector<8x128xf32>
    %471 = arith.addf %469, %470 : vector<8x128xf32>
    %472 = vector.extract_strided_slice %463 {offsets = [0, 128], sizes = [8, 128], strides = [1, 1]} : vector<8x512xf32> to vector<8x128xf32>
    %cst_192 = arith.constant 5.000000e-01 : f32
    %473 = vector.broadcast %cst_192 : f32 to vector<8x128xf32>
    %474 = arith.mulf %473, %472 : vector<8x128xf32>
    %475 = math.tanh %474 : vector<8x128xf32>
    %cst_193 = arith.constant 5.000000e-01 : f32
    %476 = vector.broadcast %cst_193 : f32 to vector<8x128xf32>
    %477 = arith.mulf %476, %475 : vector<8x128xf32>
    %cst_194 = arith.constant 5.000000e-01 : f32
    %478 = vector.broadcast %cst_194 : f32 to vector<8x128xf32>
    %479 = arith.addf %477, %478 : vector<8x128xf32>
    %480 = vector.extract_strided_slice %463 {offsets = [0, 256], sizes = [8, 128], strides = [1, 1]} : vector<8x512xf32> to vector<8x128xf32>
    %481 = math.tanh %480 : vector<8x128xf32>
    %482 = vector.extract_strided_slice %463 {offsets = [0, 384], sizes = [8, 128], strides = [1, 1]} : vector<8x512xf32> to vector<8x128xf32>
    %cst_195 = arith.constant 5.000000e-01 : f32
    %483 = vector.broadcast %cst_195 : f32 to vector<8x128xf32>
    %484 = arith.mulf %483, %482 : vector<8x128xf32>
    %485 = math.tanh %484 : vector<8x128xf32>
    %cst_196 = arith.constant 5.000000e-01 : f32
    %486 = vector.broadcast %cst_196 : f32 to vector<8x128xf32>
    %487 = arith.mulf %486, %485 : vector<8x128xf32>
    %cst_197 = arith.constant 5.000000e-01 : f32
    %488 = vector.broadcast %cst_197 : f32 to vector<8x128xf32>
    %489 = arith.addf %487, %488 : vector<8x128xf32>
    %490 = arith.mulf %479, %450 : vector<8x128xf32>
    %491 = arith.mulf %471, %481 : vector<8x128xf32>
    %492 = arith.addf %490, %491 : vector<8x128xf32>
    %493 = math.tanh %492 : vector<8x128xf32>
    %494 = arith.mulf %489, %493 : vector<8x128xf32>
    %495 = arith.truncf %494 : vector<8x128xf32> to vector<8x128xbf16>
    %496 = arith.index_cast %c2_i32_185 : i32 to index
    %c0_198 = arith.constant 0 : index
    %c0_199 = arith.constant 0 : index
    %497 = vector.load %arg12[%496, %c0_198, %c0_199] : memref<8x8x128xbf16, #tpu.memory_space<vmem>>, vector<1x8x128xbf16>
    %498 = vector.shape_cast %497 : vector<1x8x128xbf16> to vector<8x128xbf16>
    %499 = vector.shape_cast %495 : vector<8x128xbf16> to vector<1x8x128xbf16>
    tpu.vector_store %arg12[%496, %c0_198, %c0_199], %499 {strides = array<i32>} : memref<8x8x128xbf16, #tpu.memory_space<vmem>>, vector<1x8x128xbf16>,
    %c3_i32_200 = arith.constant 3 : i32
    %500 = arith.index_cast %c3_i32_200 : i32 to index
    %c0_201 = arith.constant 0 : index
    %c0_202 = arith.constant 0 : index
    %501 = vector.load %arg11[%500, %c0_201, %c0_202] : memref<8x8x512xf32, #tpu.memory_space<vmem>>, vector<1x8x512xf32>
    %502 = vector.shape_cast %501 : vector<1x8x512xf32> to vector<8x512xf32>
    %503 = arith.truncf %494 : vector<8x128xf32> to vector<8x128xbf16>
    %cst_203 = arith.constant dense<0.000000e+00> : vector<8x512xf32>
    %504 = tpu.matmul %503, %361, %cst_203 {dimension_numbers = #tpu.dot_dimension_numbers<[1], [0], [0], [1], [0, 0, 1, 1], [], []>} : vector<8x128xbf16>, vector<128x512xbf16>, vector<8x512xf32> -> vector<8x512xf32>
    %505 = arith.addf %502, %504 : vector<8x512xf32>
    %506 = vector.extract_strided_slice %505 {offsets = [0, 0], sizes = [8, 128], strides = [1, 1]} : vector<8x512xf32> to vector<8x128xf32>
    %cst_204 = arith.constant 5.000000e-01 : f32
    %507 = vector.broadcast %cst_204 : f32 to vector<8x128xf32>
    %508 = arith.mulf %507, %506 : vector<8x128xf32>
    %509 = math.tanh %508 : vector<8x128xf32>
    %cst_205 = arith.constant 5.000000e-01 : f32
    %510 = vector.broadcast %cst_205 : f32 to vector<8x128xf32>
    %511 = arith.mulf %510, %509 : vector<8x128xf32>
    %cst_206 = arith.constant 5.000000e-01 : f32
    %512 = vector.broadcast %cst_206 : f32 to vector<8x128xf32>
    %513 = arith.addf %511, %512 : vector<8x128xf32>
    %514 = vector.extract_strided_slice %505 {offsets = [0, 128], sizes = [8, 128], strides = [1, 1]} : vector<8x512xf32> to vector<8x128xf32>
    %cst_207 = arith.constant 5.000000e-01 : f32
    %515 = vector.broadcast %cst_207 : f32 to vector<8x128xf32>
    %516 = arith.mulf %515, %514 : vector<8x128xf32>
    %517 = math.tanh %516 : vector<8x128xf32>
    %cst_208 = arith.constant 5.000000e-01 : f32
    %518 = vector.broadcast %cst_208 : f32 to vector<8x128xf32>
    %519 = arith.mulf %518, %517 : vector<8x128xf32>
    %cst_209 = arith.constant 5.000000e-01 : f32
    %520 = vector.broadcast %cst_209 : f32 to vector<8x128xf32>
    %521 = arith.addf %519, %520 : vector<8x128xf32>
    %522 = vector.extract_strided_slice %505 {offsets = [0, 256], sizes = [8, 128], strides = [1, 1]} : vector<8x512xf32> to vector<8x128xf32>
    %523 = math.tanh %522 : vector<8x128xf32>
    %524 = vector.extract_strided_slice %505 {offsets = [0, 384], sizes = [8, 128], strides = [1, 1]} : vector<8x512xf32> to vector<8x128xf32>
    %cst_210 = arith.constant 5.000000e-01 : f32
    %525 = vector.broadcast %cst_210 : f32 to vector<8x128xf32>
    %526 = arith.mulf %525, %524 : vector<8x128xf32>
    %527 = math.tanh %526 : vector<8x128xf32>
    %cst_211 = arith.constant 5.000000e-01 : f32
    %528 = vector.broadcast %cst_211 : f32 to vector<8x128xf32>
    %529 = arith.mulf %528, %527 : vector<8x128xf32>
    %cst_212 = arith.constant 5.000000e-01 : f32
    %530 = vector.broadcast %cst_212 : f32 to vector<8x128xf32>
    %531 = arith.addf %529, %530 : vector<8x128xf32>
    %532 = arith.mulf %521, %492 : vector<8x128xf32>
    %533 = arith.mulf %513, %523 : vector<8x128xf32>
    %534 = arith.addf %532, %533 : vector<8x128xf32>
    %535 = math.tanh %534 : vector<8x128xf32>
    %536 = arith.mulf %531, %535 : vector<8x128xf32>
    %537 = arith.truncf %536 : vector<8x128xf32> to vector<8x128xbf16>
    %538 = arith.index_cast %c3_i32_200 : i32 to index
    %c0_213 = arith.constant 0 : index
    %c0_214 = arith.constant 0 : index
    %539 = vector.load %arg12[%538, %c0_213, %c0_214] : memref<8x8x128xbf16, #tpu.memory_space<vmem>>, vector<1x8x128xbf16>
    %540 = vector.shape_cast %539 : vector<1x8x128xbf16> to vector<8x128xbf16>
    %541 = vector.shape_cast %537 : vector<8x128xbf16> to vector<1x8x128xbf16>
    tpu.vector_store %arg12[%538, %c0_213, %c0_214], %541 {strides = array<i32>} : memref<8x8x128xbf16, #tpu.memory_space<vmem>>, vector<1x8x128xbf16>,
    %c4_i32_215 = arith.constant 4 : i32
    %542 = arith.index_cast %c4_i32_215 : i32 to index
    %c0_216 = arith.constant 0 : index
    %c0_217 = arith.constant 0 : index
    %543 = vector.load %arg11[%542, %c0_216, %c0_217] : memref<8x8x512xf32, #tpu.memory_space<vmem>>, vector<1x8x512xf32>
    %544 = vector.shape_cast %543 : vector<1x8x512xf32> to vector<8x512xf32>
    %545 = arith.truncf %536 : vector<8x128xf32> to vector<8x128xbf16>
    %cst_218 = arith.constant dense<0.000000e+00> : vector<8x512xf32>
    %546 = tpu.matmul %545, %361, %cst_218 {dimension_numbers = #tpu.dot_dimension_numbers<[1], [0], [0], [1], [0, 0, 1, 1], [], []>} : vector<8x128xbf16>, vector<128x512xbf16>, vector<8x512xf32> -> vector<8x512xf32>
    %547 = arith.addf %544, %546 : vector<8x512xf32>
    %548 = vector.extract_strided_slice %547 {offsets = [0, 0], sizes = [8, 128], strides = [1, 1]} : vector<8x512xf32> to vector<8x128xf32>
    %cst_219 = arith.constant 5.000000e-01 : f32
    %549 = vector.broadcast %cst_219 : f32 to vector<8x128xf32>
    %550 = arith.mulf %549, %548 : vector<8x128xf32>
    %551 = math.tanh %550 : vector<8x128xf32>
    %cst_220 = arith.constant 5.000000e-01 : f32
    %552 = vector.broadcast %cst_220 : f32 to vector<8x128xf32>
    %553 = arith.mulf %552, %551 : vector<8x128xf32>
    %cst_221 = arith.constant 5.000000e-01 : f32
    %554 = vector.broadcast %cst_221 : f32 to vector<8x128xf32>
    %555 = arith.addf %553, %554 : vector<8x128xf32>
    %556 = vector.extract_strided_slice %547 {offsets = [0, 128], sizes = [8, 128], strides = [1, 1]} : vector<8x512xf32> to vector<8x128xf32>
    %cst_222 = arith.constant 5.000000e-01 : f32
    %557 = vector.broadcast %cst_222 : f32 to vector<8x128xf32>
    %558 = arith.mulf %557, %556 : vector<8x128xf32>
    %559 = math.tanh %558 : vector<8x128xf32>
    %cst_223 = arith.constant 5.000000e-01 : f32
    %560 = vector.broadcast %cst_223 : f32 to vector<8x128xf32>
    %561 = arith.mulf %560, %559 : vector<8x128xf32>
    %cst_224 = arith.constant 5.000000e-01 : f32
    %562 = vector.broadcast %cst_224 : f32 to vector<8x128xf32>
    %563 = arith.addf %561, %562 : vector<8x128xf32>
    %564 = vector.extract_strided_slice %547 {offsets = [0, 256], sizes = [8, 128], strides = [1, 1]} : vector<8x512xf32> to vector<8x128xf32>
    %565 = math.tanh %564 : vector<8x128xf32>
    %566 = vector.extract_strided_slice %547 {offsets = [0, 384], sizes = [8, 128], strides = [1, 1]} : vector<8x512xf32> to vector<8x128xf32>
    %cst_225 = arith.constant 5.000000e-01 : f32
    %567 = vector.broadcast %cst_225 : f32 to vector<8x128xf32>
    %568 = arith.mulf %567, %566 : vector<8x128xf32>
    %569 = math.tanh %568 : vector<8x128xf32>
    %cst_226 = arith.constant 5.000000e-01 : f32
    %570 = vector.broadcast %cst_226 : f32 to vector<8x128xf32>
    %571 = arith.mulf %570, %569 : vector<8x128xf32>
    %cst_227 = arith.constant 5.000000e-01 : f32
    %572 = vector.broadcast %cst_227 : f32 to vector<8x128xf32>
    %573 = arith.addf %571, %572 : vector<8x128xf32>
    %574 = arith.mulf %563, %534 : vector<8x128xf32>
    %575 = arith.mulf %555, %565 : vector<8x128xf32>
    %576 = arith.addf %574, %575 : vector<8x128xf32>
    %577 = math.tanh %576 : vector<8x128xf32>
    %578 = arith.mulf %573, %577 : vector<8x128xf32>
    %579 = arith.truncf %578 : vector<8x128xf32> to vector<8x128xbf16>
    %580 = arith.index_cast %c4_i32_215 : i32 to index
    %c0_228 = arith.constant 0 : index
    %c0_229 = arith.constant 0 : index
    %581 = vector.load %arg12[%580, %c0_228, %c0_229] : memref<8x8x128xbf16, #tpu.memory_space<vmem>>, vector<1x8x128xbf16>
    %582 = vector.shape_cast %581 : vector<1x8x128xbf16> to vector<8x128xbf16>
    %583 = vector.shape_cast %579 : vector<8x128xbf16> to vector<1x8x128xbf16>
    tpu.vector_store %arg12[%580, %c0_228, %c0_229], %583 {strides = array<i32>} : memref<8x8x128xbf16, #tpu.memory_space<vmem>>, vector<1x8x128xbf16>,
    %c5_i32_230 = arith.constant 5 : i32
    %584 = arith.index_cast %c5_i32_230 : i32 to index
    %c0_231 = arith.constant 0 : index
    %c0_232 = arith.constant 0 : index
    %585 = vector.load %arg11[%584, %c0_231, %c0_232] : memref<8x8x512xf32, #tpu.memory_space<vmem>>, vector<1x8x512xf32>
    %586 = vector.shape_cast %585 : vector<1x8x512xf32> to vector<8x512xf32>
    %587 = arith.truncf %578 : vector<8x128xf32> to vector<8x128xbf16>
    %cst_233 = arith.constant dense<0.000000e+00> : vector<8x512xf32>
    %588 = tpu.matmul %587, %361, %cst_233 {dimension_numbers = #tpu.dot_dimension_numbers<[1], [0], [0], [1], [0, 0, 1, 1], [], []>} : vector<8x128xbf16>, vector<128x512xbf16>, vector<8x512xf32> -> vector<8x512xf32>
    %589 = arith.addf %586, %588 : vector<8x512xf32>
    %590 = vector.extract_strided_slice %589 {offsets = [0, 0], sizes = [8, 128], strides = [1, 1]} : vector<8x512xf32> to vector<8x128xf32>
    %cst_234 = arith.constant 5.000000e-01 : f32
    %591 = vector.broadcast %cst_234 : f32 to vector<8x128xf32>
    %592 = arith.mulf %591, %590 : vector<8x128xf32>
    %593 = math.tanh %592 : vector<8x128xf32>
    %cst_235 = arith.constant 5.000000e-01 : f32
    %594 = vector.broadcast %cst_235 : f32 to vector<8x128xf32>
    %595 = arith.mulf %594, %593 : vector<8x128xf32>
    %cst_236 = arith.constant 5.000000e-01 : f32
    %596 = vector.broadcast %cst_236 : f32 to vector<8x128xf32>
    %597 = arith.addf %595, %596 : vector<8x128xf32>
    %598 = vector.extract_strided_slice %589 {offsets = [0, 128], sizes = [8, 128], strides = [1, 1]} : vector<8x512xf32> to vector<8x128xf32>
    %cst_237 = arith.constant 5.000000e-01 : f32
    %599 = vector.broadcast %cst_237 : f32 to vector<8x128xf32>
    %600 = arith.mulf %599, %598 : vector<8x128xf32>
    %601 = math.tanh %600 : vector<8x128xf32>
    %cst_238 = arith.constant 5.000000e-01 : f32
    %602 = vector.broadcast %cst_238 : f32 to vector<8x128xf32>
    %603 = arith.mulf %602, %601 : vector<8x128xf32>
    %cst_239 = arith.constant 5.000000e-01 : f32
    %604 = vector.broadcast %cst_239 : f32 to vector<8x128xf32>
    %605 = arith.addf %603, %604 : vector<8x128xf32>
    %606 = vector.extract_strided_slice %589 {offsets = [0, 256], sizes = [8, 128], strides = [1, 1]} : vector<8x512xf32> to vector<8x128xf32>
    %607 = math.tanh %606 : vector<8x128xf32>
    %608 = vector.extract_strided_slice %589 {offsets = [0, 384], sizes = [8, 128], strides = [1, 1]} : vector<8x512xf32> to vector<8x128xf32>
    %cst_240 = arith.constant 5.000000e-01 : f32
    %609 = vector.broadcast %cst_240 : f32 to vector<8x128xf32>
    %610 = arith.mulf %609, %608 : vector<8x128xf32>
    %611 = math.tanh %610 : vector<8x128xf32>
    %cst_241 = arith.constant 5.000000e-01 : f32
    %612 = vector.broadcast %cst_241 : f32 to vector<8x128xf32>
    %613 = arith.mulf %612, %611 : vector<8x128xf32>
    %cst_242 = arith.constant 5.000000e-01 : f32
    %614 = vector.broadcast %cst_242 : f32 to vector<8x128xf32>
    %615 = arith.addf %613, %614 : vector<8x128xf32>
    %616 = arith.mulf %605, %576 : vector<8x128xf32>
    %617 = arith.mulf %597, %607 : vector<8x128xf32>
    %618 = arith.addf %616, %617 : vector<8x128xf32>
    %619 = math.tanh %618 : vector<8x128xf32>
    %620 = arith.mulf %615, %619 : vector<8x128xf32>
    %621 = arith.truncf %620 : vector<8x128xf32> to vector<8x128xbf16>
    %622 = arith.index_cast %c5_i32_230 : i32 to index
    %c0_243 = arith.constant 0 : index
    %c0_244 = arith.constant 0 : index
    %623 = vector.load %arg12[%622, %c0_243, %c0_244] : memref<8x8x128xbf16, #tpu.memory_space<vmem>>, vector<1x8x128xbf16>
    %624 = vector.shape_cast %623 : vector<1x8x128xbf16> to vector<8x128xbf16>
    %625 = vector.shape_cast %621 : vector<8x128xbf16> to vector<1x8x128xbf16>
    tpu.vector_store %arg12[%622, %c0_243, %c0_244], %625 {strides = array<i32>} : memref<8x8x128xbf16, #tpu.memory_space<vmem>>, vector<1x8x128xbf16>,
    %c6_i32_245 = arith.constant 6 : i32
    %626 = arith.index_cast %c6_i32_245 : i32 to index
    %c0_246 = arith.constant 0 : index
    %c0_247 = arith.constant 0 : index
    %627 = vector.load %arg11[%626, %c0_246, %c0_247] : memref<8x8x512xf32, #tpu.memory_space<vmem>>, vector<1x8x512xf32>
    %628 = vector.shape_cast %627 : vector<1x8x512xf32> to vector<8x512xf32>
    %629 = arith.truncf %620 : vector<8x128xf32> to vector<8x128xbf16>
    %cst_248 = arith.constant dense<0.000000e+00> : vector<8x512xf32>
    %630 = tpu.matmul %629, %361, %cst_248 {dimension_numbers = #tpu.dot_dimension_numbers<[1], [0], [0], [1], [0, 0, 1, 1], [], []>} : vector<8x128xbf16>, vector<128x512xbf16>, vector<8x512xf32> -> vector<8x512xf32>
    %631 = arith.addf %628, %630 : vector<8x512xf32>
    %632 = vector.extract_strided_slice %631 {offsets = [0, 0], sizes = [8, 128], strides = [1, 1]} : vector<8x512xf32> to vector<8x128xf32>
    %cst_249 = arith.constant 5.000000e-01 : f32
    %633 = vector.broadcast %cst_249 : f32 to vector<8x128xf32>
    %634 = arith.mulf %633, %632 : vector<8x128xf32>
    %635 = math.tanh %634 : vector<8x128xf32>
    %cst_250 = arith.constant 5.000000e-01 : f32
    %636 = vector.broadcast %cst_250 : f32 to vector<8x128xf32>
    %637 = arith.mulf %636, %635 : vector<8x128xf32>
    %cst_251 = arith.constant 5.000000e-01 : f32
    %638 = vector.broadcast %cst_251 : f32 to vector<8x128xf32>
    %639 = arith.addf %637, %638 : vector<8x128xf32>
    %640 = vector.extract_strided_slice %631 {offsets = [0, 128], sizes = [8, 128], strides = [1, 1]} : vector<8x512xf32> to vector<8x128xf32>
    %cst_252 = arith.constant 5.000000e-01 : f32
    %641 = vector.broadcast %cst_252 : f32 to vector<8x128xf32>
    %642 = arith.mulf %641, %640 : vector<8x128xf32>
    %643 = math.tanh %642 : vector<8x128xf32>
    %cst_253 = arith.constant 5.000000e-01 : f32
    %644 = vector.broadcast %cst_253 : f32 to vector<8x128xf32>
    %645 = arith.mulf %644, %643 : vector<8x128xf32>
    %cst_254 = arith.constant 5.000000e-01 : f32
    %646 = vector.broadcast %cst_254 : f32 to vector<8x128xf32>
    %647 = arith.addf %645, %646 : vector<8x128xf32>
    %648 = vector.extract_strided_slice %631 {offsets = [0, 256], sizes = [8, 128], strides = [1, 1]} : vector<8x512xf32> to vector<8x128xf32>
    %649 = math.tanh %648 : vector<8x128xf32>
    %650 = vector.extract_strided_slice %631 {offsets = [0, 384], sizes = [8, 128], strides = [1, 1]} : vector<8x512xf32> to vector<8x128xf32>
    %cst_255 = arith.constant 5.000000e-01 : f32
    %651 = vector.broadcast %cst_255 : f32 to vector<8x128xf32>
    %652 = arith.mulf %651, %650 : vector<8x128xf32>
    %653 = math.tanh %652 : vector<8x128xf32>
    %cst_256 = arith.constant 5.000000e-01 : f32
    %654 = vector.broadcast %cst_256 : f32 to vector<8x128xf32>
    %655 = arith.mulf %654, %653 : vector<8x128xf32>
    %cst_257 = arith.constant 5.000000e-01 : f32
    %656 = vector.broadcast %cst_257 : f32 to vector<8x128xf32>
    %657 = arith.addf %655, %656 : vector<8x128xf32>
    %658 = arith.mulf %647, %618 : vector<8x128xf32>
    %659 = arith.mulf %639, %649 : vector<8x128xf32>
    %660 = arith.addf %658, %659 : vector<8x128xf32>
    %661 = math.tanh %660 : vector<8x128xf32>
    %662 = arith.mulf %657, %661 : vector<8x128xf32>
    %663 = arith.truncf %662 : vector<8x128xf32> to vector<8x128xbf16>
    %664 = arith.index_cast %c6_i32_245 : i32 to index
    %c0_258 = arith.constant 0 : index
    %c0_259 = arith.constant 0 : index
    %665 = vector.load %arg12[%664, %c0_258, %c0_259] : memref<8x8x128xbf16, #tpu.memory_space<vmem>>, vector<1x8x128xbf16>
    %666 = vector.shape_cast %665 : vector<1x8x128xbf16> to vector<8x128xbf16>
    %667 = vector.shape_cast %663 : vector<8x128xbf16> to vector<1x8x128xbf16>
    tpu.vector_store %arg12[%664, %c0_258, %c0_259], %667 {strides = array<i32>} : memref<8x8x128xbf16, #tpu.memory_space<vmem>>, vector<1x8x128xbf16>,
    %c7_i32_260 = arith.constant 7 : i32
    %668 = arith.index_cast %c7_i32_260 : i32 to index
    %c0_261 = arith.constant 0 : index
    %c0_262 = arith.constant 0 : index
    %669 = vector.load %arg11[%668, %c0_261, %c0_262] : memref<8x8x512xf32, #tpu.memory_space<vmem>>, vector<1x8x512xf32>
    %670 = vector.shape_cast %669 : vector<1x8x512xf32> to vector<8x512xf32>
    %671 = arith.truncf %662 : vector<8x128xf32> to vector<8x128xbf16>
    %cst_263 = arith.constant dense<0.000000e+00> : vector<8x512xf32>
    %672 = tpu.matmul %671, %361, %cst_263 {dimension_numbers = #tpu.dot_dimension_numbers<[1], [0], [0], [1], [0, 0, 1, 1], [], []>} : vector<8x128xbf16>, vector<128x512xbf16>, vector<8x512xf32> -> vector<8x512xf32>
    %673 = arith.addf %670, %672 : vector<8x512xf32>
    %674 = vector.extract_strided_slice %673 {offsets = [0, 0], sizes = [8, 128], strides = [1, 1]} : vector<8x512xf32> to vector<8x128xf32>
    %cst_264 = arith.constant 5.000000e-01 : f32
    %675 = vector.broadcast %cst_264 : f32 to vector<8x128xf32>
    %676 = arith.mulf %675, %674 : vector<8x128xf32>
    %677 = math.tanh %676 : vector<8x128xf32>
    %cst_265 = arith.constant 5.000000e-01 : f32
    %678 = vector.broadcast %cst_265 : f32 to vector<8x128xf32>
    %679 = arith.mulf %678, %677 : vector<8x128xf32>
    %cst_266 = arith.constant 5.000000e-01 : f32
    %680 = vector.broadcast %cst_266 : f32 to vector<8x128xf32>
    %681 = arith.addf %679, %680 : vector<8x128xf32>
    %682 = vector.extract_strided_slice %673 {offsets = [0, 128], sizes = [8, 128], strides = [1, 1]} : vector<8x512xf32> to vector<8x128xf32>
    %cst_267 = arith.constant 5.000000e-01 : f32
    %683 = vector.broadcast %cst_267 : f32 to vector<8x128xf32>
    %684 = arith.mulf %683, %682 : vector<8x128xf32>
    %685 = math.tanh %684 : vector<8x128xf32>
    %cst_268 = arith.constant 5.000000e-01 : f32
    %686 = vector.broadcast %cst_268 : f32 to vector<8x128xf32>
    %687 = arith.mulf %686, %685 : vector<8x128xf32>
    %cst_269 = arith.constant 5.000000e-01 : f32
    %688 = vector.broadcast %cst_269 : f32 to vector<8x128xf32>
    %689 = arith.addf %687, %688 : vector<8x128xf32>
    %690 = vector.extract_strided_slice %673 {offsets = [0, 256], sizes = [8, 128], strides = [1, 1]} : vector<8x512xf32> to vector<8x128xf32>
    %691 = math.tanh %690 : vector<8x128xf32>
    %692 = vector.extract_strided_slice %673 {offsets = [0, 384], sizes = [8, 128], strides = [1, 1]} : vector<8x512xf32> to vector<8x128xf32>
    %cst_270 = arith.constant 5.000000e-01 : f32
    %693 = vector.broadcast %cst_270 : f32 to vector<8x128xf32>
    %694 = arith.mulf %693, %692 : vector<8x128xf32>
    %695 = math.tanh %694 : vector<8x128xf32>
    %cst_271 = arith.constant 5.000000e-01 : f32
    %696 = vector.broadcast %cst_271 : f32 to vector<8x128xf32>
    %697 = arith.mulf %696, %695 : vector<8x128xf32>
    %cst_272 = arith.constant 5.000000e-01 : f32
    %698 = vector.broadcast %cst_272 : f32 to vector<8x128xf32>
    %699 = arith.addf %697, %698 : vector<8x128xf32>
    %700 = arith.mulf %689, %660 : vector<8x128xf32>
    %701 = arith.mulf %681, %691 : vector<8x128xf32>
    %702 = arith.addf %700, %701 : vector<8x128xf32>
    %703 = math.tanh %702 : vector<8x128xf32>
    %704 = arith.mulf %699, %703 : vector<8x128xf32>
    %705 = arith.truncf %704 : vector<8x128xf32> to vector<8x128xbf16>
    %706 = arith.index_cast %c7_i32_260 : i32 to index
    %c0_273 = arith.constant 0 : index
    %c0_274 = arith.constant 0 : index
    %707 = vector.load %arg12[%706, %c0_273, %c0_274] : memref<8x8x128xbf16, #tpu.memory_space<vmem>>, vector<1x8x128xbf16>
    %708 = vector.shape_cast %707 : vector<1x8x128xbf16> to vector<8x128xbf16>
    %709 = vector.shape_cast %705 : vector<8x128xbf16> to vector<1x8x128xbf16>
    tpu.vector_store %arg12[%706, %c0_273, %c0_274], %709 {strides = array<i32>} : memref<8x8x128xbf16, #tpu.memory_space<vmem>>, vector<1x8x128xbf16>,
    %c8_i32_275 = arith.constant 8 : i32
    %c1_276 = arith.constant 1 : index
    %c0_277 = arith.constant 0 : index
    %c0_278 = arith.constant 0 : index
    %710 = vector.load %arg9[%c1_276, %c0_277, %c0_278] : memref<2x8x128xf32, #tpu.memory_space<vmem>>, vector<1x8x128xf32>
    %711 = vector.shape_cast %710 : vector<1x8x128xf32> to vector<8x128xf32>
    %712 = vector.shape_cast %704 : vector<8x128xf32> to vector<1x8x128xf32>
    tpu.vector_store %arg9[%c1_276, %c0_277, %c0_278], %712 {strides = array<i32>} : memref<2x8x128xf32, #tpu.memory_space<vmem>>, vector<1x8x128xf32>,
    %c1_279 = arith.constant 1 : index
    %c0_280 = arith.constant 0 : index
    %c0_281 = arith.constant 0 : index
    %713 = vector.load %arg10[%c1_279, %c0_280, %c0_281] : memref<2x8x128xf32, #tpu.memory_space<vmem>>, vector<1x8x128xf32>
    %714 = vector.shape_cast %713 : vector<1x8x128xf32> to vector<8x128xf32>
    %715 = vector.shape_cast %702 : vector<8x128xf32> to vector<1x8x128xf32>
    tpu.vector_store %arg10[%c1_279, %c0_280, %c0_281], %715 {strides = array<i32>} : memref<2x8x128xf32, #tpu.memory_space<vmem>>, vector<1x8x128xf32>,
    %c1_i32_282 = arith.constant 1 : i32
    %716 = arith.cmpi eq, %arg0, %c1_i32_282 : i32
    %717 = arith.extui %716 : i1 to i32
    %c0_i32_283 = arith.constant 0 : i32
    %718 = arith.cmpi ne, %717, %c0_i32_283 : i32
    scf.if %718 {
      %c0_284 = arith.constant 0 : index
      %c0_285 = arith.constant 0 : index
      %719 = vector.load %arg8[%c0_284, %c0_285] : memref<8x128xf32, #tpu.memory_space<vmem>>, vector<8x128xf32>
      tpu.vector_store %arg8[%c0_284, %c0_285], %704 {strides = array<i32>} : memref<8x128xf32, #tpu.memory_space<vmem>>, vector<8x128xf32>,
    } else {
    }
    return
  }
  func.func @transform_0(%arg0: i32) -> (i32, i32, i32) {
    %c0_i32 = arith.constant 0 : i32
    %c0_i32_0 = arith.constant 0 : i32
    %c0_i32_1 = arith.constant 0 : i32
    return %arg0, %c0_i32, %c0_i32_0 : i32, i32, i32
  }
  func.func @transform_1(%arg0: i32) -> (i32, i32) {
    %c0_i32 = arith.constant 0 : i32
    %c0_i32_0 = arith.constant 0 : i32
    %c0_i32_1 = arith.constant 0 : i32
    return %c0_i32, %c0_i32_0 : i32, i32
  }
  func.func @transform_2(%arg0: i32) -> (i32, i32) {
    %c0_i32 = arith.constant 0 : i32
    %c0_i32_0 = arith.constant 0 : i32
    %c0_i32_1 = arith.constant 0 : i32
    return %c0_i32, %c0_i32_0 : i32, i32
  }
  func.func @transform_3(%arg0: i32) -> (i32, i32) {
    %c0_i32 = arith.constant 0 : i32
    %c0_i32_0 = arith.constant 0 : i32
    %c0_i32_1 = arith.constant 0 : i32
    return %c0_i32, %c0_i32_0 : i32, i32
  }
  func.func @transform_4(%arg0: i32) -> (i32, i32) {
    %c0_i32 = arith.constant 0 : i32
    %c0_i32_0 = arith.constant 0 : i32
    %c0_i32_1 = arith.constant 0 : i32
    return %c0_i32, %c0_i32_0 : i32, i32
  }
  func.func @transform_5(%arg0: i32) -> (i32, i32) {
    %c0_i32 = arith.constant 0 : i32
    %c0_i32_0 = arith.constant 0 : i32
    %c0_i32_1 = arith.constant 0 : i32
    return %c0_i32, %c0_i32_0 : i32, i32
  }
  func.func @transform_6(%arg0: i32) -> (i32, i32) {
    %c0_i32 = arith.constant 0 : i32
    %c0_i32_0 = arith.constant 0 : i32
    %c0_i32_1 = arith.constant 0 : i32
    return %c0_i32, %c0_i32_0 : i32, i32
  }
  func.func @transform_7(%arg0: i32) -> (i32, i32) {
    %c0_i32 = arith.constant 0 : i32
    %c0_i32_0 = arith.constant 0 : i32
    %c0_i32_1 = arith.constant 0 : i32
    return %c0_i32, %c0_i32_0 : i32, i32
  }
}

</mosaic_0001>

<llo_original>
// kernel: tpu_custom_call.1
$region0: #{tpu_custom_call.1}
  #allocation0 [shape = 'u32[]', space=smem, size = 0x4, offset = 0x4, fixed_abs, tag = 'smem constant byte address 0x4 - core index']
  #allocation1 [shape = 'u32[144,128]{1,0:T(1,128)}', space=vmem, size = 0x12000, scoped, tag = 'internal scratch']
  #allocation2 [shape = 'f32[2,8,128]{2,1,0:T(8,128)}', space=vmem, size = 0x2000, scoped, tag = 'scratch operand']
  #allocation3 [shape = 'f32[2,8,128]{2,1,0:T(8,128)}', space=vmem, size = 0x2000, scoped, tag = 'scratch operand']
  #allocation4 [shape = 'f32[8,8,512]{2,1,0:T(8,128)}', space=vmem, size = 0x20000, scoped, tag = 'scratch operand']
  #allocation5 [shape = 'bf16[8,8,128]{2,1,0:T(8,128)(2,1)}', space=vmem, size = 0x4000, scoped, tag = 'scratch operand']
  %s0 = inlined_call_operand.hbm [shape: f32[16,8,128], index: 0, kind: input, shape index: {}]
  %s1 = inlined_call_operand.hbm [shape: bf16[128,512], index: 1, kind: input, shape index: {}]
  %s2 = inlined_call_operand.hbm [shape: bf16[128,512], index: 2, kind: input, shape index: {}]
  %s3 = inlined_call_operand.vmem [shape: f32[1,512], index: 3, kind: input, shape index: {}]
  %s4 = inlined_call_operand.hbm [shape: bf16[128,512], index: 4, kind: input, shape index: {}]
  %s5 = inlined_call_operand.hbm [shape: bf16[128,512], index: 5, kind: input, shape index: {}]
  %s6 = inlined_call_operand.vmem [shape: f32[1,512], index: 6, kind: input, shape index: {}]
  %s7 = inlined_call_operand.hbm [shape: f32[8,128], index: 7, kind: output, shape index: {}]
  %s8 = sld [smem:[#allocation0]]
  $region89: #{tpu_custom_call.1} parent=0
    _
  %s10 = ssub.s32 1, %s8
  %s11 = scalar_select 0, %s10, %s8
  $region1: #{tpu_custom_call.1} parent=0
    #allocation6 [shape = 'u8[65536]{0}', space=vmem, size = 0x10000, scoped, tag = 'input window, operand 0']
    #allocation7 [shape = 's32[2]{0}', space=sflag, size = 0x8, scoped, tag = 'scoped memory for tpu_custom_call.1']
    #allocation8 [shape = 's32[2]{0}', space=sflag, size = 0x8, scoped, tag = 'scoped memory for tpu_custom_call.1']
    #allocation9 [shape = 'u8[131072]{0}', space=vmem, size = 0x20000, scoped, tag = 'input window, operand 1, single buffered']
    #allocation10 [shape = 's32[1]{0}', space=sflag, size = 0x4, scoped, tag = 'scoped memory for tpu_custom_call.1']
    #allocation11 [shape = 'u8[131072]{0}', space=vmem, size = 0x20000, scoped, tag = 'input window, operand 2, single buffered']
    #allocation12 [shape = 'u8[131072]{0}', space=vmem, size = 0x20000, scoped, tag = 'input window, operand 4, single buffered']
    #allocation13 [shape = 's32[1]{0}', space=sflag, size = 0x4, scoped, tag = 'scoped memory for tpu_custom_call.1']
    #allocation14 [shape = 'u8[131072]{0}', space=vmem, size = 0x20000, scoped, tag = 'input window, operand 5, single buffered']
    #allocation15 [shape = 'u8[4096]{0}', space=vmem, size = 0x1000, scoped, tag = 'output window, operand 0, single buffered']
    %12 = vsyncpa [#allocation7], 0
    %s13 = scalar_lea.sflag [#allocation7], 1
    %14 = vsyncpa %s13, 0
    %15 = vsyncpa [#allocation10], 0
    %16 = vsyncpa [#allocation13], 0
    %17 = vsyncpa [#allocation8], 0
    loop: start=0, step=1, limit=4
    $region2: #{tpu_custom_call.1} parent=1 // loop_pre_header
      _
    $region3: #{tpu_custom_call.1} parent=1 // loop_header
      %s19 = sphi 0, %s23
      %p20 = scmp.ge.s32.totalorder %s19, 4
      %s29 = sphi 0, %s31
      %s32 = sphi 0, %s29
      %s33 = sphi 0, %s32
      %s49 = sphi 0, %s33
      %s53 = sphi 0, %s53
      %s55 = sphi 0, %s53
      %s56 = sphi 0, %s55
      %s70 = sphi 0, %s56
      %s74 = sphi 0, %s74
      %s76 = sphi 0, %s74
      %s77 = sphi 0, %s76
      %s91 = sphi 0, %s77
      %s95 = sphi 0, %s95
      %s97 = sphi 0, %s95
      %s98 = sphi 0, %s97
      %s112 = sphi 0, %s98
      %s116 = sphi 0, %s116
      %s118 = sphi 0, %s116
      %s119 = sphi 0, %s118
      %s133 = sphi 0, %s119
      %s137 = sphi 0, %s137
      %s139 = sphi 0, %s137
      %s140 = sphi 0, %s139
      %s154 = sphi 0, %s140
      %s158 = sphi 0, %s158
      %s160 = sphi 0, %s158
      %s161 = sphi 0, %s160
      %s175 = sphi 0, %s161
      %s179 = sphi 0, %s179
      %s181 = sphi 0, %s179
      %s182 = sphi 0, %s181
      %s196 = sphi 0, %s182
    $region4: #{tpu_custom_call.1} parent=1 // loop_header_branch
      %22 = sbr.rel (%p20) target = $region8
    $region5: #{tpu_custom_call.1} parent=1 // loop_body
      %s24 = ssub.s32 %s19, 1
      %s25 = ssub.s32 %s19, 2
      %s26 = sadd.s32 %s19, 1
      %s27 = ssub.s32 %s19, %s26
      %p28 = scmp.eq.s32.totalorder %s27, 0
      %s30 = sadd.s32 %s29, 1
      %s31 = scalar_select %p28, %s29, %s30
      %p34 = pneg %p28
      %p35 = scmp.eq.s32.totalorder %s19, 1
      %p36 = por %p34, %p35
      %p37 = scmp.ne.s32.totalorder %s29, %s32
      %p38 = scmp.eq.s32.totalorder %s19, 0
      %p39 = por %p37, %p38
      %p40 = scmp.ne.s32.totalorder %s29, %s32
      %p41 = scmp.eq.s32.totalorder %s24, 1
      %p42 = por %p40, %p41
      %p43 = scmp.ne.s32.totalorder %s32, %s33
      %p44 = scmp.eq.s32.totalorder %s24, 0
      %p45 = por %p43, %p44
      %p46 = scmp.ne.s32.totalorder %s32, %s33
      %p47 = scmp.eq.s32.totalorder %s25, 1
      %p48 = por %p46, %p47
      %p50 = scmp.ne.s32.totalorder %s33, %s49
      %p51 = scmp.eq.s32.totalorder %s25, 0
      %p52 = por %p50, %p51
      %s54 = sadd.s32 %s53, 1
      %p57 = scmp.eq.s32.totalorder %s19, 1
      %p58 = scmp.ne.s32.totalorder %s53, %s55
      %p59 = scmp.eq.s32.totalorder %s19, 0
      %p60 = por %p58, %p59
      %p61 = scmp.ne.s32.totalorder %s53, %s55
      %p62 = scmp.eq.s32.totalorder %s24, 1
      %p63 = por %p61, %p62
      %p64 = scmp.ne.s32.totalorder %s55, %s56
      %p65 = scmp.eq.s32.totalorder %s24, 0
      %p66 = por %p64, %p65
      %p67 = scmp.ne.s32.totalorder %s55, %s56
      %p68 = scmp.eq.s32.totalorder %s25, 1
      %p69 = por %p67, %p68
      %p71 = scmp.ne.s32.totalorder %s56, %s70
      %p72 = scmp.eq.s32.totalorder %s25, 0
      %p73 = por %p71, %p72
      %s75 = sadd.s32 %s74, 1
      %p78 = scmp.eq.s32.totalorder %s19, 1
      %p79 = scmp.ne.s32.totalorder %s74, %s76
      %p80 = scmp.eq.s32.totalorder %s19, 0
      %p81 = por %p79, %p80
      %p82 = scmp.ne.s32.totalorder %s74, %s76
      %p83 = scmp.eq.s32.totalorder %s24, 1
      %p84 = por %p82, %p83
      %p85 = scmp.ne.s32.totalorder %s76, %s77
      %p86 = scmp.eq.s32.totalorder %s24, 0
      %p87 = por %p85, %p86
      %p88 = scmp.ne.s32.totalorder %s76, %s77
      %p89 = scmp.eq.s32.totalorder %s25, 1
      %p90 = por %p88, %p89
      %p92 = scmp.ne.s32.totalorder %s77, %s91
      %p93 = scmp.eq.s32.totalorder %s25, 0
      %p94 = por %p92, %p93
      %s96 = sadd.s32 %s95, 1
      %p99 = scmp.eq.s32.totalorder %s19, 1
      %p100 = scmp.ne.s32.totalorder %s95, %s97
      %p101 = scmp.eq.s32.totalorder %s19, 0
      %p102 = por %p100, %p101
      %p103 = scmp.ne.s32.totalorder %s95, %s97
      %p104 = scmp.eq.s32.totalorder %s24, 1
      %p105 = por %p103, %p104
      %p106 = scmp.ne.s32.totalorder %s97, %s98
      %p107 = scmp.eq.s32.totalorder %s24, 0
      %p108 = por %p106, %p107
      %p109 = scmp.ne.s32.totalorder %s97, %s98
      %p110 = scmp.eq.s32.totalorder %s25, 1
      %p111 = por %p109, %p110
      %p113 = scmp.ne.s32.totalorder %s98, %s112
      %p114 = scmp.eq.s32.totalorder %s25, 0
      %p115 = por %p113, %p114
      %s117 = sadd.s32 %s116, 1
      %p120 = scmp.eq.s32.totalorder %s19, 1
      %p121 = scmp.ne.s32.totalorder %s116, %s118
      %p122 = scmp.eq.s32.totalorder %s19, 0
      %p123 = por %p121, %p122
      %p124 = scmp.ne.s32.totalorder %s116, %s118
      %p125 = scmp.eq.s32.totalorder %s24, 1
      %p126 = por %p124, %p125
      %p127 = scmp.ne.s32.totalorder %s118, %s119
      %p128 = scmp.eq.s32.totalorder %s24, 0
      %p129 = por %p127, %p128
      %p130 = scmp.ne.s32.totalorder %s118, %s119
      %p131 = scmp.eq.s32.totalorder %s25, 1
      %p132 = por %p130, %p131
      %p134 = scmp.ne.s32.totalorder %s119, %s133
      %p135 = scmp.eq.s32.totalorder %s25, 0
      %p136 = por %p134, %p135
      %s138 = sadd.s32 %s137, 1
      %p141 = scmp.eq.s32.totalorder %s19, 1
      %p142 = scmp.ne.s32.totalorder %s137, %s139
      %p143 = scmp.eq.s32.totalorder %s19, 0
      %p144 = por %p142, %p143
      %p145 = scmp.ne.s32.totalorder %s137, %s139
      %p146 = scmp.eq.s32.totalorder %s24, 1
      %p147 = por %p145, %p146
      %p148 = scmp.ne.s32.totalorder %s139, %s140
      %p149 = scmp.eq.s32.totalorder %s24, 0
      %p150 = por %p148, %p149
      %p151 = scmp.ne.s32.totalorder %s139, %s140
      %p152 = scmp.eq.s32.totalorder %s25, 1
      %p153 = por %p151, %p152
      %p155 = scmp.ne.s32.totalorder %s140, %s154
      %p156 = scmp.eq.s32.totalorder %s25, 0
      %p157 = por %p155, %p156
      %s159 = sadd.s32 %s158, 1
      %p162 = scmp.eq.s32.totalorder %s19, 1
      %p163 = scmp.ne.s32.totalorder %s158, %s160
      %p164 = scmp.eq.s32.totalorder %s19, 0
      %p165 = por %p163, %p164
      %p166 = scmp.ne.s32.totalorder %s158, %s160
      %p167 = scmp.eq.s32.totalorder %s24, 1
      %p168 = por %p166, %p167
      %p169 = scmp.ne.s32.totalorder %s160, %s161
      %p170 = scmp.eq.s32.totalorder %s24, 0
      %p171 = por %p169, %p170
      %p172 = scmp.ne.s32.totalorder %s160, %s161
      %p173 = scmp.eq.s32.totalorder %s25, 1
      %p174 = por %p172, %p173
      %p176 = scmp.ne.s32.totalorder %s161, %s175
      %p177 = scmp.eq.s32.totalorder %s25, 0
      %p178 = por %p176, %p177
      %s180 = sadd.s32 %s179, 1
      %p183 = scmp.eq.s32.totalorder %s19, 1
      %p184 = scmp.ne.s32.totalorder %s179, %s181
      %p185 = scmp.eq.s32.totalorder %s19, 0
      %p186 = por %p184, %p185
      %p187 = scmp.ne.s32.totalorder %s179, %s181
      %p188 = scmp.eq.s32.totalorder %s24, 1
      %p189 = por %p187, %p188
      %p190 = scmp.ne.s32.totalorder %s181, %s182
      %p191 = scmp.eq.s32.totalorder %s24, 0
      %p192 = por %p190, %p191
      %p193 = scmp.ne.s32.totalorder %s181, %s182
      %p194 = scmp.eq.s32.totalorder %s25, 1
      %p195 = por %p193, %p194
      %p197 = scmp.ne.s32.totalorder %s182, %s196
      %p198 = scmp.eq.s32.totalorder %s25, 0
      %p199 = por %p197, %p198
      %p200 = scmp.le.s32.totalorder 1, %s19
      %p201 = scmp.lt.s32.totalorder %s19, 3
      %p202 = pnand %p200, %p201
      %p203 = pneg %p202
      // Predicated region
      $region9: #{tpu_custom_call.1} parent=5 // pred_check
        _
      $region10: #{tpu_custom_call.1} parent=5 // pred_check_branch
        %205 = sbr.rel (%p202) target = $region12
      $region11: #{tpu_custom_call.1} parent=5 // pred_region
        %s206 = ssub.s32 %s19, 1
        // Predicated region
        $region13: #{tpu_custom_call.1} parent=11 // pred_check
          %p207 = pneg %p66
        $region14: #{tpu_custom_call.1} parent=11 // pred_check_branch
          %209 = sbr.rel (%p207) target = $region16
        $region15: #{tpu_custom_call.1} parent=11 // pred_region
          %s211 = ssub.s32 4096, 4096
          %212 = vsyncadd [#allocation10], %s211
          %s213 = sshll.u32 [#allocation9], 4
          %s214 = int_to_ptr.vmem [resolvable:$true] %s213
          %219 = dma.hbm_to_vmem [thread:$0]  %s1, 4096, %s214, [#allocation10], 256, 256, 16
        $region16: #{tpu_custom_call.1} parent=11 // pred_fallthru
          _
        // Predicated region
        $region17: #{tpu_custom_call.1} parent=11 // pred_check
          %p220 = pneg %p87
        $region18: #{tpu_custom_call.1} parent=11 // pred_check_branch
          %222 = sbr.rel (%p220) target = $region20
        $region19: #{tpu_custom_call.1} parent=11 // pred_region
          %s224 = ssub.s32 4096, 4096
          %225 = vsyncadd [#allocation10], %s224
          %s226 = sshll.u32 [#allocation11], 4
          %s227 = int_to_ptr.vmem [resolvable:$true] %s226
          %232 = dma.hbm_to_vmem [thread:$0]  %s2, 4096, %s227, [#allocation10], 256, 256, 16
        $region20: #{tpu_custom_call.1} parent=11 // pred_fallthru
          _
        // Predicated region
        $region21: #{tpu_custom_call.1} parent=11 // pred_check
          %p233 = pneg %p108
        $region22: #{tpu_custom_call.1} parent=11 // pred_check_branch
          %235 = sbr.rel (%p233) target = $region24
        $region23: #{tpu_custom_call.1} parent=11 // pred_region
          _
        $region24: #{tpu_custom_call.1} parent=11 // pred_fallthru
          _
        // Predicated region
        $region25: #{tpu_custom_call.1} parent=11 // pred_check
          %p236 = pneg %p129
        $region26: #{tpu_custom_call.1} parent=11 // pred_check_branch
          %238 = sbr.rel (%p236) target = $region28
        $region27: #{tpu_custom_call.1} parent=11 // pred_region
          %s240 = ssub.s32 4096, 4096
          %241 = vsyncadd [#allocation13], %s240
          %s242 = sshll.u32 [#allocation12], 4
          %s243 = int_to_ptr.vmem [resolvable:$true] %s242
          %248 = dma.hbm_to_vmem [thread:$0]  %s4, 4096, %s243, [#allocation13], 256, 256, 16
        $region28: #{tpu_custom_call.1} parent=11 // pred_fallthru
          _
        // Predicated region
        $region29: #{tpu_custom_call.1} parent=11 // pred_check
          %p249 = pneg %p150
        $region30: #{tpu_custom_call.1} parent=11 // pred_check_branch
          %251 = sbr.rel (%p249) target = $region32
        $region31: #{tpu_custom_call.1} parent=11 // pred_region
          %s253 = ssub.s32 4096, 4096
          %254 = vsyncadd [#allocation13], %s253
          %s255 = sshll.u32 [#allocation14], 4
          %s256 = int_to_ptr.vmem [resolvable:$true] %s255
          %261 = dma.hbm_to_vmem [thread:$0]  %s5, 4096, %s256, [#allocation13], 256, 256, 16
        $region32: #{tpu_custom_call.1} parent=11 // pred_fallthru
          _
        // Predicated region
        $region33: #{tpu_custom_call.1} parent=11 // pred_check
          %p262 = pneg %p171
        $region34: #{tpu_custom_call.1} parent=11 // pred_check_branch
          %264 = sbr.rel (%p262) target = $region36
        $region35: #{tpu_custom_call.1} parent=11 // pred_region
          _
        $region36: #{tpu_custom_call.1} parent=11 // pred_fallthru
          _
      $region12: #{tpu_custom_call.1} parent=5 // pred_fallthru
        _
      %p265 = scmp.lt.s32.totalorder %s19, 2
      // Predicated region
      $region37: #{tpu_custom_call.1} parent=5 // pred_check
        %p266 = pneg %p265
      $region38: #{tpu_custom_call.1} parent=5 // pred_check_branch
        %268 = sbr.rel (%p266) target = $region40
      $region39: #{tpu_custom_call.1} parent=5 // pred_region
        // Predicated region
        $region41: #{tpu_custom_call.1} parent=39 // pred_check
          %p269 = pneg %p39
        $region42: #{tpu_custom_call.1} parent=39 // pred_check_branch
          %271 = sbr.rel (%p269) target = $region44
        $region43: #{tpu_custom_call.1} parent=39 // pred_region
          %s272 = sand.u32 %s29, 1
          %s273 = scalar_lea.sflag [#allocation7], %s272
          %s274 = sand.u32 %s29, 1
          %s275 = smul.addr %s274, 64
          %s276 = scalar_lea.vmem [#allocation6], %s275
          %s277 = smul.u32 8, %s19
          %s279 = ssub.s32 1024, 1024
          %280 = vsyncadd %s273, %s279
          %s281 = smul.addr %s277, 128
          %s282 = scalar_lea.hbm %s0, %s281
          %s283 = sshll.u32 %s276, 4
          %s284 = int_to_ptr.vmem [resolvable:$true] %s283
          %289 = dma.hbm_to_vmem [thread:$0]  %s282, 1024, %s284, %s273, 128, 128, 8
        $region44: #{tpu_custom_call.1} parent=39 // pred_fallthru
          _
      $region40: #{tpu_custom_call.1} parent=5 // pred_fallthru
        _
      %p290 = scmp.le.s32.totalorder 1, %s19
      %p291 = scmp.lt.s32.totalorder %s19, 3
      %p292 = pnand %p290, %p291
      %p293 = pneg %p292
      // Predicated region
      $region45: #{tpu_custom_call.1} parent=5 // pred_check
        _
      $region46: #{tpu_custom_call.1} parent=5 // pred_check_branch
        %295 = sbr.rel (%p292) target = $region48
      $region47: #{tpu_custom_call.1} parent=5 // pred_region
        %s296 = ssub.s32 %s19, 1
        %s297 = sand.u32 %s32, 1
        %s298 = scalar_lea.sflag [#allocation7], %s297
        %s299 = sand.u32 %s32, 1
        %s300 = smul.addr %s299, 64
        %s301 = scalar_lea.vmem [#allocation6], %s300
        // Predicated region
        $region49: #{tpu_custom_call.1} parent=47 // pred_check
          %p302 = pneg %p45
        $region50: #{tpu_custom_call.1} parent=47 // pred_check_branch
          %304 = sbr.rel (%p302) target = $region52
        $region51: #{tpu_custom_call.1} parent=47 // pred_region
          %305 = dma.done %s298, 1024
        $region52: #{tpu_custom_call.1} parent=47 // pred_fallthru
          _
        // Predicated region
        $region53: #{tpu_custom_call.1} parent=47 // pred_check
          %p306 = pneg %p66
        $region54: #{tpu_custom_call.1} parent=47 // pred_check_branch
          %308 = sbr.rel (%p306) target = $region56
        $region55: #{tpu_custom_call.1} parent=47 // pred_region
          %309 = dma.done [#allocation10], 4096
        $region56: #{tpu_custom_call.1} parent=47 // pred_fallthru
          _
        // Predicated region
        $region57: #{tpu_custom_call.1} parent=47 // pred_check
          %p310 = pneg %p87
        $region58: #{tpu_custom_call.1} parent=47 // pred_check_branch
          %312 = sbr.rel (%p310) target = $region60
        $region59: #{tpu_custom_call.1} parent=47 // pred_region
          %313 = dma.done [#allocation10], 4096
        $region60: #{tpu_custom_call.1} parent=47 // pred_fallthru
          _
        // Predicated region
        $region61: #{tpu_custom_call.1} parent=47 // pred_check
          %p314 = pneg %p129
        $region62: #{tpu_custom_call.1} parent=47 // pred_check_branch
          %316 = sbr.rel (%p314) target = $region64
        $region63: #{tpu_custom_call.1} parent=47 // pred_region
          %317 = dma.done [#allocation13], 4096
        $region64: #{tpu_custom_call.1} parent=47 // pred_fallthru
          _
        // Predicated region
        $region65: #{tpu_custom_call.1} parent=47 // pred_check
          %p318 = pneg %p150
        $region66: #{tpu_custom_call.1} parent=47 // pred_check_branch
          %320 = sbr.rel (%p318) target = $region68
        $region67: #{tpu_custom_call.1} parent=47 // pred_region
          %321 = dma.done [#allocation13], 4096
        $region68: #{tpu_custom_call.1} parent=47 // pred_fallthru
          _
        %s322 = sand.u32 %s32, 1
        %s323 = scalar_lea.sflag [#allocation7], %s322
        %s324 = sand.u32 %s32, 1
        %s325 = smul.addr %s324, 64
        %s326 = scalar_lea.vmem [#allocation6], %s325
        %p327 = pneg %p45
        %p328 = pneg %p42
        %p329 = pneg %p66
        %p330 = pneg %p63
        %p331 = pneg %p87
        %p332 = pneg %p84
        %p333 = pneg %p108
        %p334 = pneg %p105
        %p335 = pneg %p129
        %p336 = pneg %p126
        %p337 = pneg %p150
        %p338 = pneg %p147
        %p339 = pneg %p171
        %p340 = pneg %p168
        %p341 = pneg %p192
        %p342 = pneg %p189
        %s343 = smul.u32 8, %s24
        %p345 = scmp.eq.s32.totalorder %s24, 0
        // Predicated region
        $region69: #{tpu_custom_call.1} parent=47 // pred_check
          %p346 = pneg %p345
        $region70: #{tpu_custom_call.1} parent=47 // pred_check_branch
          %348 = sbr.rel (%p346) target = $region72
        $region71: #{tpu_custom_call.1} parent=47 // pred_region
          %349 = vst [vmem:[#allocation2] sm:$0xff] 0.0
          %350 = vst [vmem:[#allocation2 + $0x8] sm:$0xff] 0.0
          %351 = vst [vmem:[#allocation3] sm:$0xff] 0.0
          %352 = vst [vmem:[#allocation3 + $0x8] sm:$0xff] 0.0
        $region72: #{tpu_custom_call.1} parent=47 // pred_fallthru
          _
        %v353 = vld [vmem:[#allocation9] sm:$0xff]
        %v354 = vld [vmem:[#allocation9 + $0x8] sm:$0xff]
        %v355 = vld [vmem:[#allocation9 + $0x10] sm:$0xff]
        %v356 = vld [vmem:[#allocation9 + $0x18] sm:$0xff]
        %v357 = vld [vmem:[#allocation9 + $0x20] sm:$0xff]
        %v358 = vld [vmem:[#allocation9 + $0x28] sm:$0xff]
        %v359 = vld [vmem:[#allocation9 + $0x30] sm:$0xff]
        %v360 = vld [vmem:[#allocation9 + $0x38] sm:$0xff]
        %v361 = vld [vmem:[#allocation9 + $0x40] sm:$0xff]
        %v362 = vld [vmem:[#allocation9 + $0x48] sm:$0xff]
        %v363 = vld [vmem:[#allocation9 + $0x50] sm:$0xff]
        %v364 = vld [vmem:[#allocation9 + $0x58] sm:$0xff]
        %v365 = vld [vmem:[#allocation9 + $0x60] sm:$0xff]
        %v366 = vld [vmem:[#allocation9 + $0x68] sm:$0xff]
        %v367 = vld [vmem:[#allocation9 + $0x70] sm:$0xff]
        %v368 = vld [vmem:[#allocation9 + $0x78] sm:$0xff]
        %v369 = vld [vmem:[#allocation9 + $0x80] sm:$0xff]
        %v370 = vld [vmem:[#allocation9 + $0x88] sm:$0xff]
        %v371 = vld [vmem:[#allocation9 + $0x90] sm:$0xff]
        %v372 = vld [vmem:[#allocation9 + $0x98] sm:$0xff]
        %v373 = vld [vmem:[#allocation9 + $0xa0] sm:$0xff]
        %v374 = vld [vmem:[#allocation9 + $0xa8] sm:$0xff]
        %v375 = vld [vmem:[#allocation9 + $0xb0] sm:$0xff]
        %v376 = vld [vmem:[#allocation9 + $0xb8] sm:$0xff]
        %v377 = vld [vmem:[#allocation9 + $0xc0] sm:$0xff]
        %v378 = vld [vmem:[#allocation9 + $0xc8] sm:$0xff]
        %v379 = vld [vmem:[#allocation9 + $0xd0] sm:$0xff]
        %v380 = vld [vmem:[#allocation9 + $0xd8] sm:$0xff]
        %v381 = vld [vmem:[#allocation9 + $0xe0] sm:$0xff]
        %v382 = vld [vmem:[#allocation9 + $0xe8] sm:$0xff]
        %v383 = vld [vmem:[#allocation9 + $0xf0] sm:$0xff]
        %v384 = vld [vmem:[#allocation9 + $0xf8] sm:$0xff]
        %v385 = vld [vmem:[#allocation11] sm:$0xff]
        %v386 = vld [vmem:[#allocation11 + $0x8] sm:$0xff]
        %v387 = vld [vmem:[#allocation11 + $0x10] sm:$0xff]
        %v388 = vld [vmem:[#allocation11 + $0x18] sm:$0xff]
        %v389 = vld [vmem:[#allocation11 + $0x20] sm:$0xff]
        %v390 = vld [vmem:[#allocation11 + $0x28] sm:$0xff]
        %v391 = vld [vmem:[#allocation11 + $0x30] sm:$0xff]
        %v392 = vld [vmem:[#allocation11 + $0x38] sm:$0xff]
        %v393 = vld [vmem:[#allocation11 + $0x40] sm:$0xff]
        %v394 = vld [vmem:[#allocation11 + $0x48] sm:$0xff]
        %v395 = vld [vmem:[#allocation11 + $0x50] sm:$0xff]
        %v396 = vld [vmem:[#allocation11 + $0x58] sm:$0xff]
        %v397 = vld [vmem:[#allocation11 + $0x60] sm:$0xff]
        %v398 = vld [vmem:[#allocation11 + $0x68] sm:$0xff]
        %v399 = vld [vmem:[#allocation11 + $0x70] sm:$0xff]
        %v400 = vld [vmem:[#allocation11 + $0x78] sm:$0xff]
        %v401 = vld [vmem:[#allocation11 + $0x80] sm:$0xff]
        %v402 = vld [vmem:[#allocation11 + $0x88] sm:$0xff]
        %v403 = vld [vmem:[#allocation11 + $0x90] sm:$0xff]
        %v404 = vld [vmem:[#allocation11 + $0x98] sm:$0xff]
        %v405 = vld [vmem:[#allocation11 + $0xa0] sm:$0xff]
        %v406 = vld [vmem:[#allocation11 + $0xa8] sm:$0xff]
        %v407 = vld [vmem:[#allocation11 + $0xb0] sm:$0xff]
        %v408 = vld [vmem:[#allocation11 + $0xb8] sm:$0xff]
        %v409 = vld [vmem:[#allocation11 + $0xc0] sm:$0xff]
        %v410 = vld [vmem:[#allocation11 + $0xc8] sm:$0xff]
        %v411 = vld [vmem:[#allocation11 + $0xd0] sm:$0xff]
        %v412 = vld [vmem:[#allocation11 + $0xd8] sm:$0xff]
        %v413 = vld [vmem:[#allocation11 + $0xe0] sm:$0xff]
        %v414 = vld [vmem:[#allocation11 + $0xe8] sm:$0xff]
        %v415 = vld [vmem:[#allocation11 + $0xf0] sm:$0xff]
        %v416 = vld [vmem:[#allocation11 + $0xf8] sm:$0xff]
        %v417 = vld [vmem:[%s3] sm:$0xf]
        %v418 = vld [vmem:[%s301] sm:$0xff]
        %v419 = vld [vmem:[%s301 + $0x8] sm:$0xff]
        %v420 = vld [vmem:[%s301 + $0x10] sm:$0xff]
        %v421 = vld [vmem:[%s301 + $0x18] sm:$0xff]
        %v422 = vld [vmem:[%s301 + $0x20] sm:$0xff]
        %v423 = vld [vmem:[%s301 + $0x28] sm:$0xff]
        %v424 = vld [vmem:[%s301 + $0x30] sm:$0xff]
        %v425 = vld [vmem:[%s301 + $0x38] sm:$0xff]
        %v426 = vpack.c.bf16 %v418, %v418
        %v427 = vpack.c.bf16 %v419, %v419
        %v428 = vpack.c.bf16 %v420, %v420
        %v429 = vpack.c.bf16 %v421, %v421
        %v430 = vpack.c.bf16 %v422, %v422
        %v431 = vpack.c.bf16 %v423, %v423
        %v432 = vpack.c.bf16 %v424, %v424
        %v433 = vpack.c.bf16 %v425, %v425
        %v435 = vlaneseq
        %v436 = vshrl.u32 %v435, 7
        %v437 = vsub.s32 0, %v436
        %v438 = vrot.slane %v417, %v437
        %v439 = vlaneseq
        %v440 = vshrl.u32 %v439, 7
        %v441 = vsub.s32 1, %v440
        %v442 = vrot.slane %v417, %v441
        %v443 = vlaneseq
        %v444 = vshrl.u32 %v443, 7
        %v445 = vsub.s32 2, %v444
        %v446 = vrot.slane %v417, %v445
        %v447 = vlaneseq
        %v448 = vshrl.u32 %v447, 7
        %v449 = vsub.s32 3, %v448
        %v450 = vrot.slane %v417, %v449
        %v463 = vunpack.c.l.b16 %v426
        %v464 = vunpack.c.l.b16 %v427
        %v465 = vunpack.c.l.b16 %v428
        %v466 = vunpack.c.l.b16 %v429
        %v467 = vunpack.c.l.b16 %v430
        %v468 = vunpack.c.l.b16 %v431
        %v469 = vunpack.c.l.b16 %v432
        %v470 = vunpack.c.l.b16 %v433
        %v471 = vpack.c.b16 %v464, %v463
        %v472 = vpack.c.b16 %v466, %v465
        %v473 = vpack.c.b16 %v468, %v467
        %v474 = vpack.c.b16 %v470, %v469
        %v511 = vunpack.c.l.b16 %v353
        %v512 = vunpack.c.h.b16 %v353
        %v513 = vunpack.c.l.b16 %v354
        %v514 = vunpack.c.h.b16 %v354
        %v515 = vunpack.c.l.b16 %v355
        %v516 = vunpack.c.h.b16 %v355
        %v517 = vunpack.c.l.b16 %v356
        %v518 = vunpack.c.h.b16 %v356
        %v519 = vunpack.c.l.b16 %v357
        %v520 = vunpack.c.h.b16 %v357
        %v521 = vunpack.c.l.b16 %v358
        %v522 = vunpack.c.h.b16 %v358
        %v523 = vunpack.c.l.b16 %v359
        %v524 = vunpack.c.h.b16 %v359
        %v525 = vunpack.c.l.b16 %v360
        %v526 = vunpack.c.h.b16 %v360
        %v527 = vunpack.c.l.b16 %v361
        %v528 = vunpack.c.h.b16 %v361
        %v529 = vunpack.c.l.b16 %v362
        %v530 = vunpack.c.h.b16 %v362
        %v531 = vunpack.c.l.b16 %v363
        %v532 = vunpack.c.h.b16 %v363
        %v533 = vunpack.c.l.b16 %v364
        %v534 = vunpack.c.h.b16 %v364
        %v535 = vunpack.c.l.b16 %v365
        %v536 = vunpack.c.h.b16 %v365
        %v537 = vunpack.c.l.b16 %v366
        %v538 = vunpack.c.h.b16 %v366
        %v539 = vunpack.c.l.b16 %v367
        %v540 = vunpack.c.h.b16 %v367
        %v541 = vunpack.c.l.b16 %v368
        %v542 = vunpack.c.h.b16 %v368
        %v543 = vunpack.c.l.b16 %v369
        %v544 = vunpack.c.h.b16 %v369
        %v545 = vunpack.c.l.b16 %v370
        %v546 = vunpack.c.h.b16 %v370
        %v547 = vunpack.c.l.b16 %v371
        %v548 = vunpack.c.h.b16 %v371
        %v549 = vunpack.c.l.b16 %v372
        %v550 = vunpack.c.h.b16 %v372
        %v551 = vunpack.c.l.b16 %v373
        %v552 = vunpack.c.h.b16 %v373
        %v553 = vunpack.c.l.b16 %v374
        %v554 = vunpack.c.h.b16 %v374
        %v555 = vunpack.c.l.b16 %v375
        %v556 = vunpack.c.h.b16 %v375
        %v557 = vunpack.c.l.b16 %v376
        %v558 = vunpack.c.h.b16 %v376
        %v559 = vunpack.c.l.b16 %v377
        %v560 = vunpack.c.h.b16 %v377
        %v561 = vunpack.c.l.b16 %v378
        %v562 = vunpack.c.h.b16 %v378
        %v563 = vunpack.c.l.b16 %v379
        %v564 = vunpack.c.h.b16 %v379
        %v565 = vunpack.c.l.b16 %v380
        %v566 = vunpack.c.h.b16 %v380
        %v567 = vunpack.c.l.b16 %v381
        %v568 = vunpack.c.h.b16 %v381
        %v569 = vunpack.c.l.b16 %v382
        %v570 = vunpack.c.h.b16 %v382
        %v571 = vunpack.c.l.b16 %v383
        %v572 = vunpack.c.h.b16 %v383
        %v573 = vunpack.c.l.b16 %v384
        %v574 = vunpack.c.h.b16 %v384
        %v575 = vpack.c.b16 %v515, %v511
        %v576 = vpack.c.b16 %v516, %v512
        %v577 = vpack.c.b16 %v517, %v513
        %v578 = vpack.c.b16 %v518, %v514
        %v579 = vpack.c.b16 %v523, %v519
        %v580 = vpack.c.b16 %v524, %v520
        %v581 = vpack.c.b16 %v525, %v521
        %v582 = vpack.c.b16 %v526, %v522
        %v583 = vpack.c.b16 %v531, %v527
        %v584 = vpack.c.b16 %v532, %v528
        %v585 = vpack.c.b16 %v533, %v529
        %v586 = vpack.c.b16 %v534, %v530
        %v587 = vpack.c.b16 %v539, %v535
        %v588 = vpack.c.b16 %v540, %v536
        %v589 = vpack.c.b16 %v541, %v537
        %v590 = vpack.c.b16 %v542, %v538
        %v591 = vpack.c.b16 %v547, %v543
        %v592 = vpack.c.b16 %v548, %v544
        %v593 = vpack.c.b16 %v549, %v545
        %v594 = vpack.c.b16 %v550, %v546
        %v595 = vpack.c.b16 %v555, %v551
        %v596 = vpack.c.b16 %v556, %v552
        %v597 = vpack.c.b16 %v557, %v553
        %v598 = vpack.c.b16 %v558, %v554
        %v599 = vpack.c.b16 %v563, %v559
        %v600 = vpack.c.b16 %v564, %v560
        %v601 = vpack.c.b16 %v565, %v561
        %v602 = vpack.c.b16 %v566, %v562
        %v603 = vpack.c.b16 %v571, %v567
        %v604 = vpack.c.b16 %v572, %v568
        %v605 = vpack.c.b16 %v573, %v569
        %v606 = vpack.c.b16 %v574, %v570
        %639 = vmatprep.subr.bf16.mxu0 %v604
        %640 = vmatpush1.bf16.msra.mxu0 %v603
        %641 = vmatprep.subr.bf16.mxu0 %v600
        %642 = vmatpush1.bf16.msra.mxu0 %v599
        %643 = vmatprep.subr.bf16.mxu0 %v596
        %644 = vmatpush1.bf16.msra.mxu0 %v595
        %645 = vmatprep.subr.bf16.mxu0 %v592
        %646 = vmatpush1.bf16.msra.mxu0 %v591
        %647 = vmatprep.subr.bf16.mxu0 %v588
        %648 = vmatpush1.bf16.msra.mxu0 %v587
        %649 = vmatprep.subr.bf16.mxu0 %v584
        %650 = vmatpush1.bf16.msra.mxu0 %v583
        %651 = vmatprep.subr.bf16.mxu0 %v580
        %652 = vmatpush1.bf16.msra.mxu0 %v579
        %653 = vmatprep.subr.bf16.mxu0 %v576
        %654 = vmatpush1.bf16.msra.mxu0 %v575
        %655 = vmatprep.subr.bf16.mxu0 0
        %656 = vmatpush2.bf16.msra.mxu0 0
        %657 = vmatprep.subr.bf16.mxu0 0
        %658 = vmatpush2.bf16.msra.mxu0 0
        %659 = vmatprep.subr.bf16.mxu0 0
        %660 = vmatpush2.bf16.msra.mxu0 0
        %661 = vmatprep.subr.bf16.mxu0 0
        %662 = vmatpush2.bf16.msra.mxu0 0
        %663 = vmatprep.subr.bf16.mxu0 0
        %664 = vmatpush2.bf16.msra.mxu0 0
        %665 = vmatprep.subr.bf16.mxu0 0
        %666 = vmatpush2.bf16.msra.mxu0 0
        %667 = vmatprep.subr.bf16.mxu0 0
        %668 = vmatpush2.bf16.msra.mxu0 0
        %669 = vmatprep.subr.bf16.mxu0 0
        %670 = vmatpush2.bf16.msra.mxu0 0
        %671 = vmatprep.mubr.bf16.mxu0 0
        %672 = vmatmul.mubr.bf16.gmra.mxu0 %v471
        %v673 = vpop.f32.mrf.mxu0
        %v674 = vadd.f32 %v438, %v673
        %v675 = vpop.f32.mrf.mxu0
        %v676 = vadd.f32 %v442, %v675
        %v677 = vpop.f32.mrf.mxu0
        %v678 = vadd.f32 %v438, %v677
        %v679 = vpop.f32.mrf.mxu0
        %v680 = vadd.f32 %v442, %v679
        %681 = vmatprep.mubr.bf16.mxu0 0
        %682 = vmatmul.mubr.bf16.gmra.mxu0 %v472
        %v683 = vpop.f32.mrf.mxu0
        %v684 = vadd.f32 %v438, %v683
        %v685 = vpop.f32.mrf.mxu0
        %v686 = vadd.f32 %v442, %v685
        %v687 = vpop.f32.mrf.mxu0
        %v688 = vadd.f32 %v438, %v687
        %v689 = vpop.f32.mrf.mxu0
        %v690 = vadd.f32 %v442, %v689
        %691 = vmatprep.mubr.bf16.mxu0 0
        %692 = vmatmul.mubr.bf16.gmra.mxu0 %v473
        %v693 = vpop.f32.mrf.mxu0
        %v694 = vadd.f32 %v438, %v693
        %v695 = vpop.f32.mrf.mxu0
        %v696 = vadd.f32 %v442, %v695
        %v697 = vpop.f32.mrf.mxu0
        %v698 = vadd.f32 %v438, %v697
        %v699 = vpop.f32.mrf.mxu0
        %v700 = vadd.f32 %v442, %v699
        %701 = vmatprep.mubr.bf16.mxu0 0
        %702 = vmatmul.mubr.bf16.gmra.mxu0 %v474
        %v703 = vpop.f32.mrf.mxu0
        %v704 = vadd.f32 %v438, %v703
        %v705 = vpop.f32.mrf.mxu0
        %v706 = vadd.f32 %v442, %v705
        %v707 = vpop.f32.mrf.mxu0
        %v708 = vadd.f32 %v438, %v707
        %v709 = vpop.f32.mrf.mxu0
        %v710 = vadd.f32 %v442, %v709
        %711 = vdwg.mxu0
        %712 = vmatprep.subr.bf16.mxu0 %v606
        %713 = vmatpush1.bf16.msra.mxu0 %v605
        %714 = vmatprep.subr.bf16.mxu0 %v602
        %715 = vmatpush1.bf16.msra.mxu0 %v601
        %716 = vmatprep.subr.bf16.mxu0 %v598
        %717 = vmatpush1.bf16.msra.mxu0 %v597
        %718 = vmatprep.subr.bf16.mxu0 %v594
        %719 = vmatpush1.bf16.msra.mxu0 %v593
        %720 = vmatprep.subr.bf16.mxu0 %v590
        %721 = vmatpush1.bf16.msra.mxu0 %v589
        %722 = vmatprep.subr.bf16.mxu0 %v586
        %723 = vmatpush1.bf16.msra.mxu0 %v585
        %724 = vmatprep.subr.bf16.mxu0 %v582
        %725 = vmatpush1.bf16.msra.mxu0 %v581
        %726 = vmatprep.subr.bf16.mxu0 %v578
        %727 = vmatpush1.bf16.msra.mxu0 %v577
        %728 = vmatprep.subr.bf16.mxu0 0
        %729 = vmatpush2.bf16.msra.mxu0 0
        %730 = vmatprep.subr.bf16.mxu0 0
        %731 = vmatpush2.bf16.msra.mxu0 0
        %732 = vmatprep.subr.bf16.mxu0 0
        %733 = vmatpush2.bf16.msra.mxu0 0
        %734 = vmatprep.subr.bf16.mxu0 0
        %735 = vmatpush2.bf16.msra.mxu0 0
        %736 = vmatprep.subr.bf16.mxu0 0
        %737 = vmatpush2.bf16.msra.mxu0 0
        %738 = vmatprep.subr.bf16.mxu0 0
        %739 = vmatpush2.bf16.msra.mxu0 0
        %740 = vmatprep.subr.bf16.mxu0 0
        %741 = vmatpush2.bf16.msra.mxu0 0
        %742 = vmatprep.subr.bf16.mxu0 0
        %743 = vmatpush2.bf16.msra.mxu0 0
        %744 = vmatprep.mubr.bf16.mxu0 0
        %745 = vmatmul.mubr.bf16.gmra.mxu0 %v471
        %v746 = vpop.f32.mrf.mxu0
        %v747 = vadd.f32 %v446, %v746
        %v748 = vpop.f32.mrf.mxu0
        %v749 = vadd.f32 %v450, %v748
        %v750 = vpop.f32.mrf.mxu0
        %v751 = vadd.f32 %v446, %v750
        %v752 = vpop.f32.mrf.mxu0
        %v753 = vadd.f32 %v450, %v752
        %754 = vmatprep.mubr.bf16.mxu0 0
        %755 = vmatmul.mubr.bf16.gmra.mxu0 %v472
        %v756 = vpop.f32.mrf.mxu0
        %v757 = vadd.f32 %v446, %v756
        %v758 = vpop.f32.mrf.mxu0
        %v759 = vadd.f32 %v450, %v758
        %v760 = vpop.f32.mrf.mxu0
        %v761 = vadd.f32 %v446, %v760
        %v762 = vpop.f32.mrf.mxu0
        %v763 = vadd.f32 %v450, %v762
        %764 = vmatprep.mubr.bf16.mxu0 0
        %765 = vmatmul.mubr.bf16.gmra.mxu0 %v473
        %v766 = vpop.f32.mrf.mxu0
        %v767 = vadd.f32 %v446, %v766
        %v768 = vpop.f32.mrf.mxu0
        %v769 = vadd.f32 %v450, %v768
        %v770 = vpop.f32.mrf.mxu0
        %v771 = vadd.f32 %v446, %v770
        %v772 = vpop.f32.mrf.mxu0
        %v773 = vadd.f32 %v450, %v772
        %774 = vmatprep.mubr.bf16.mxu0 0
        %775 = vmatmul.mubr.bf16.gmra.mxu0 %v474
        %v776 = vpop.f32.mrf.mxu0
        %v777 = vadd.f32 %v446, %v776
        %v778 = vpop.f32.mrf.mxu0
        %v779 = vadd.f32 %v450, %v778
        %v780 = vpop.f32.mrf.mxu0
        %v781 = vadd.f32 %v446, %v780
        %v782 = vpop.f32.mrf.mxu0
        %v783 = vadd.f32 %v450, %v782
        %784 = vdwg.mxu0
        %785 = vst [vmem:[#allocation4] sm:$0xff] %v674
        %786 = vst [vmem:[#allocation4 + $0x8] sm:$0xff] %v676
        %787 = vst [vmem:[#allocation4 + $0x10] sm:$0xff] %v747
        %788 = vst [vmem:[#allocation4 + $0x18] sm:$0xff] %v749
        %789 = vst [vmem:[#allocation4 + $0x20] sm:$0xff] %v678
        %790 = vst [vmem:[#allocation4 + $0x28] sm:$0xff] %v680
        %791 = vst [vmem:[#allocation4 + $0x30] sm:$0xff] %v751
        %792 = vst [vmem:[#allocation4 + $0x38] sm:$0xff] %v753
        %793 = vst [vmem:[#allocation4 + $0x40] sm:$0xff] %v684
        %794 = vst [vmem:[#allocation4 + $0x48] sm:$0xff] %v686
        %795 = vst [vmem:[#allocation4 + $0x50] sm:$0xff] %v757
        %796 = vst [vmem:[#allocation4 + $0x58] sm:$0xff] %v759
        %797 = vst [vmem:[#allocation4 + $0x60] sm:$0xff] %v688
        %798 = vst [vmem:[#allocation4 + $0x68] sm:$0xff] %v690
        %799 = vst [vmem:[#allocation4 + $0x70] sm:$0xff] %v761
        %800 = vst [vmem:[#allocation4 + $0x78] sm:$0xff] %v763
        %801 = vst [vmem:[#allocation4 + $0x80] sm:$0xff] %v694
        %802 = vst [vmem:[#allocation4 + $0x88] sm:$0xff] %v696
        %803 = vst [vmem:[#allocation4 + $0x90] sm:$0xff] %v767
        %804 = vst [vmem:[#allocation4 + $0x98] sm:$0xff] %v769
        %805 = vst [vmem:[#allocation4 + $0xa0] sm:$0xff] %v698
        %806 = vst [vmem:[#allocation4 + $0xa8] sm:$0xff] %v700
        %807 = vst [vmem:[#allocation4 + $0xb0] sm:$0xff] %v771
        %808 = vst [vmem:[#allocation4 + $0xb8] sm:$0xff] %v773
        %809 = vst [vmem:[#allocation4 + $0xc0] sm:$0xff] %v704
        %810 = vst [vmem:[#allocation4 + $0xc8] sm:$0xff] %v706
        %811 = vst [vmem:[#allocation4 + $0xd0] sm:$0xff] %v777
        %812 = vst [vmem:[#allocation4 + $0xd8] sm:$0xff] %v779
        %813 = vst [vmem:[#allocation4 + $0xe0] sm:$0xff] %v708
        %814 = vst [vmem:[#allocation4 + $0xe8] sm:$0xff] %v710
        %815 = vst [vmem:[#allocation4 + $0xf0] sm:$0xff] %v781
        %816 = vst [vmem:[#allocation4 + $0xf8] sm:$0xff] %v783
        %v817 = vld [vmem:[#allocation2] sm:$0xff]
        %v818 = vld [vmem:[#allocation3] sm:$0xff]
        %v819 = vld [vmem:[#allocation4] sm:$0xff]
        %v820 = vld [vmem:[#allocation4 + $0x8] sm:$0xff]
        %v821 = vld [vmem:[#allocation4 + $0x10] sm:$0xff]
        %v822 = vld [vmem:[#allocation4 + $0x18] sm:$0xff]
        %v823 = vpack.c.bf16 %v817, %v817
        %v856 = vunpack.c.l.b16 %v385
        %v857 = vunpack.c.h.b16 %v385
        %v858 = vunpack.c.l.b16 %v386
        %v859 = vunpack.c.h.b16 %v386
        %v860 = vunpack.c.l.b16 %v387
        %v861 = vunpack.c.h.b16 %v387
        %v862 = vunpack.c.l.b16 %v388
        %v863 = vunpack.c.h.b16 %v388
        %v864 = vunpack.c.l.b16 %v389
        %v865 = vunpack.c.h.b16 %v389
        %v866 = vunpack.c.l.b16 %v390
        %v867 = vunpack.c.h.b16 %v390
        %v868 = vunpack.c.l.b16 %v391
        %v869 = vunpack.c.h.b16 %v391
        %v870 = vunpack.c.l.b16 %v392
        %v871 = vunpack.c.h.b16 %v392
        %v872 = vunpack.c.l.b16 %v393
        %v873 = vunpack.c.h.b16 %v393
        %v874 = vunpack.c.l.b16 %v394
        %v875 = vunpack.c.h.b16 %v394
        %v876 = vunpack.c.l.b16 %v395
        %v877 = vunpack.c.h.b16 %v395
        %v878 = vunpack.c.l.b16 %v396
        %v879 = vunpack.c.h.b16 %v396
        %v880 = vunpack.c.l.b16 %v397
        %v881 = vunpack.c.h.b16 %v397
        %v882 = vunpack.c.l.b16 %v398
        %v883 = vunpack.c.h.b16 %v398
        %v884 = vunpack.c.l.b16 %v399
        %v885 = vunpack.c.h.b16 %v399
        %v886 = vunpack.c.l.b16 %v400
        %v887 = vunpack.c.h.b16 %v400
        %v888 = vunpack.c.l.b16 %v401
        %v889 = vunpack.c.h.b16 %v401
        %v890 = vunpack.c.l.b16 %v402
        %v891 = vunpack.c.h.b16 %v402
        %v892 = vunpack.c.l.b16 %v403
        %v893 = vunpack.c.h.b16 %v403
        %v894 = vunpack.c.l.b16 %v404
        %v895 = vunpack.c.h.b16 %v404
        %v896 = vunpack.c.l.b16 %v405
        %v897 = vunpack.c.h.b16 %v405
        %v898 = vunpack.c.l.b16 %v406
        %v899 = vunpack.c.h.b16 %v406
        %v900 = vunpack.c.l.b16 %v407
        %v901 = vunpack.c.h.b16 %v407
        %v902 = vunpack.c.l.b16 %v408
        %v903 = vunpack.c.h.b16 %v408
        %v904 = vunpack.c.l.b16 %v409
        %v905 = vunpack.c.h.b16 %v409
        %v906 = vunpack.c.l.b16 %v410
        %v907 = vunpack.c.h.b16 %v410
        %v908 = vunpack.c.l.b16 %v411
        %v909 = vunpack.c.h.b16 %v411
        %v910 = vunpack.c.l.b16 %v412
        %v911 = vunpack.c.h.b16 %v412
        %v912 = vunpack.c.l.b16 %v413
        %v913 = vunpack.c.h.b16 %v413
        %v914 = vunpack.c.l.b16 %v414
        %v915 = vunpack.c.h.b16 %v414
        %v916 = vunpack.c.l.b16 %v415
        %v917 = vunpack.c.h.b16 %v415
        %v918 = vunpack.c.l.b16 %v416
        %v919 = vunpack.c.h.b16 %v416
        %v920 = vpack.c.b16 %v860, %v856
        %v921 = vpack.c.b16 %v861, %v857
        %v922 = vpack.c.b16 %v862, %v858
        %v923 = vpack.c.b16 %v863, %v859
        %v924 = vpack.c.b16 %v868, %v864
        %v925 = vpack.c.b16 %v869, %v865
        %v926 = vpack.c.b16 %v870, %v866
        %v927 = vpack.c.b16 %v871, %v867
        %v928 = vpack.c.b16 %v876, %v872
        %v929 = vpack.c.b16 %v877, %v873
        %v930 = vpack.c.b16 %v878, %v874
        %v931 = vpack.c.b16 %v879, %v875
        %v932 = vpack.c.b16 %v884, %v880
        %v933 = vpack.c.b16 %v885, %v881
        %v934 = vpack.c.b16 %v886, %v882
        %v935 = vpack.c.b16 %v887, %v883
        %v936 = vpack.c.b16 %v892, %v888
        %v937 = vpack.c.b16 %v893, %v889
        %v938 = vpack.c.b16 %v894, %v890
        %v939 = vpack.c.b16 %v895, %v891
        %v940 = vpack.c.b16 %v900, %v896
        %v941 = vpack.c.b16 %v901, %v897
        %v942 = vpack.c.b16 %v902, %v898
        %v943 = vpack.c.b16 %v903, %v899
        %v944 = vpack.c.b16 %v908, %v904
        %v945 = vpack.c.b16 %v909, %v905
        %v946 = vpack.c.b16 %v910, %v906
        %v947 = vpack.c.b16 %v911, %v907
        %v948 = vpack.c.b16 %v916, %v912
        %v949 = vpack.c.b16 %v917, %v913
        %v950 = vpack.c.b16 %v918, %v914
        %v951 = vpack.c.b16 %v919, %v915
        %984 = vmatprep.subr.bf16.mxu0 %v949
        %985 = vmatpush1.bf16.msra.mxu0 %v948
        %986 = vmatprep.subr.bf16.mxu0 %v945
        %987 = vmatpush1.bf16.msra.mxu0 %v944
        %988 = vmatprep.subr.bf16.mxu0 %v941
        %989 = vmatpush1.bf16.msra.mxu0 %v940
        %990 = vmatprep.subr.bf16.mxu0 %v937
        %991 = vmatpush1.bf16.msra.mxu0 %v936
        %992 = vmatprep.subr.bf16.mxu0 %v933
        %993 = vmatpush1.bf16.msra.mxu0 %v932
        %994 = vmatprep.subr.bf16.mxu0 %v929
        %995 = vmatpush1.bf16.msra.mxu0 %v928
        %996 = vmatprep.subr.bf16.mxu0 %v925
        %997 = vmatpush1.bf16.msra.mxu0 %v924
        %998 = vmatprep.subr.bf16.mxu0 %v921
        %999 = vmatpush1.bf16.msra.mxu0 %v920
        %1000 = vmatprep.subr.bf16.mxu0 0
        %1001 = vmatpush2.bf16.msra.mxu0 0
        %1002 = vmatprep.subr.bf16.mxu0 0
        %1003 = vmatpush2.bf16.msra.mxu0 0
        %1004 = vmatprep.subr.bf16.mxu0 0
        %1005 = vmatpush2.bf16.msra.mxu0 0
        %1006 = vmatprep.subr.bf16.mxu0 0
        %1007 = vmatpush2.bf16.msra.mxu0 0
        %1008 = vmatprep.subr.bf16.mxu0 0
        %1009 = vmatpush2.bf16.msra.mxu0 0
        %1010 = vmatprep.subr.bf16.mxu0 0
        %1011 = vmatpush2.bf16.msra.mxu0 0
        %1012 = vmatprep.subr.bf16.mxu0 0
        %1013 = vmatpush2.bf16.msra.mxu0 0
        %1014 = vmatprep.subr.bf16.mxu0 0
        %1015 = vmatpush2.bf16.msra.mxu0 0
        %1016 = vmatprep.mubr.bf16.mxu0 0
        %1017 = vmatmul.mubr.bf16.gmra.mxu0 %v823
        %v1018 = vpop.f32.mrf.mxu0
        %v1019 = vadd.f32 0.0, %v1018
        %v1020 = vpop.f32.mrf.mxu0
        %v1021 = vadd.f32 0.0, %v1020
        %v1022 = vpop.f32.mrf.mxu0
        %v1023 = vpop.f32.mrf.mxu0
        %1024 = vdwg.mxu0
        %1025 = vmatprep.subr.bf16.mxu0 %v951
        %1026 = vmatpush1.bf16.msra.mxu0 %v950
        %1027 = vmatprep.subr.bf16.mxu0 %v947
        %1028 = vmatpush1.bf16.msra.mxu0 %v946
        %1029 = vmatprep.subr.bf16.mxu0 %v943
        %1030 = vmatpush1.bf16.msra.mxu0 %v942
        %1031 = vmatprep.subr.bf16.mxu0 %v939
        %1032 = vmatpush1.bf16.msra.mxu0 %v938
        %1033 = vmatprep.subr.bf16.mxu0 %v935
        %1034 = vmatpush1.bf16.msra.mxu0 %v934
        %1035 = vmatprep.subr.bf16.mxu0 %v931
        %1036 = vmatpush1.bf16.msra.mxu0 %v930
        %1037 = vmatprep.subr.bf16.mxu0 %v927
        %1038 = vmatpush1.bf16.msra.mxu0 %v926
        %1039 = vmatprep.subr.bf16.mxu0 %v923
        %1040 = vmatpush1.bf16.msra.mxu0 %v922
        %1041 = vmatprep.subr.bf16.mxu0 0
        %1042 = vmatpush2.bf16.msra.mxu0 0
        %1043 = vmatprep.subr.bf16.mxu0 0
        %1044 = vmatpush2.bf16.msra.mxu0 0
        %1045 = vmatprep.subr.bf16.mxu0 0
        %1046 = vmatpush2.bf16.msra.mxu0 0
        %1047 = vmatprep.subr.bf16.mxu0 0
        %1048 = vmatpush2.bf16.msra.mxu0 0
        %1049 = vmatprep.subr.bf16.mxu0 0
        %1050 = vmatpush2.bf16.msra.mxu0 0
        %1051 = vmatprep.subr.bf16.mxu0 0
        %1052 = vmatpush2.bf16.msra.mxu0 0
        %1053 = vmatprep.subr.bf16.mxu0 0
        %1054 = vmatpush2.bf16.msra.mxu0 0
        %1055 = vmatprep.subr.bf16.mxu0 0
        %1056 = vmatpush2.bf16.msra.mxu0 0
        %1057 = vmatprep.mubr.bf16.mxu0 0
        %1058 = vmatmul.mubr.bf16.gmra.mxu0 %v823
        %v1059 = vpop.f32.mrf.mxu0
        %v1060 = vadd.f32 0.0, %v1059
        %v1061 = vpop.f32.mrf.mxu0
        %v1062 = vadd.f32 0.0, %v1061
        %v1063 = vpop.f32.mrf.mxu0
        %v1064 = vpop.f32.mrf.mxu0
        %1065 = vdwg.mxu0
        %v1066 = vadd.f32 %v819, %v1019
        %v1067 = vadd.f32 %v820, %v1021
        %v1068 = vadd.f32 %v821, %v1060
        %v1069 = vadd.f32 %v822, %v1062
        %v1070 = vmul.f32 %v1066, 0.5
        %v1071 = vtanh.pop %v1070
        %v1072 = vmul.f32 %v1071, 0.5
        %v1073 = vadd.f32 %v1072, 0.5
        %v1074 = vmul.f32 %v1067, 0.5
        %v1075 = vtanh.pop %v1074
        %v1076 = vmul.f32 %v1075, 0.5
        %v1077 = vadd.f32 %v1076, 0.5
        %v1078 = vtanh.pop %v1068
        %v1079 = vmul.f32 %v1069, 0.5
        %v1080 = vtanh.pop %v1079
        %v1081 = vmul.f32 %v1080, 0.5
        %v1082 = vadd.f32 %v1081, 0.5
        %v1083 = vmul.f32 %v1077, %v818
        %v1084 = vmul.f32 %v1073, %v1078
        %v1085 = vadd.f32 %v1083, %v1084
        %v1086 = vtanh.pop %v1085
        %v1087 = vmul.f32 %v1082, %v1086
        %v1088 = vpack.c.bf16 %v1087, %v1087
        %1089 = vst [vmem:[#allocation5] sm:$0xf] %v1088
        %s1090 = scalar_lea.vmem [#allocation4], 32
        %v1091 = vld [vmem:[%s1090] sm:$0xff]
        %v1092 = vld [vmem:[%s1090 + $0x8] sm:$0xff]
        %v1093 = vld [vmem:[%s1090 + $0x10] sm:$0xff]
        %v1094 = vld [vmem:[%s1090 + $0x18] sm:$0xff]
        %1095 = vmatprep.subr.bf16.mxu0 %v949
        %1096 = vmatpush1.bf16.msra.mxu0 %v948
        %1097 = vmatprep.subr.bf16.mxu0 %v945
        %1098 = vmatpush1.bf16.msra.mxu0 %v944
        %1099 = vmatprep.subr.bf16.mxu0 %v941
        %1100 = vmatpush1.bf16.msra.mxu0 %v940
        %1101 = vmatprep.subr.bf16.mxu0 %v937
        %1102 = vmatpush1.bf16.msra.mxu0 %v936
        %1103 = vmatprep.subr.bf16.mxu0 %v933
        %1104 = vmatpush1.bf16.msra.mxu0 %v932
        %1105 = vmatprep.subr.bf16.mxu0 %v929
        %1106 = vmatpush1.bf16.msra.mxu0 %v928
        %1107 = vmatprep.subr.bf16.mxu0 %v925
        %1108 = vmatpush1.bf16.msra.mxu0 %v924
        %1109 = vmatprep.subr.bf16.mxu0 %v921
        %1110 = vmatpush1.bf16.msra.mxu0 %v920
        %1111 = vmatprep.subr.bf16.mxu0 0
        %1112 = vmatpush2.bf16.msra.mxu0 0
        %1113 = vmatprep.subr.bf16.mxu0 0
        %1114 = vmatpush2.bf16.msra.mxu0 0
        %1115 = vmatprep.subr.bf16.mxu0 0
        %1116 = vmatpush2.bf16.msra.mxu0 0
        %1117 = vmatprep.subr.bf16.mxu0 0
        %1118 = vmatpush2.bf16.msra.mxu0 0
        %1119 = vmatprep.subr.bf16.mxu0 0
        %1120 = vmatpush2.bf16.msra.mxu0 0
        %1121 = vmatprep.subr.bf16.mxu0 0
        %1122 = vmatpush2.bf16.msra.mxu0 0
        %1123 = vmatprep.subr.bf16.mxu0 0
        %1124 = vmatpush2.bf16.msra.mxu0 0
        %1125 = vmatprep.subr.bf16.mxu0 0
        %1126 = vmatpush2.bf16.msra.mxu0 0
        %1127 = vmatprep.mubr.bf16.mxu0 0
        %1128 = vmatmul.mubr.bf16.gmra.mxu0 %v1088
        %v1129 = vpop.f32.mrf.mxu0
        %v1130 = vadd.f32 0.0, %v1129
        %v1131 = vpop.f32.mrf.mxu0
        %v1132 = vadd.f32 0.0, %v1131
        %v1133 = vpop.f32.mrf.mxu0
        %v1134 = vpop.f32.mrf.mxu0
        %1135 = vdwg.mxu0
        %1136 = vmatprep.subr.bf16.mxu0 %v951
        %1137 = vmatpush1.bf16.msra.mxu0 %v950
        %1138 = vmatprep.subr.bf16.mxu0 %v947
        %1139 = vmatpush1.bf16.msra.mxu0 %v946
        %1140 = vmatprep.subr.bf16.mxu0 %v943
        %1141 = vmatpush1.bf16.msra.mxu0 %v942
        %1142 = vmatprep.subr.bf16.mxu0 %v939
        %1143 = vmatpush1.bf16.msra.mxu0 %v938
        %1144 = vmatprep.subr.bf16.mxu0 %v935
        %1145 = vmatpush1.bf16.msra.mxu0 %v934
        %1146 = vmatprep.subr.bf16.mxu0 %v931
        %1147 = vmatpush1.bf16.msra.mxu0 %v930
        %1148 = vmatprep.subr.bf16.mxu0 %v927
        %1149 = vmatpush1.bf16.msra.mxu0 %v926
        %1150 = vmatprep.subr.bf16.mxu0 %v923
        %1151 = vmatpush1.bf16.msra.mxu0 %v922
        %1152 = vmatprep.subr.bf16.mxu0 0
        %1153 = vmatpush2.bf16.msra.mxu0 0
        %1154 = vmatprep.subr.bf16.mxu0 0
        %1155 = vmatpush2.bf16.msra.mxu0 0
        %1156 = vmatprep.subr.bf16.mxu0 0
        %1157 = vmatpush2.bf16.msra.mxu0 0
        %1158 = vmatprep.subr.bf16.mxu0 0
        %1159 = vmatpush2.bf16.msra.mxu0 0
        %1160 = vmatprep.subr.bf16.mxu0 0
        %1161 = vmatpush2.bf16.msra.mxu0 0
        %1162 = vmatprep.subr.bf16.mxu0 0
        %1163 = vmatpush2.bf16.msra.mxu0 0
        %1164 = vmatprep.subr.bf16.mxu0 0
        %1165 = vmatpush2.bf16.msra.mxu0 0
        %1166 = vmatprep.subr.bf16.mxu0 0
        %1167 = vmatpush2.bf16.msra.mxu0 0
        %1168 = vmatprep.mubr.bf16.mxu0 0
        %1169 = vmatmul.mubr.bf16.gmra.mxu0 %v1088
        %v1170 = vpop.f32.mrf.mxu0
        %v1171 = vadd.f32 0.0, %v1170
        %v1172 = vpop.f32.mrf.mxu0
        %v1173 = vadd.f32 0.0, %v1172
        %v1174 = vpop.f32.mrf.mxu0
        %v1175 = vpop.f32.mrf.mxu0
        %1176 = vdwg.mxu0
        %v1177 = vadd.f32 %v1091, %v1130
        %v1178 = vadd.f32 %v1092, %v1132
        %v1179 = vadd.f32 %v1093, %v1171
        %v1180 = vadd.f32 %v1094, %v1173
        %v1181 = vmul.f32 %v1177, 0.5
        %v1182 = vtanh.pop %v1181
        %v1183 = vmul.f32 %v1182, 0.5
        %v1184 = vadd.f32 %v1183, 0.5
        %v1185 = vmul.f32 %v1178, 0.5
        %v1186 = vtanh.pop %v1185
        %v1187 = vmul.f32 %v1186, 0.5
        %v1188 = vadd.f32 %v1187, 0.5
        %v1189 = vtanh.pop %v1179
        %v1190 = vmul.f32 %v1180, 0.5
        %v1191 = vtanh.pop %v1190
        %v1192 = vmul.f32 %v1191, 0.5
        %v1193 = vadd.f32 %v1192, 0.5
        %v1194 = vmul.f32 %v1188, %v1085
        %v1195 = vmul.f32 %v1184, %v1189
        %v1196 = vadd.f32 %v1194, %v1195
        %v1197 = vtanh.pop %v1196
        %v1198 = vmul.f32 %v1193, %v1197
        %v1199 = vpack.c.bf16 %v1198, %v1198
        %s1200 = scalar_lea.vmem [#allocation5], 4
        %1201 = vst [vmem:[%s1200] sm:$0xf] %v1199
        %s1202 = scalar_lea.vmem [#allocation4], 64
        %v1203 = vld [vmem:[%s1202] sm:$0xff]
        %v1204 = vld [vmem:[%s1202 + $0x8] sm:$0xff]
        %v1205 = vld [vmem:[%s1202 + $0x10] sm:$0xff]
        %v1206 = vld [vmem:[%s1202 + $0x18] sm:$0xff]
        %1207 = vmatprep.subr.bf16.mxu0 %v949
        %1208 = vmatpush1.bf16.msra.mxu0 %v948
        %1209 = vmatprep.subr.bf16.mxu0 %v945
        %1210 = vmatpush1.bf16.msra.mxu0 %v944
        %1211 = vmatprep.subr.bf16.mxu0 %v941
        %1212 = vmatpush1.bf16.msra.mxu0 %v940
        %1213 = vmatprep.subr.bf16.mxu0 %v937
        %1214 = vmatpush1.bf16.msra.mxu0 %v936
        %1215 = vmatprep.subr.bf16.mxu0 %v933
        %1216 = vmatpush1.bf16.msra.mxu0 %v932
        %1217 = vmatprep.subr.bf16.mxu0 %v929
        %1218 = vmatpush1.bf16.msra.mxu0 %v928
        %1219 = vmatprep.subr.bf16.mxu0 %v925
        %1220 = vmatpush1.bf16.msra.mxu0 %v924
        %1221 = vmatprep.subr.bf16.mxu0 %v921
        %1222 = vmatpush1.bf16.msra.mxu0 %v920
        %1223 = vmatprep.subr.bf16.mxu0 0
        %1224 = vmatpush2.bf16.msra.mxu0 0
        %1225 = vmatprep.subr.bf16.mxu0 0
        %1226 = vmatpush2.bf16.msra.mxu0 0
        %1227 = vmatprep.subr.bf16.mxu0 0
        %1228 = vmatpush2.bf16.msra.mxu0 0
        %1229 = vmatprep.subr.bf16.mxu0 0
        %1230 = vmatpush2.bf16.msra.mxu0 0
        %1231 = vmatprep.subr.bf16.mxu0 0
        %1232 = vmatpush2.bf16.msra.mxu0 0
        %1233 = vmatprep.subr.bf16.mxu0 0
        %1234 = vmatpush2.bf16.msra.mxu0 0
        %1235 = vmatprep.subr.bf16.mxu0 0
        %1236 = vmatpush2.bf16.msra.mxu0 0
        %1237 = vmatprep.subr.bf16.mxu0 0
        %1238 = vmatpush2.bf16.msra.mxu0 0
        %1239 = vmatprep.mubr.bf16.mxu0 0
        %1240 = vmatmul.mubr.bf16.gmra.mxu0 %v1199
        %v1241 = vpop.f32.mrf.mxu0
        %v1242 = vadd.f32 0.0, %v1241
        %v1243 = vpop.f32.mrf.mxu0
        %v1244 = vadd.f32 0.0, %v1243
        %v1245 = vpop.f32.mrf.mxu0
        %v1246 = vpop.f32.mrf.mxu0
        %1247 = vdwg.mxu0
        %1248 = vmatprep.subr.bf16.mxu0 %v951
        %1249 = vmatpush1.bf16.msra.mxu0 %v950
        %1250 = vmatprep.subr.bf16.mxu0 %v947
        %1251 = vmatpush1.bf16.msra.mxu0 %v946
        %1252 = vmatprep.subr.bf16.mxu0 %v943
        %1253 = vmatpush1.bf16.msra.mxu0 %v942
        %1254 = vmatprep.subr.bf16.mxu0 %v939
        %1255 = vmatpush1.bf16.msra.mxu0 %v938
        %1256 = vmatprep.subr.bf16.mxu0 %v935
        %1257 = vmatpush1.bf16.msra.mxu0 %v934
        %1258 = vmatprep.subr.bf16.mxu0 %v931
        %1259 = vmatpush1.bf16.msra.mxu0 %v930
        %1260 = vmatprep.subr.bf16.mxu0 %v927
        %1261 = vmatpush1.bf16.msra.mxu0 %v926
        %1262 = vmatprep.subr.bf16.mxu0 %v923
        %1263 = vmatpush1.bf16.msra.mxu0 %v922
        %1264 = vmatprep.subr.bf16.mxu0 0
        %1265 = vmatpush2.bf16.msra.mxu0 0
        %1266 = vmatprep.subr.bf16.mxu0 0
        %1267 = vmatpush2.bf16.msra.mxu0 0
        %1268 = vmatprep.subr.bf16.mxu0 0
        %1269 = vmatpush2.bf16.msra.mxu0 0
        %1270 = vmatprep.subr.bf16.mxu0 0
        %1271 = vmatpush2.bf16.msra.mxu0 0
        %1272 = vmatprep.subr.bf16.mxu0 0
        %1273 = vmatpush2.bf16.msra.mxu0 0
        %1274 = vmatprep.subr.bf16.mxu0 0
        %1275 = vmatpush2.bf16.msra.mxu0 0
        %1276 = vmatprep.subr.bf16.mxu0 0
        %1277 = vmatpush2.bf16.msra.mxu0 0
        %1278 = vmatprep.subr.bf16.mxu0 0
        %1279 = vmatpush2.bf16.msra.mxu0 0
        %1280 = vmatprep.mubr.bf16.mxu0 0
        %1281 = vmatmul.mubr.bf16.gmra.mxu0 %v1199
        %v1282 = vpop.f32.mrf.mxu0
        %v1283 = vadd.f32 0.0, %v1282
        %v1284 = vpop.f32.mrf.mxu0
        %v1285 = vadd.f32 0.0, %v1284
        %v1286 = vpop.f32.mrf.mxu0
        %v1287 = vpop.f32.mrf.mxu0
        %1288 = vdwg.mxu0
        %v1289 = vadd.f32 %v1203, %v1242
        %v1290 = vadd.f32 %v1204, %v1244
        %v1291 = vadd.f32 %v1205, %v1283
        %v1292 = vadd.f32 %v1206, %v1285
        %v1293 = vmul.f32 %v1289, 0.5
        %v1294 = vtanh.pop %v1293
        %v1295 = vmul.f32 %v1294, 0.5
        %v1296 = vadd.f32 %v1295, 0.5
        %v1297 = vmul.f32 %v1290, 0.5
        %v1298 = vtanh.pop %v1297
        %v1299 = vmul.f32 %v1298, 0.5
        %v1300 = vadd.f32 %v1299, 0.5
        %v1301 = vtanh.pop %v1291
        %v1302 = vmul.f32 %v1292, 0.5
        %v1303 = vtanh.pop %v1302
        %v1304 = vmul.f32 %v1303, 0.5
        %v1305 = vadd.f32 %v1304, 0.5
        %v1306 = vmul.f32 %v1300, %v1196
        %v1307 = vmul.f32 %v1296, %v1301
        %v1308 = vadd.f32 %v1306, %v1307
        %v1309 = vtanh.pop %v1308
        %v1310 = vmul.f32 %v1305, %v1309
        %v1311 = vpack.c.bf16 %v1310, %v1310
        %s1312 = scalar_lea.vmem [#allocation5], 8
        %1313 = vst [vmem:[%s1312] sm:$0xf] %v1311
        %s1314 = scalar_lea.vmem [#allocation4], 96
        %v1315 = vld [vmem:[%s1314] sm:$0xff]
        %v1316 = vld [vmem:[%s1314 + $0x8] sm:$0xff]
        %v1317 = vld [vmem:[%s1314 + $0x10] sm:$0xff]
        %v1318 = vld [vmem:[%s1314 + $0x18] sm:$0xff]
        %1319 = vmatprep.subr.bf16.mxu0 %v949
        %1320 = vmatpush1.bf16.msra.mxu0 %v948
        %1321 = vmatprep.subr.bf16.mxu0 %v945
        %1322 = vmatpush1.bf16.msra.mxu0 %v944
        %1323 = vmatprep.subr.bf16.mxu0 %v941
        %1324 = vmatpush1.bf16.msra.mxu0 %v940
        %1325 = vmatprep.subr.bf16.mxu0 %v937
        %1326 = vmatpush1.bf16.msra.mxu0 %v936
        %1327 = vmatprep.subr.bf16.mxu0 %v933
        %1328 = vmatpush1.bf16.msra.mxu0 %v932
        %1329 = vmatprep.subr.bf16.mxu0 %v929
        %1330 = vmatpush1.bf16.msra.mxu0 %v928
        %1331 = vmatprep.subr.bf16.mxu0 %v925
        %1332 = vmatpush1.bf16.msra.mxu0 %v924
        %1333 = vmatprep.subr.bf16.mxu0 %v921
        %1334 = vmatpush1.bf16.msra.mxu0 %v920
        %1335 = vmatprep.subr.bf16.mxu0 0
        %1336 = vmatpush2.bf16.msra.mxu0 0
        %1337 = vmatprep.subr.bf16.mxu0 0
        %1338 = vmatpush2.bf16.msra.mxu0 0
        %1339 = vmatprep.subr.bf16.mxu0 0
        %1340 = vmatpush2.bf16.msra.mxu0 0
        %1341 = vmatprep.subr.bf16.mxu0 0
        %1342 = vmatpush2.bf16.msra.mxu0 0
        %1343 = vmatprep.subr.bf16.mxu0 0
        %1344 = vmatpush2.bf16.msra.mxu0 0
        %1345 = vmatprep.subr.bf16.mxu0 0
        %1346 = vmatpush2.bf16.msra.mxu0 0
        %1347 = vmatprep.subr.bf16.mxu0 0
        %1348 = vmatpush2.bf16.msra.mxu0 0
        %1349 = vmatprep.subr.bf16.mxu0 0
        %1350 = vmatpush2.bf16.msra.mxu0 0
        %1351 = vmatprep.mubr.bf16.mxu0 0
        %1352 = vmatmul.mubr.bf16.gmra.mxu0 %v1311
        %v1353 = vpop.f32.mrf.mxu0
        %v1354 = vadd.f32 0.0, %v1353
        %v1355 = vpop.f32.mrf.mxu0
        %v1356 = vadd.f32 0.0, %v1355
        %v1357 = vpop.f32.mrf.mxu0
        %v1358 = vpop.f32.mrf.mxu0
        %1359 = vdwg.mxu0
        %1360 = vmatprep.subr.bf16.mxu0 %v951
        %1361 = vmatpush1.bf16.msra.mxu0 %v950
        %1362 = vmatprep.subr.bf16.mxu0 %v947
        %1363 = vmatpush1.bf16.msra.mxu0 %v946
        %1364 = vmatprep.subr.bf16.mxu0 %v943
        %1365 = vmatpush1.bf16.msra.mxu0 %v942
        %1366 = vmatprep.subr.bf16.mxu0 %v939
        %1367 = vmatpush1.bf16.msra.mxu0 %v938
        %1368 = vmatprep.subr.bf16.mxu0 %v935
        %1369 = vmatpush1.bf16.msra.mxu0 %v934
        %1370 = vmatprep.subr.bf16.mxu0 %v931
        %1371 = vmatpush1.bf16.msra.mxu0 %v930
        %1372 = vmatprep.subr.bf16.mxu0 %v927
        %1373 = vmatpush1.bf16.msra.mxu0 %v926
        %1374 = vmatprep.subr.bf16.mxu0 %v923
        %1375 = vmatpush1.bf16.msra.mxu0 %v922
        %1376 = vmatprep.subr.bf16.mxu0 0
        %1377 = vmatpush2.bf16.msra.mxu0 0
        %1378 = vmatprep.subr.bf16.mxu0 0
        %1379 = vmatpush2.bf16.msra.mxu0 0
        %1380 = vmatprep.subr.bf16.mxu0 0
        %1381 = vmatpush2.bf16.msra.mxu0 0
        %1382 = vmatprep.subr.bf16.mxu0 0
        %1383 = vmatpush2.bf16.msra.mxu0 0
        %1384 = vmatprep.subr.bf16.mxu0 0
        %1385 = vmatpush2.bf16.msra.mxu0 0
        %1386 = vmatprep.subr.bf16.mxu0 0
        %1387 = vmatpush2.bf16.msra.mxu0 0
        %1388 = vmatprep.subr.bf16.mxu0 0
        %1389 = vmatpush2.bf16.msra.mxu0 0
        %1390 = vmatprep.subr.bf16.mxu0 0
        %1391 = vmatpush2.bf16.msra.mxu0 0
        %1392 = vmatprep.mubr.bf16.mxu0 0
        %1393 = vmatmul.mubr.bf16.gmra.mxu0 %v1311
        %v1394 = vpop.f32.mrf.mxu0
        %v1395 = vadd.f32 0.0, %v1394
        %v1396 = vpop.f32.mrf.mxu0
        %v1397 = vadd.f32 0.0, %v1396
        %v1398 = vpop.f32.mrf.mxu0
        %v1399 = vpop.f32.mrf.mxu0
        %1400 = vdwg.mxu0
        %v1401 = vadd.f32 %v1315, %v1354
        %v1402 = vadd.f32 %v1316, %v1356
        %v1403 = vadd.f32 %v1317, %v1395
        %v1404 = vadd.f32 %v1318, %v1397
        %v1405 = vmul.f32 %v1401, 0.5
        %v1406 = vtanh.pop %v1405
        %v1407 = vmul.f32 %v1406, 0.5
        %v1408 = vadd.f32 %v1407, 0.5
        %v1409 = vmul.f32 %v1402, 0.5
        %v1410 = vtanh.pop %v1409
        %v1411 = vmul.f32 %v1410, 0.5
        %v1412 = vadd.f32 %v1411, 0.5
        %v1413 = vtanh.pop %v1403
        %v1414 = vmul.f32 %v1404, 0.5
        %v1415 = vtanh.pop %v1414
        %v1416 = vmul.f32 %v1415, 0.5
        %v1417 = vadd.f32 %v1416, 0.5
        %v1418 = vmul.f32 %v1412, %v1308
        %v1419 = vmul.f32 %v1408, %v1413
        %v1420 = vadd.f32 %v1418, %v1419
        %v1421 = vtanh.pop %v1420
        %v1422 = vmul.f32 %v1417, %v1421
        %v1423 = vpack.c.bf16 %v1422, %v1422
        %s1424 = scalar_lea.vmem [#allocation5], 12
        %1425 = vst [vmem:[%s1424] sm:$0xf] %v1423
        %s1426 = scalar_lea.vmem [#allocation4], 128
        %v1427 = vld [vmem:[%s1426] sm:$0xff]
        %v1428 = vld [vmem:[%s1426 + $0x8] sm:$0xff]
        %v1429 = vld [vmem:[%s1426 + $0x10] sm:$0xff]
        %v1430 = vld [vmem:[%s1426 + $0x18] sm:$0xff]
        %1431 = vmatprep.subr.bf16.mxu0 %v949
        %1432 = vmatpush1.bf16.msra.mxu0 %v948
        %1433 = vmatprep.subr.bf16.mxu0 %v945
        %1434 = vmatpush1.bf16.msra.mxu0 %v944
        %1435 = vmatprep.subr.bf16.mxu0 %v941
        %1436 = vmatpush1.bf16.msra.mxu0 %v940
        %1437 = vmatprep.subr.bf16.mxu0 %v937
        %1438 = vmatpush1.bf16.msra.mxu0 %v936
        %1439 = vmatprep.subr.bf16.mxu0 %v933
        %1440 = vmatpush1.bf16.msra.mxu0 %v932
        %1441 = vmatprep.subr.bf16.mxu0 %v929
        %1442 = vmatpush1.bf16.msra.mxu0 %v928
        %1443 = vmatprep.subr.bf16.mxu0 %v925
        %1444 = vmatpush1.bf16.msra.mxu0 %v924
        %1445 = vmatprep.subr.bf16.mxu0 %v921
        %1446 = vmatpush1.bf16.msra.mxu0 %v920
        %1447 = vmatprep.subr.bf16.mxu0 0
        %1448 = vmatpush2.bf16.msra.mxu0 0
        %1449 = vmatprep.subr.bf16.mxu0 0
        %1450 = vmatpush2.bf16.msra.mxu0 0
        %1451 = vmatprep.subr.bf16.mxu0 0
        %1452 = vmatpush2.bf16.msra.mxu0 0
        %1453 = vmatprep.subr.bf16.mxu0 0
        %1454 = vmatpush2.bf16.msra.mxu0 0
        %1455 = vmatprep.subr.bf16.mxu0 0
        %1456 = vmatpush2.bf16.msra.mxu0 0
        %1457 = vmatprep.subr.bf16.mxu0 0
        %1458 = vmatpush2.bf16.msra.mxu0 0
        %1459 = vmatprep.subr.bf16.mxu0 0
        %1460 = vmatpush2.bf16.msra.mxu0 0
        %1461 = vmatprep.subr.bf16.mxu0 0
        %1462 = vmatpush2.bf16.msra.mxu0 0
        %1463 = vmatprep.mubr.bf16.mxu0 0
        %1464 = vmatmul.mubr.bf16.gmra.mxu0 %v1423
        %v1465 = vpop.f32.mrf.mxu0
        %v1466 = vadd.f32 0.0, %v1465
        %v1467 = vpop.f32.mrf.mxu0
        %v1468 = vadd.f32 0.0, %v1467
        %v1469 = vpop.f32.mrf.mxu0
        %v1470 = vpop.f32.mrf.mxu0
        %1471 = vdwg.mxu0
        %1472 = vmatprep.subr.bf16.mxu0 %v951
        %1473 = vmatpush1.bf16.msra.mxu0 %v950
        %1474 = vmatprep.subr.bf16.mxu0 %v947
        %1475 = vmatpush1.bf16.msra.mxu0 %v946
        %1476 = vmatprep.subr.bf16.mxu0 %v943
        %1477 = vmatpush1.bf16.msra.mxu0 %v942
        %1478 = vmatprep.subr.bf16.mxu0 %v939
        %1479 = vmatpush1.bf16.msra.mxu0 %v938
        %1480 = vmatprep.subr.bf16.mxu0 %v935
        %1481 = vmatpush1.bf16.msra.mxu0 %v934
        %1482 = vmatprep.subr.bf16.mxu0 %v931
        %1483 = vmatpush1.bf16.msra.mxu0 %v930
        %1484 = vmatprep.subr.bf16.mxu0 %v927
        %1485 = vmatpush1.bf16.msra.mxu0 %v926
        %1486 = vmatprep.subr.bf16.mxu0 %v923
        %1487 = vmatpush1.bf16.msra.mxu0 %v922
        %1488 = vmatprep.subr.bf16.mxu0 0
        %1489 = vmatpush2.bf16.msra.mxu0 0
        %1490 = vmatprep.subr.bf16.mxu0 0
        %1491 = vmatpush2.bf16.msra.mxu0 0
        %1492 = vmatprep.subr.bf16.mxu0 0
        %1493 = vmatpush2.bf16.msra.mxu0 0
        %1494 = vmatprep.subr.bf16.mxu0 0
        %1495 = vmatpush2.bf16.msra.mxu0 0
        %1496 = vmatprep.subr.bf16.mxu0 0
        %1497 = vmatpush2.bf16.msra.mxu0 0
        %1498 = vmatprep.subr.bf16.mxu0 0
        %1499 = vmatpush2.bf16.msra.mxu0 0
        %1500 = vmatprep.subr.bf16.mxu0 0
        %1501 = vmatpush2.bf16.msra.mxu0 0
        %1502 = vmatprep.subr.bf16.mxu0 0
        %1503 = vmatpush2.bf16.msra.mxu0 0
        %1504 = vmatprep.mubr.bf16.mxu0 0
        %1505 = vmatmul.mubr.bf16.gmra.mxu0 %v1423
        %v1506 = vpop.f32.mrf.mxu0
        %v1507 = vadd.f32 0.0, %v1506
        %v1508 = vpop.f32.mrf.mxu0
        %v1509 = vadd.f32 0.0, %v1508
        %v1510 = vpop.f32.mrf.mxu0
        %v1511 = vpop.f32.mrf.mxu0
        %1512 = vdwg.mxu0
        %v1513 = vadd.f32 %v1427, %v1466
        %v1514 = vadd.f32 %v1428, %v1468
        %v1515 = vadd.f32 %v1429, %v1507
        %v1516 = vadd.f32 %v1430, %v1509
        %v1517 = vmul.f32 %v1513, 0.5
        %v1518 = vtanh.pop %v1517
        %v1519 = vmul.f32 %v1518, 0.5
        %v1520 = vadd.f32 %v1519, 0.5
        %v1521 = vmul.f32 %v1514, 0.5
        %v1522 = vtanh.pop %v1521
        %v1523 = vmul.f32 %v1522, 0.5
        %v1524 = vadd.f32 %v1523, 0.5
        %v1525 = vtanh.pop %v1515
        %v1526 = vmul.f32 %v1516, 0.5
        %v1527 = vtanh.pop %v1526
        %v1528 = vmul.f32 %v1527, 0.5
        %v1529 = vadd.f32 %v1528, 0.5
        %v1530 = vmul.f32 %v1524, %v1420
        %v1531 = vmul.f32 %v1520, %v1525
        %v1532 = vadd.f32 %v1530, %v1531
        %v1533 = vtanh.pop %v1532
        %v1534 = vmul.f32 %v1529, %v1533
        %v1535 = vpack.c.bf16 %v1534, %v1534
        %s1536 = scalar_lea.vmem [#allocation5], 16
        %1537 = vst [vmem:[%s1536] sm:$0xf] %v1535
        %s1538 = scalar_lea.vmem [#allocation4], 160
        %v1539 = vld [vmem:[%s1538] sm:$0xff]
        %v1540 = vld [vmem:[%s1538 + $0x8] sm:$0xff]
        %v1541 = vld [vmem:[%s1538 + $0x10] sm:$0xff]
        %v1542 = vld [vmem:[%s1538 + $0x18] sm:$0xff]
        %1543 = vmatprep.subr.bf16.mxu0 %v949
        %1544 = vmatpush1.bf16.msra.mxu0 %v948
        %1545 = vmatprep.subr.bf16.mxu0 %v945
        %1546 = vmatpush1.bf16.msra.mxu0 %v944
        %1547 = vmatprep.subr.bf16.mxu0 %v941
        %1548 = vmatpush1.bf16.msra.mxu0 %v940
        %1549 = vmatprep.subr.bf16.mxu0 %v937
        %1550 = vmatpush1.bf16.msra.mxu0 %v936
        %1551 = vmatprep.subr.bf16.mxu0 %v933
        %1552 = vmatpush1.bf16.msra.mxu0 %v932
        %1553 = vmatprep.subr.bf16.mxu0 %v929
        %1554 = vmatpush1.bf16.msra.mxu0 %v928
        %1555 = vmatprep.subr.bf16.mxu0 %v925
        %1556 = vmatpush1.bf16.msra.mxu0 %v924
        %1557 = vmatprep.subr.bf16.mxu0 %v921
        %1558 = vmatpush1.bf16.msra.mxu0 %v920
        %1559 = vmatprep.subr.bf16.mxu0 0
        %1560 = vmatpush2.bf16.msra.mxu0 0
        %1561 = vmatprep.subr.bf16.mxu0 0
        %1562 = vmatpush2.bf16.msra.mxu0 0
        %1563 = vmatprep.subr.bf16.mxu0 0
        %1564 = vmatpush2.bf16.msra.mxu0 0
        %1565 = vmatprep.subr.bf16.mxu0 0
        %1566 = vmatpush2.bf16.msra.mxu0 0
        %1567 = vmatprep.subr.bf16.mxu0 0
        %1568 = vmatpush2.bf16.msra.mxu0 0
        %1569 = vmatprep.subr.bf16.mxu0 0
        %1570 = vmatpush2.bf16.msra.mxu0 0
        %1571 = vmatprep.subr.bf16.mxu0 0
        %1572 = vmatpush2.bf16.msra.mxu0 0
        %1573 = vmatprep.subr.bf16.mxu0 0
        %1574 = vmatpush2.bf16.msra.mxu0 0
        %1575 = vmatprep.mubr.bf16.mxu0 0
        %1576 = vmatmul.mubr.bf16.gmra.mxu0 %v1535
        %v1577 = vpop.f32.mrf.mxu0
        %v1578 = vadd.f32 0.0, %v1577
        %v1579 = vpop.f32.mrf.mxu0
        %v1580 = vadd.f32 0.0, %v1579
        %v1581 = vpop.f32.mrf.mxu0
        %v1582 = vpop.f32.mrf.mxu0
        %1583 = vdwg.mxu0
        %1584 = vmatprep.subr.bf16.mxu0 %v951
        %1585 = vmatpush1.bf16.msra.mxu0 %v950
        %1586 = vmatprep.subr.bf16.mxu0 %v947
        %1587 = vmatpush1.bf16.msra.mxu0 %v946
        %1588 = vmatprep.subr.bf16.mxu0 %v943
        %1589 = vmatpush1.bf16.msra.mxu0 %v942
        %1590 = vmatprep.subr.bf16.mxu0 %v939
        %1591 = vmatpush1.bf16.msra.mxu0 %v938
        %1592 = vmatprep.subr.bf16.mxu0 %v935
        %1593 = vmatpush1.bf16.msra.mxu0 %v934
        %1594 = vmatprep.subr.bf16.mxu0 %v931
        %1595 = vmatpush1.bf16.msra.mxu0 %v930
        %1596 = vmatprep.subr.bf16.mxu0 %v927
        %1597 = vmatpush1.bf16.msra.mxu0 %v926
        %1598 = vmatprep.subr.bf16.mxu0 %v923
        %1599 = vmatpush1.bf16.msra.mxu0 %v922
        %1600 = vmatprep.subr.bf16.mxu0 0
        %1601 = vmatpush2.bf16.msra.mxu0 0
        %1602 = vmatprep.subr.bf16.mxu0 0
        %1603 = vmatpush2.bf16.msra.mxu0 0
        %1604 = vmatprep.subr.bf16.mxu0 0
        %1605 = vmatpush2.bf16.msra.mxu0 0
        %1606 = vmatprep.subr.bf16.mxu0 0
        %1607 = vmatpush2.bf16.msra.mxu0 0
        %1608 = vmatprep.subr.bf16.mxu0 0
        %1609 = vmatpush2.bf16.msra.mxu0 0
        %1610 = vmatprep.subr.bf16.mxu0 0
        %1611 = vmatpush2.bf16.msra.mxu0 0
        %1612 = vmatprep.subr.bf16.mxu0 0
        %1613 = vmatpush2.bf16.msra.mxu0 0
        %1614 = vmatprep.subr.bf16.mxu0 0
        %1615 = vmatpush2.bf16.msra.mxu0 0
        %1616 = vmatprep.mubr.bf16.mxu0 0
        %1617 = vmatmul.mubr.bf16.gmra.mxu0 %v1535
        %v1618 = vpop.f32.mrf.mxu0
        %v1619 = vadd.f32 0.0, %v1618
        %v1620 = vpop.f32.mrf.mxu0
        %v1621 = vadd.f32 0.0, %v1620
        %v1622 = vpop.f32.mrf.mxu0
        %v1623 = vpop.f32.mrf.mxu0
        %1624 = vdwg.mxu0
        %v1625 = vadd.f32 %v1539, %v1578
        %v1626 = vadd.f32 %v1540, %v1580
        %v1627 = vadd.f32 %v1541, %v1619
        %v1628 = vadd.f32 %v1542, %v1621
        %v1629 = vmul.f32 %v1625, 0.5
        %v1630 = vtanh.pop %v1629
        %v1631 = vmul.f32 %v1630, 0.5
        %v1632 = vadd.f32 %v1631, 0.5
        %v1633 = vmul.f32 %v1626, 0.5
        %v1634 = vtanh.pop %v1633
        %v1635 = vmul.f32 %v1634, 0.5
        %v1636 = vadd.f32 %v1635, 0.5
        %v1637 = vtanh.pop %v1627
        %v1638 = vmul.f32 %v1628, 0.5
        %v1639 = vtanh.pop %v1638
        %v1640 = vmul.f32 %v1639, 0.5
        %v1641 = vadd.f32 %v1640, 0.5
        %v1642 = vmul.f32 %v1636, %v1532
        %v1643 = vmul.f32 %v1632, %v1637
        %v1644 = vadd.f32 %v1642, %v1643
        %v1645 = vtanh.pop %v1644
        %v1646 = vmul.f32 %v1641, %v1645
        %v1647 = vpack.c.bf16 %v1646, %v1646
        %s1648 = scalar_lea.vmem [#allocation5], 20
        %1649 = vst [vmem:[%s1648] sm:$0xf] %v1647
        %s1650 = scalar_lea.vmem [#allocation4], 192
        %v1651 = vld [vmem:[%s1650] sm:$0xff]
        %v1652 = vld [vmem:[%s1650 + $0x8] sm:$0xff]
        %v1653 = vld [vmem:[%s1650 + $0x10] sm:$0xff]
        %v1654 = vld [vmem:[%s1650 + $0x18] sm:$0xff]
        %1655 = vmatprep.subr.bf16.mxu0 %v949
        %1656 = vmatpush1.bf16.msra.mxu0 %v948
        %1657 = vmatprep.subr.bf16.mxu0 %v945
        %1658 = vmatpush1.bf16.msra.mxu0 %v944
        %1659 = vmatprep.subr.bf16.mxu0 %v941
        %1660 = vmatpush1.bf16.msra.mxu0 %v940
        %1661 = vmatprep.subr.bf16.mxu0 %v937
        %1662 = vmatpush1.bf16.msra.mxu0 %v936
        %1663 = vmatprep.subr.bf16.mxu0 %v933
        %1664 = vmatpush1.bf16.msra.mxu0 %v932
        %1665 = vmatprep.subr.bf16.mxu0 %v929
        %1666 = vmatpush1.bf16.msra.mxu0 %v928
        %1667 = vmatprep.subr.bf16.mxu0 %v925
        %1668 = vmatpush1.bf16.msra.mxu0 %v924
        %1669 = vmatprep.subr.bf16.mxu0 %v921
        %1670 = vmatpush1.bf16.msra.mxu0 %v920
        %1671 = vmatprep.subr.bf16.mxu0 0
        %1672 = vmatpush2.bf16.msra.mxu0 0
        %1673 = vmatprep.subr.bf16.mxu0 0
        %1674 = vmatpush2.bf16.msra.mxu0 0
        %1675 = vmatprep.subr.bf16.mxu0 0
        %1676 = vmatpush2.bf16.msra.mxu0 0
        %1677 = vmatprep.subr.bf16.mxu0 0
        %1678 = vmatpush2.bf16.msra.mxu0 0
        %1679 = vmatprep.subr.bf16.mxu0 0
        %1680 = vmatpush2.bf16.msra.mxu0 0
        %1681 = vmatprep.subr.bf16.mxu0 0
        %1682 = vmatpush2.bf16.msra.mxu0 0
        %1683 = vmatprep.subr.bf16.mxu0 0
        %1684 = vmatpush2.bf16.msra.mxu0 0
        %1685 = vmatprep.subr.bf16.mxu0 0
        %1686 = vmatpush2.bf16.msra.mxu0 0
        %1687 = vmatprep.mubr.bf16.mxu0 0
        %1688 = vmatmul.mubr.bf16.gmra.mxu0 %v1647
        %v1689 = vpop.f32.mrf.mxu0
        %v1690 = vadd.f32 0.0, %v1689
        %v1691 = vpop.f32.mrf.mxu0
        %v1692 = vadd.f32 0.0, %v1691
        %v1693 = vpop.f32.mrf.mxu0
        %v1694 = vpop.f32.mrf.mxu0
        %1695 = vdwg.mxu0
        %1696 = vmatprep.subr.bf16.mxu0 %v951
        %1697 = vmatpush1.bf16.msra.mxu0 %v950
        %1698 = vmatprep.subr.bf16.mxu0 %v947
        %1699 = vmatpush1.bf16.msra.mxu0 %v946
        %1700 = vmatprep.subr.bf16.mxu0 %v943
        %1701 = vmatpush1.bf16.msra.mxu0 %v942
        %1702 = vmatprep.subr.bf16.mxu0 %v939
        %1703 = vmatpush1.bf16.msra.mxu0 %v938
        %1704 = vmatprep.subr.bf16.mxu0 %v935
        %1705 = vmatpush1.bf16.msra.mxu0 %v934
        %1706 = vmatprep.subr.bf16.mxu0 %v931
        %1707 = vmatpush1.bf16.msra.mxu0 %v930
        %1708 = vmatprep.subr.bf16.mxu0 %v927
        %1709 = vmatpush1.bf16.msra.mxu0 %v926
        %1710 = vmatprep.subr.bf16.mxu0 %v923
        %1711 = vmatpush1.bf16.msra.mxu0 %v922
        %1712 = vmatprep.subr.bf16.mxu0 0
        %1713 = vmatpush2.bf16.msra.mxu0 0
        %1714 = vmatprep.subr.bf16.mxu0 0
        %1715 = vmatpush2.bf16.msra.mxu0 0
        %1716 = vmatprep.subr.bf16.mxu0 0
        %1717 = vmatpush2.bf16.msra.mxu0 0
        %1718 = vmatprep.subr.bf16.mxu0 0
        %1719 = vmatpush2.bf16.msra.mxu0 0
        %1720 = vmatprep.subr.bf16.mxu0 0
        %1721 = vmatpush2.bf16.msra.mxu0 0
        %1722 = vmatprep.subr.bf16.mxu0 0
        %1723 = vmatpush2.bf16.msra.mxu0 0
        %1724 = vmatprep.subr.bf16.mxu0 0
        %1725 = vmatpush2.bf16.msra.mxu0 0
        %1726 = vmatprep.subr.bf16.mxu0 0
        %1727 = vmatpush2.bf16.msra.mxu0 0
        %1728 = vmatprep.mubr.bf16.mxu0 0
        %1729 = vmatmul.mubr.bf16.gmra.mxu0 %v1647
        %v1730 = vpop.f32.mrf.mxu0
        %v1731 = vadd.f32 0.0, %v1730
        %v1732 = vpop.f32.mrf.mxu0
        %v1733 = vadd.f32 0.0, %v1732
        %v1734 = vpop.f32.mrf.mxu0
        %v1735 = vpop.f32.mrf.mxu0
        %1736 = vdwg.mxu0
        %v1737 = vadd.f32 %v1651, %v1690
        %v1738 = vadd.f32 %v1652, %v1692
        %v1739 = vadd.f32 %v1653, %v1731
        %v1740 = vadd.f32 %v1654, %v1733
        %v1741 = vmul.f32 %v1737, 0.5
        %v1742 = vtanh.pop %v1741
        %v1743 = vmul.f32 %v1742, 0.5
        %v1744 = vadd.f32 %v1743, 0.5
        %v1745 = vmul.f32 %v1738, 0.5
        %v1746 = vtanh.pop %v1745
        %v1747 = vmul.f32 %v1746, 0.5
        %v1748 = vadd.f32 %v1747, 0.5
        %v1749 = vtanh.pop %v1739
        %v1750 = vmul.f32 %v1740, 0.5
        %v1751 = vtanh.pop %v1750
        %v1752 = vmul.f32 %v1751, 0.5
        %v1753 = vadd.f32 %v1752, 0.5
        %v1754 = vmul.f32 %v1748, %v1644
        %v1755 = vmul.f32 %v1744, %v1749
        %v1756 = vadd.f32 %v1754, %v1755
        %v1757 = vtanh.pop %v1756
        %v1758 = vmul.f32 %v1753, %v1757
        %v1759 = vpack.c.bf16 %v1758, %v1758
        %s1760 = scalar_lea.vmem [#allocation5], 24
        %1761 = vst [vmem:[%s1760] sm:$0xf] %v1759
        %s1762 = scalar_lea.vmem [#allocation4], 224
        %v1763 = vld [vmem:[%s1762] sm:$0xff]
        %v1764 = vld [vmem:[%s1762 + $0x8] sm:$0xff]
        %v1765 = vld [vmem:[%s1762 + $0x10] sm:$0xff]
        %v1766 = vld [vmem:[%s1762 + $0x18] sm:$0xff]
        %1767 = vmatprep.subr.bf16.mxu0 %v949
        %1768 = vmatpush1.bf16.msra.mxu0 %v948
        %1769 = vmatprep.subr.bf16.mxu0 %v945
        %1770 = vmatpush1.bf16.msra.mxu0 %v944
        %1771 = vmatprep.subr.bf16.mxu0 %v941
        %1772 = vmatpush1.bf16.msra.mxu0 %v940
        %1773 = vmatprep.subr.bf16.mxu0 %v937
        %1774 = vmatpush1.bf16.msra.mxu0 %v936
        %1775 = vmatprep.subr.bf16.mxu0 %v933
        %1776 = vmatpush1.bf16.msra.mxu0 %v932
        %1777 = vmatprep.subr.bf16.mxu0 %v929
        %1778 = vmatpush1.bf16.msra.mxu0 %v928
        %1779 = vmatprep.subr.bf16.mxu0 %v925
        %1780 = vmatpush1.bf16.msra.mxu0 %v924
        %1781 = vmatprep.subr.bf16.mxu0 %v921
        %1782 = vmatpush1.bf16.msra.mxu0 %v920
        %1783 = vmatprep.subr.bf16.mxu0 0
        %1784 = vmatpush2.bf16.msra.mxu0 0
        %1785 = vmatprep.subr.bf16.mxu0 0
        %1786 = vmatpush2.bf16.msra.mxu0 0
        %1787 = vmatprep.subr.bf16.mxu0 0
        %1788 = vmatpush2.bf16.msra.mxu0 0
        %1789 = vmatprep.subr.bf16.mxu0 0
        %1790 = vmatpush2.bf16.msra.mxu0 0
        %1791 = vmatprep.subr.bf16.mxu0 0
        %1792 = vmatpush2.bf16.msra.mxu0 0
        %1793 = vmatprep.subr.bf16.mxu0 0
        %1794 = vmatpush2.bf16.msra.mxu0 0
        %1795 = vmatprep.subr.bf16.mxu0 0
        %1796 = vmatpush2.bf16.msra.mxu0 0
        %1797 = vmatprep.subr.bf16.mxu0 0
        %1798 = vmatpush2.bf16.msra.mxu0 0
        %1799 = vmatprep.mubr.bf16.mxu0 0
        %1800 = vmatmul.mubr.bf16.gmra.mxu0 %v1759
        %v1801 = vpop.f32.mrf.mxu0
        %v1802 = vadd.f32 0.0, %v1801
        %v1803 = vpop.f32.mrf.mxu0
        %v1804 = vadd.f32 0.0, %v1803
        %v1805 = vpop.f32.mrf.mxu0
        %v1806 = vpop.f32.mrf.mxu0
        %1807 = vdwg.mxu0
        %1808 = vmatprep.subr.bf16.mxu0 %v951
        %1809 = vmatpush1.bf16.msra.mxu0 %v950
        %1810 = vmatprep.subr.bf16.mxu0 %v947
        %1811 = vmatpush1.bf16.msra.mxu0 %v946
        %1812 = vmatprep.subr.bf16.mxu0 %v943
        %1813 = vmatpush1.bf16.msra.mxu0 %v942
        %1814 = vmatprep.subr.bf16.mxu0 %v939
        %1815 = vmatpush1.bf16.msra.mxu0 %v938
        %1816 = vmatprep.subr.bf16.mxu0 %v935
        %1817 = vmatpush1.bf16.msra.mxu0 %v934
        %1818 = vmatprep.subr.bf16.mxu0 %v931
        %1819 = vmatpush1.bf16.msra.mxu0 %v930
        %1820 = vmatprep.subr.bf16.mxu0 %v927
        %1821 = vmatpush1.bf16.msra.mxu0 %v926
        %1822 = vmatprep.subr.bf16.mxu0 %v923
        %1823 = vmatpush1.bf16.msra.mxu0 %v922
        %1824 = vmatprep.subr.bf16.mxu0 0
        %1825 = vmatpush2.bf16.msra.mxu0 0
        %1826 = vmatprep.subr.bf16.mxu0 0
        %1827 = vmatpush2.bf16.msra.mxu0 0
        %1828 = vmatprep.subr.bf16.mxu0 0
        %1829 = vmatpush2.bf16.msra.mxu0 0
        %1830 = vmatprep.subr.bf16.mxu0 0
        %1831 = vmatpush2.bf16.msra.mxu0 0
        %1832 = vmatprep.subr.bf16.mxu0 0
        %1833 = vmatpush2.bf16.msra.mxu0 0
        %1834 = vmatprep.subr.bf16.mxu0 0
        %1835 = vmatpush2.bf16.msra.mxu0 0
        %1836 = vmatprep.subr.bf16.mxu0 0
        %1837 = vmatpush2.bf16.msra.mxu0 0
        %1838 = vmatprep.subr.bf16.mxu0 0
        %1839 = vmatpush2.bf16.msra.mxu0 0
        %1840 = vmatprep.mubr.bf16.mxu0 0
        %1841 = vmatmul.mubr.bf16.gmra.mxu0 %v1759
        %v1842 = vpop.f32.mrf.mxu0
        %v1843 = vadd.f32 0.0, %v1842
        %v1844 = vpop.f32.mrf.mxu0
        %v1845 = vadd.f32 0.0, %v1844
        %v1846 = vpop.f32.mrf.mxu0
        %v1847 = vpop.f32.mrf.mxu0
        %1848 = vdwg.mxu0
        %v1849 = vadd.f32 %v1763, %v1802
        %v1850 = vadd.f32 %v1764, %v1804
        %v1851 = vadd.f32 %v1765, %v1843
        %v1852 = vadd.f32 %v1766, %v1845
        %v1853 = vmul.f32 %v1849, 0.5
        %v1854 = vtanh.pop %v1853
        %v1855 = vmul.f32 %v1854, 0.5
        %v1856 = vadd.f32 %v1855, 0.5
        %v1857 = vmul.f32 %v1850, 0.5
        %v1858 = vtanh.pop %v1857
        %v1859 = vmul.f32 %v1858, 0.5
        %v1860 = vadd.f32 %v1859, 0.5
        %v1861 = vtanh.pop %v1851
        %v1862 = vmul.f32 %v1852, 0.5
        %v1863 = vtanh.pop %v1862
        %v1864 = vmul.f32 %v1863, 0.5
        %v1865 = vadd.f32 %v1864, 0.5
        %v1866 = vmul.f32 %v1860, %v1756
        %v1867 = vmul.f32 %v1856, %v1861
        %v1868 = vadd.f32 %v1866, %v1867
        %v1869 = vtanh.pop %v1868
        %v1870 = vmul.f32 %v1865, %v1869
        %v1871 = vpack.c.bf16 %v1870, %v1870
        %s1872 = scalar_lea.vmem [#allocation5], 28
        %1873 = vst [vmem:[%s1872] sm:$0xf] %v1871
        %1874 = vst [vmem:[#allocation2] sm:$0xff] %v1870
        %1875 = vst [vmem:[#allocation3] sm:$0xff] %v1868
        %v1876 = vld [vmem:[#allocation12] sm:$0xff]
        %v1877 = vld [vmem:[#allocation12 + $0x8] sm:$0xff]
        %v1878 = vld [vmem:[#allocation12 + $0x10] sm:$0xff]
        %v1879 = vld [vmem:[#allocation12 + $0x18] sm:$0xff]
        %v1880 = vld [vmem:[#allocation12 + $0x20] sm:$0xff]
        %v1881 = vld [vmem:[#allocation12 + $0x28] sm:$0xff]
        %v1882 = vld [vmem:[#allocation12 + $0x30] sm:$0xff]
        %v1883 = vld [vmem:[#allocation12 + $0x38] sm:$0xff]
        %v1884 = vld [vmem:[#allocation12 + $0x40] sm:$0xff]
        %v1885 = vld [vmem:[#allocation12 + $0x48] sm:$0xff]
        %v1886 = vld [vmem:[#allocation12 + $0x50] sm:$0xff]
        %v1887 = vld [vmem:[#allocation12 + $0x58] sm:$0xff]
        %v1888 = vld [vmem:[#allocation12 + $0x60] sm:$0xff]
        %v1889 = vld [vmem:[#allocation12 + $0x68] sm:$0xff]
        %v1890 = vld [vmem:[#allocation12 + $0x70] sm:$0xff]
        %v1891 = vld [vmem:[#allocation12 + $0x78] sm:$0xff]
        %v1892 = vld [vmem:[#allocation12 + $0x80] sm:$0xff]
        %v1893 = vld [vmem:[#allocation12 + $0x88] sm:$0xff]
        %v1894 = vld [vmem:[#allocation12 + $0x90] sm:$0xff]
        %v1895 = vld [vmem:[#allocation12 + $0x98] sm:$0xff]
        %v1896 = vld [vmem:[#allocation12 + $0xa0] sm:$0xff]
        %v1897 = vld [vmem:[#allocation12 + $0xa8] sm:$0xff]
        %v1898 = vld [vmem:[#allocation12 + $0xb0] sm:$0xff]
        %v1899 = vld [vmem:[#allocation12 + $0xb8] sm:$0xff]
        %v1900 = vld [vmem:[#allocation12 + $0xc0] sm:$0xff]
        %v1901 = vld [vmem:[#allocation12 + $0xc8] sm:$0xff]
        %v1902 = vld [vmem:[#allocation12 + $0xd0] sm:$0xff]
        %v1903 = vld [vmem:[#allocation12 + $0xd8] sm:$0xff]
        %v1904 = vld [vmem:[#allocation12 + $0xe0] sm:$0xff]
        %v1905 = vld [vmem:[#allocation12 + $0xe8] sm:$0xff]
        %v1906 = vld [vmem:[#allocation12 + $0xf0] sm:$0xff]
        %v1907 = vld [vmem:[#allocation12 + $0xf8] sm:$0xff]
        %v1908 = vld [vmem:[#allocation14] sm:$0xff]
        %v1909 = vld [vmem:[#allocation14 + $0x8] sm:$0xff]
        %v1910 = vld [vmem:[#allocation14 + $0x10] sm:$0xff]
        %v1911 = vld [vmem:[#allocation14 + $0x18] sm:$0xff]
        %v1912 = vld [vmem:[#allocation14 + $0x20] sm:$0xff]
        %v1913 = vld [vmem:[#allocation14 + $0x28] sm:$0xff]
        %v1914 = vld [vmem:[#allocation14 + $0x30] sm:$0xff]
        %v1915 = vld [vmem:[#allocation14 + $0x38] sm:$0xff]
        %v1916 = vld [vmem:[#allocation14 + $0x40] sm:$0xff]
        %v1917 = vld [vmem:[#allocation14 + $0x48] sm:$0xff]
        %v1918 = vld [vmem:[#allocation14 + $0x50] sm:$0xff]
        %v1919 = vld [vmem:[#allocation14 + $0x58] sm:$0xff]
        %v1920 = vld [vmem:[#allocation14 + $0x60] sm:$0xff]
        %v1921 = vld [vmem:[#allocation14 + $0x68] sm:$0xff]
        %v1922 = vld [vmem:[#allocation14 + $0x70] sm:$0xff]
        %v1923 = vld [vmem:[#allocation14 + $0x78] sm:$0xff]
        %v1924 = vld [vmem:[#allocation14 + $0x80] sm:$0xff]
        %v1925 = vld [vmem:[#allocation14 + $0x88] sm:$0xff]
        %v1926 = vld [vmem:[#allocation14 + $0x90] sm:$0xff]
        %v1927 = vld [vmem:[#allocation14 + $0x98] sm:$0xff]
        %v1928 = vld [vmem:[#allocation14 + $0xa0] sm:$0xff]
        %v1929 = vld [vmem:[#allocation14 + $0xa8] sm:$0xff]
        %v1930 = vld [vmem:[#allocation14 + $0xb0] sm:$0xff]
        %v1931 = vld [vmem:[#allocation14 + $0xb8] sm:$0xff]
        %v1932 = vld [vmem:[#allocation14 + $0xc0] sm:$0xff]
        %v1933 = vld [vmem:[#allocation14 + $0xc8] sm:$0xff]
        %v1934 = vld [vmem:[#allocation14 + $0xd0] sm:$0xff]
        %v1935 = vld [vmem:[#allocation14 + $0xd8] sm:$0xff]
        %v1936 = vld [vmem:[#allocation14 + $0xe0] sm:$0xff]
        %v1937 = vld [vmem:[#allocation14 + $0xe8] sm:$0xff]
        %v1938 = vld [vmem:[#allocation14 + $0xf0] sm:$0xff]
        %v1939 = vld [vmem:[#allocation14 + $0xf8] sm:$0xff]
        %v1940 = vld [vmem:[%s6] sm:$0xf]
        %v1941 = vld [vmem:[#allocation5] sm:$0xf]
        %v1942 = vld [vmem:[#allocation5 + $0x4] sm:$0xf]
        %v1943 = vld [vmem:[#allocation5 + $0x8] sm:$0xf]
        %v1944 = vld [vmem:[#allocation5 + $0xc] sm:$0xf]
        %v1945 = vld [vmem:[#allocation5 + $0x10] sm:$0xf]
        %v1946 = vld [vmem:[#allocation5 + $0x14] sm:$0xf]
        %v1947 = vld [vmem:[#allocation5 + $0x18] sm:$0xf]
        %v1948 = vld [vmem:[#allocation5 + $0x1c] sm:$0xf]
        %v1950 = vlaneseq
        %v1951 = vshrl.u32 %v1950, 7
        %v1952 = vsub.s32 0, %v1951
        %v1953 = vrot.slane %v1940, %v1952
        %v1954 = vlaneseq
        %v1955 = vshrl.u32 %v1954, 7
        %v1956 = vsub.s32 1, %v1955
        %v1957 = vrot.slane %v1940, %v1956
        %v1958 = vlaneseq
        %v1959 = vshrl.u32 %v1958, 7
        %v1960 = vsub.s32 2, %v1959
        %v1961 = vrot.slane %v1940, %v1960
        %v1962 = vlaneseq
        %v1963 = vshrl.u32 %v1962, 7
        %v1964 = vsub.s32 3, %v1963
        %v1965 = vrot.slane %v1940, %v1964
        %v1978 = vunpack.c.l.b16 %v1941
        %v1979 = vunpack.c.l.b16 %v1942
        %v1980 = vunpack.c.l.b16 %v1943
        %v1981 = vunpack.c.l.b16 %v1944
        %v1982 = vunpack.c.l.b16 %v1945
        %v1983 = vunpack.c.l.b16 %v1946
        %v1984 = vunpack.c.l.b16 %v1947
        %v1985 = vunpack.c.l.b16 %v1948
        %v1986 = vpack.c.b16 %v1979, %v1978
        %v1987 = vpack.c.b16 %v1981, %v1980
        %v1988 = vpack.c.b16 %v1983, %v1982
        %v1989 = vpack.c.b16 %v1985, %v1984
        %v2026 = vunpack.c.l.b16 %v1876
        %v2027 = vunpack.c.h.b16 %v1876
        %v2028 = vunpack.c.l.b16 %v1877
        %v2029 = vunpack.c.h.b16 %v1877
        %v2030 = vunpack.c.l.b16 %v1878
        %v2031 = vunpack.c.h.b16 %v1878
        %v2032 = vunpack.c.l.b16 %v1879
        %v2033 = vunpack.c.h.b16 %v1879
        %v2034 = vunpack.c.l.b16 %v1880
        %v2035 = vunpack.c.h.b16 %v1880
        %v2036 = vunpack.c.l.b16 %v1881
        %v2037 = vunpack.c.h.b16 %v1881
        %v2038 = vunpack.c.l.b16 %v1882
        %v2039 = vunpack.c.h.b16 %v1882
        %v2040 = vunpack.c.l.b16 %v1883
        %v2041 = vunpack.c.h.b16 %v1883
        %v2042 = vunpack.c.l.b16 %v1884
        %v2043 = vunpack.c.h.b16 %v1884
        %v2044 = vunpack.c.l.b16 %v1885
        %v2045 = vunpack.c.h.b16 %v1885
        %v2046 = vunpack.c.l.b16 %v1886
        %v2047 = vunpack.c.h.b16 %v1886
        %v2048 = vunpack.c.l.b16 %v1887
        %v2049 = vunpack.c.h.b16 %v1887
        %v2050 = vunpack.c.l.b16 %v1888
        %v2051 = vunpack.c.h.b16 %v1888
        %v2052 = vunpack.c.l.b16 %v1889
        %v2053 = vunpack.c.h.b16 %v1889
        %v2054 = vunpack.c.l.b16 %v1890
        %v2055 = vunpack.c.h.b16 %v1890
        %v2056 = vunpack.c.l.b16 %v1891
        %v2057 = vunpack.c.h.b16 %v1891
        %v2058 = vunpack.c.l.b16 %v1892
        %v2059 = vunpack.c.h.b16 %v1892
        %v2060 = vunpack.c.l.b16 %v1893
        %v2061 = vunpack.c.h.b16 %v1893
        %v2062 = vunpack.c.l.b16 %v1894
        %v2063 = vunpack.c.h.b16 %v1894
        %v2064 = vunpack.c.l.b16 %v1895
        %v2065 = vunpack.c.h.b16 %v1895
        %v2066 = vunpack.c.l.b16 %v1896
        %v2067 = vunpack.c.h.b16 %v1896
        %v2068 = vunpack.c.l.b16 %v1897
        %v2069 = vunpack.c.h.b16 %v1897
        %v2070 = vunpack.c.l.b16 %v1898
        %v2071 = vunpack.c.h.b16 %v1898
        %v2072 = vunpack.c.l.b16 %v1899
        %v2073 = vunpack.c.h.b16 %v1899
        %v2074 = vunpack.c.l.b16 %v1900
        %v2075 = vunpack.c.h.b16 %v1900
        %v2076 = vunpack.c.l.b16 %v1901
        %v2077 = vunpack.c.h.b16 %v1901
        %v2078 = vunpack.c.l.b16 %v1902
        %v2079 = vunpack.c.h.b16 %v1902
        %v2080 = vunpack.c.l.b16 %v1903
        %v2081 = vunpack.c.h.b16 %v1903
        %v2082 = vunpack.c.l.b16 %v1904
        %v2083 = vunpack.c.h.b16 %v1904
        %v2084 = vunpack.c.l.b16 %v1905
        %v2085 = vunpack.c.h.b16 %v1905
        %v2086 = vunpack.c.l.b16 %v1906
        %v2087 = vunpack.c.h.b16 %v1906
        %v2088 = vunpack.c.l.b16 %v1907
        %v2089 = vunpack.c.h.b16 %v1907
        %v2090 = vpack.c.b16 %v2030, %v2026
        %v2091 = vpack.c.b16 %v2031, %v2027
        %v2092 = vpack.c.b16 %v2032, %v2028
        %v2093 = vpack.c.b16 %v2033, %v2029
        %v2094 = vpack.c.b16 %v2038, %v2034
        %v2095 = vpack.c.b16 %v2039, %v2035
        %v2096 = vpack.c.b16 %v2040, %v2036
        %v2097 = vpack.c.b16 %v2041, %v2037
        %v2098 = vpack.c.b16 %v2046, %v2042
        %v2099 = vpack.c.b16 %v2047, %v2043
        %v2100 = vpack.c.b16 %v2048, %v2044
        %v2101 = vpack.c.b16 %v2049, %v2045
        %v2102 = vpack.c.b16 %v2054, %v2050
        %v2103 = vpack.c.b16 %v2055, %v2051
        %v2104 = vpack.c.b16 %v2056, %v2052
        %v2105 = vpack.c.b16 %v2057, %v2053
        %v2106 = vpack.c.b16 %v2062, %v2058
        %v2107 = vpack.c.b16 %v2063, %v2059
        %v2108 = vpack.c.b16 %v2064, %v2060
        %v2109 = vpack.c.b16 %v2065, %v2061
        %v2110 = vpack.c.b16 %v2070, %v2066
        %v2111 = vpack.c.b16 %v2071, %v2067
        %v2112 = vpack.c.b16 %v2072, %v2068
        %v2113 = vpack.c.b16 %v2073, %v2069
        %v2114 = vpack.c.b16 %v2078, %v2074
        %v2115 = vpack.c.b16 %v2079, %v2075
        %v2116 = vpack.c.b16 %v2080, %v2076
        %v2117 = vpack.c.b16 %v2081, %v2077
        %v2118 = vpack.c.b16 %v2086, %v2082
        %v2119 = vpack.c.b16 %v2087, %v2083
        %v2120 = vpack.c.b16 %v2088, %v2084
        %v2121 = vpack.c.b16 %v2089, %v2085
        %2154 = vmatprep.subr.bf16.mxu0 %v2119
        %2155 = vmatpush1.bf16.msra.mxu0 %v2118
        %2156 = vmatprep.subr.bf16.mxu0 %v2115
        %2157 = vmatpush1.bf16.msra.mxu0 %v2114
        %2158 = vmatprep.subr.bf16.mxu0 %v2111
        %2159 = vmatpush1.bf16.msra.mxu0 %v2110
        %2160 = vmatprep.subr.bf16.mxu0 %v2107
        %2161 = vmatpush1.bf16.msra.mxu0 %v2106
        %2162 = vmatprep.subr.bf16.mxu0 %v2103
        %2163 = vmatpush1.bf16.msra.mxu0 %v2102
        %2164 = vmatprep.subr.bf16.mxu0 %v2099
        %2165 = vmatpush1.bf16.msra.mxu0 %v2098
        %2166 = vmatprep.subr.bf16.mxu0 %v2095
        %2167 = vmatpush1.bf16.msra.mxu0 %v2094
        %2168 = vmatprep.subr.bf16.mxu0 %v2091
        %2169 = vmatpush1.bf16.msra.mxu0 %v2090
        %2170 = vmatprep.subr.bf16.mxu0 0
        %2171 = vmatpush2.bf16.msra.mxu0 0
        %2172 = vmatprep.subr.bf16.mxu0 0
        %2173 = vmatpush2.bf16.msra.mxu0 0
        %2174 = vmatprep.subr.bf16.mxu0 0
        %2175 = vmatpush2.bf16.msra.mxu0 0
        %2176 = vmatprep.subr.bf16.mxu0 0
        %2177 = vmatpush2.bf16.msra.mxu0 0
        %2178 = vmatprep.subr.bf16.mxu0 0
        %2179 = vmatpush2.bf16.msra.mxu0 0
        %2180 = vmatprep.subr.bf16.mxu0 0
        %2181 = vmatpush2.bf16.msra.mxu0 0
        %2182 = vmatprep.subr.bf16.mxu0 0
        %2183 = vmatpush2.bf16.msra.mxu0 0
        %2184 = vmatprep.subr.bf16.mxu0 0
        %2185 = vmatpush2.bf16.msra.mxu0 0
        %2186 = vmatprep.mubr.bf16.mxu0 0
        %2187 = vmatmul.mubr.bf16.gmra.mxu0 %v1986
        %v2188 = vpop.f32.mrf.mxu0
        %v2189 = vadd.f32 %v1953, %v2188
        %v2190 = vpop.f32.mrf.mxu0
        %v2191 = vadd.f32 %v1957, %v2190
        %v2192 = vpop.f32.mrf.mxu0
        %v2193 = vadd.f32 %v1953, %v2192
        %v2194 = vpop.f32.mrf.mxu0
        %v2195 = vadd.f32 %v1957, %v2194
        %2196 = vmatprep.mubr.bf16.mxu0 0
        %2197 = vmatmul.mubr.bf16.gmra.mxu0 %v1987
        %v2198 = vpop.f32.mrf.mxu0
        %v2199 = vadd.f32 %v1953, %v2198
        %v2200 = vpop.f32.mrf.mxu0
        %v2201 = vadd.f32 %v1957, %v2200
        %v2202 = vpop.f32.mrf.mxu0
        %v2203 = vadd.f32 %v1953, %v2202
        %v2204 = vpop.f32.mrf.mxu0
        %v2205 = vadd.f32 %v1957, %v2204
        %2206 = vmatprep.mubr.bf16.mxu0 0
        %2207 = vmatmul.mubr.bf16.gmra.mxu0 %v1988
        %v2208 = vpop.f32.mrf.mxu0
        %v2209 = vadd.f32 %v1953, %v2208
        %v2210 = vpop.f32.mrf.mxu0
        %v2211 = vadd.f32 %v1957, %v2210
        %v2212 = vpop.f32.mrf.mxu0
        %v2213 = vadd.f32 %v1953, %v2212
        %v2214 = vpop.f32.mrf.mxu0
        %v2215 = vadd.f32 %v1957, %v2214
        %2216 = vmatprep.mubr.bf16.mxu0 0
        %2217 = vmatmul.mubr.bf16.gmra.mxu0 %v1989
        %v2218 = vpop.f32.mrf.mxu0
        %v2219 = vadd.f32 %v1953, %v2218
        %v2220 = vpop.f32.mrf.mxu0
        %v2221 = vadd.f32 %v1957, %v2220
        %v2222 = vpop.f32.mrf.mxu0
        %v2223 = vadd.f32 %v1953, %v2222
        %v2224 = vpop.f32.mrf.mxu0
        %v2225 = vadd.f32 %v1957, %v2224
        %2226 = vdwg.mxu0
        %2227 = vmatprep.subr.bf16.mxu0 %v2121
        %2228 = vmatpush1.bf16.msra.mxu0 %v2120
        %2229 = vmatprep.subr.bf16.mxu0 %v2117
        %2230 = vmatpush1.bf16.msra.mxu0 %v2116
        %2231 = vmatprep.subr.bf16.mxu0 %v2113
        %2232 = vmatpush1.bf16.msra.mxu0 %v2112
        %2233 = vmatprep.subr.bf16.mxu0 %v2109
        %2234 = vmatpush1.bf16.msra.mxu0 %v2108
        %2235 = vmatprep.subr.bf16.mxu0 %v2105
        %2236 = vmatpush1.bf16.msra.mxu0 %v2104
        %2237 = vmatprep.subr.bf16.mxu0 %v2101
        %2238 = vmatpush1.bf16.msra.mxu0 %v2100
        %2239 = vmatprep.subr.bf16.mxu0 %v2097
        %2240 = vmatpush1.bf16.msra.mxu0 %v2096
        %2241 = vmatprep.subr.bf16.mxu0 %v2093
        %2242 = vmatpush1.bf16.msra.mxu0 %v2092
        %2243 = vmatprep.subr.bf16.mxu0 0
        %2244 = vmatpush2.bf16.msra.mxu0 0
        %2245 = vmatprep.subr.bf16.mxu0 0
        %2246 = vmatpush2.bf16.msra.mxu0 0
        %2247 = vmatprep.subr.bf16.mxu0 0
        %2248 = vmatpush2.bf16.msra.mxu0 0
        %2249 = vmatprep.subr.bf16.mxu0 0
        %2250 = vmatpush2.bf16.msra.mxu0 0
        %2251 = vmatprep.subr.bf16.mxu0 0
        %2252 = vmatpush2.bf16.msra.mxu0 0
        %2253 = vmatprep.subr.bf16.mxu0 0
        %2254 = vmatpush2.bf16.msra.mxu0 0
        %2255 = vmatprep.subr.bf16.mxu0 0
        %2256 = vmatpush2.bf16.msra.mxu0 0
        %2257 = vmatprep.subr.bf16.mxu0 0
        %2258 = vmatpush2.bf16.msra.mxu0 0
        %2259 = vmatprep.mubr.bf16.mxu0 0
        %2260 = vmatmul.mubr.bf16.gmra.mxu0 %v1986
        %v2261 = vpop.f32.mrf.mxu0
        %v2262 = vadd.f32 %v1961, %v2261
        %v2263 = vpop.f32.mrf.mxu0
        %v2264 = vadd.f32 %v1965, %v2263
        %v2265 = vpop.f32.mrf.mxu0
        %v2266 = vadd.f32 %v1961, %v2265
        %v2267 = vpop.f32.mrf.mxu0
        %v2268 = vadd.f32 %v1965, %v2267
        %2269 = vmatprep.mubr.bf16.mxu0 0
        %2270 = vmatmul.mubr.bf16.gmra.mxu0 %v1987
        %v2271 = vpop.f32.mrf.mxu0
        %v2272 = vadd.f32 %v1961, %v2271
        %v2273 = vpop.f32.mrf.mxu0
        %v2274 = vadd.f32 %v1965, %v2273
        %v2275 = vpop.f32.mrf.mxu0
        %v2276 = vadd.f32 %v1961, %v2275
        %v2277 = vpop.f32.mrf.mxu0
        %v2278 = vadd.f32 %v1965, %v2277
        %2279 = vmatprep.mubr.bf16.mxu0 0
        %2280 = vmatmul.mubr.bf16.gmra.mxu0 %v1988
        %v2281 = vpop.f32.mrf.mxu0
        %v2282 = vadd.f32 %v1961, %v2281
        %v2283 = vpop.f32.mrf.mxu0
        %v2284 = vadd.f32 %v1965, %v2283
        %v2285 = vpop.f32.mrf.mxu0
        %v2286 = vadd.f32 %v1961, %v2285
        %v2287 = vpop.f32.mrf.mxu0
        %v2288 = vadd.f32 %v1965, %v2287
        %2289 = vmatprep.mubr.bf16.mxu0 0
        %2290 = vmatmul.mubr.bf16.gmra.mxu0 %v1989
        %v2291 = vpop.f32.mrf.mxu0
        %v2292 = vadd.f32 %v1961, %v2291
        %v2293 = vpop.f32.mrf.mxu0
        %v2294 = vadd.f32 %v1965, %v2293
        %v2295 = vpop.f32.mrf.mxu0
        %v2296 = vadd.f32 %v1961, %v2295
        %v2297 = vpop.f32.mrf.mxu0
        %v2298 = vadd.f32 %v1965, %v2297
        %2299 = vdwg.mxu0
        %2300 = vst [vmem:[#allocation4] sm:$0xff] %v2189
        %2301 = vst [vmem:[#allocation4 + $0x8] sm:$0xff] %v2191
        %2302 = vst [vmem:[#allocation4 + $0x10] sm:$0xff] %v2262
        %2303 = vst [vmem:[#allocation4 + $0x18] sm:$0xff] %v2264
        %2304 = vst [vmem:[#allocation4 + $0x20] sm:$0xff] %v2193
        %2305 = vst [vmem:[#allocation4 + $0x28] sm:$0xff] %v2195
        %2306 = vst [vmem:[#allocation4 + $0x30] sm:$0xff] %v2266
        %2307 = vst [vmem:[#allocation4 + $0x38] sm:$0xff] %v2268
        %2308 = vst [vmem:[#allocation4 + $0x40] sm:$0xff] %v2199
        %2309 = vst [vmem:[#allocation4 + $0x48] sm:$0xff] %v2201
        %2310 = vst [vmem:[#allocation4 + $0x50] sm:$0xff] %v2272
        %2311 = vst [vmem:[#allocation4 + $0x58] sm:$0xff] %v2274
        %2312 = vst [vmem:[#allocation4 + $0x60] sm:$0xff] %v2203
        %2313 = vst [vmem:[#allocation4 + $0x68] sm:$0xff] %v2205
        %2314 = vst [vmem:[#allocation4 + $0x70] sm:$0xff] %v2276
        %2315 = vst [vmem:[#allocation4 + $0x78] sm:$0xff] %v2278
        %2316 = vst [vmem:[#allocation4 + $0x80] sm:$0xff] %v2209
        %2317 = vst [vmem:[#allocation4 + $0x88] sm:$0xff] %v2211
        %2318 = vst [vmem:[#allocation4 + $0x90] sm:$0xff] %v2282
        %2319 = vst [vmem:[#allocation4 + $0x98] sm:$0xff] %v2284
        %2320 = vst [vmem:[#allocation4 + $0xa0] sm:$0xff] %v2213
        %2321 = vst [vmem:[#allocation4 + $0xa8] sm:$0xff] %v2215
        %2322 = vst [vmem:[#allocation4 + $0xb0] sm:$0xff] %v2286
        %2323 = vst [vmem:[#allocation4 + $0xb8] sm:$0xff] %v2288
        %2324 = vst [vmem:[#allocation4 + $0xc0] sm:$0xff] %v2219
        %2325 = vst [vmem:[#allocation4 + $0xc8] sm:$0xff] %v2221
        %2326 = vst [vmem:[#allocation4 + $0xd0] sm:$0xff] %v2292
        %2327 = vst [vmem:[#allocation4 + $0xd8] sm:$0xff] %v2294
        %2328 = vst [vmem:[#allocation4 + $0xe0] sm:$0xff] %v2223
        %2329 = vst [vmem:[#allocation4 + $0xe8] sm:$0xff] %v2225
        %2330 = vst [vmem:[#allocation4 + $0xf0] sm:$0xff] %v2296
        %2331 = vst [vmem:[#allocation4 + $0xf8] sm:$0xff] %v2298
        %s2332 = scalar_lea.vmem [#allocation2], 8
        %v2333 = vld [vmem:[%s2332] sm:$0xff]
        %s2334 = scalar_lea.vmem [#allocation3], 8
        %v2335 = vld [vmem:[%s2334] sm:$0xff]
        %v2336 = vld [vmem:[#allocation4] sm:$0xff]
        %v2337 = vld [vmem:[#allocation4 + $0x8] sm:$0xff]
        %v2338 = vld [vmem:[#allocation4 + $0x10] sm:$0xff]
        %v2339 = vld [vmem:[#allocation4 + $0x18] sm:$0xff]
        %v2340 = vpack.c.bf16 %v2333, %v2333
        %v2373 = vunpack.c.l.b16 %v1908
        %v2374 = vunpack.c.h.b16 %v1908
        %v2375 = vunpack.c.l.b16 %v1909
        %v2376 = vunpack.c.h.b16 %v1909
        %v2377 = vunpack.c.l.b16 %v1910
        %v2378 = vunpack.c.h.b16 %v1910
        %v2379 = vunpack.c.l.b16 %v1911
        %v2380 = vunpack.c.h.b16 %v1911
        %v2381 = vunpack.c.l.b16 %v1912
        %v2382 = vunpack.c.h.b16 %v1912
        %v2383 = vunpack.c.l.b16 %v1913
        %v2384 = vunpack.c.h.b16 %v1913
        %v2385 = vunpack.c.l.b16 %v1914
        %v2386 = vunpack.c.h.b16 %v1914
        %v2387 = vunpack.c.l.b16 %v1915
        %v2388 = vunpack.c.h.b16 %v1915
        %v2389 = vunpack.c.l.b16 %v1916
        %v2390 = vunpack.c.h.b16 %v1916
        %v2391 = vunpack.c.l.b16 %v1917
        %v2392 = vunpack.c.h.b16 %v1917
        %v2393 = vunpack.c.l.b16 %v1918
        %v2394 = vunpack.c.h.b16 %v1918
        %v2395 = vunpack.c.l.b16 %v1919
        %v2396 = vunpack.c.h.b16 %v1919
        %v2397 = vunpack.c.l.b16 %v1920
        %v2398 = vunpack.c.h.b16 %v1920
        %v2399 = vunpack.c.l.b16 %v1921
        %v2400 = vunpack.c.h.b16 %v1921
        %v2401 = vunpack.c.l.b16 %v1922
        %v2402 = vunpack.c.h.b16 %v1922
        %v2403 = vunpack.c.l.b16 %v1923
        %v2404 = vunpack.c.h.b16 %v1923
        %v2405 = vunpack.c.l.b16 %v1924
        %v2406 = vunpack.c.h.b16 %v1924
        %v2407 = vunpack.c.l.b16 %v1925
        %v2408 = vunpack.c.h.b16 %v1925
        %v2409 = vunpack.c.l.b16 %v1926
        %v2410 = vunpack.c.h.b16 %v1926
        %v2411 = vunpack.c.l.b16 %v1927
        %v2412 = vunpack.c.h.b16 %v1927
        %v2413 = vunpack.c.l.b16 %v1928
        %v2414 = vunpack.c.h.b16 %v1928
        %v2415 = vunpack.c.l.b16 %v1929
        %v2416 = vunpack.c.h.b16 %v1929
        %v2417 = vunpack.c.l.b16 %v1930
        %v2418 = vunpack.c.h.b16 %v1930
        %v2419 = vunpack.c.l.b16 %v1931
        %v2420 = vunpack.c.h.b16 %v1931
        %v2421 = vunpack.c.l.b16 %v1932
        %v2422 = vunpack.c.h.b16 %v1932
        %v2423 = vunpack.c.l.b16 %v1933
        %v2424 = vunpack.c.h.b16 %v1933
        %v2425 = vunpack.c.l.b16 %v1934
        %v2426 = vunpack.c.h.b16 %v1934
        %v2427 = vunpack.c.l.b16 %v1935
        %v2428 = vunpack.c.h.b16 %v1935
        %v2429 = vunpack.c.l.b16 %v1936
        %v2430 = vunpack.c.h.b16 %v1936
        %v2431 = vunpack.c.l.b16 %v1937
        %v2432 = vunpack.c.h.b16 %v1937
        %v2433 = vunpack.c.l.b16 %v1938
        %v2434 = vunpack.c.h.b16 %v1938
        %v2435 = vunpack.c.l.b16 %v1939
        %v2436 = vunpack.c.h.b16 %v1939
        %v2437 = vpack.c.b16 %v2377, %v2373
        %v2438 = vpack.c.b16 %v2378, %v2374
        %v2439 = vpack.c.b16 %v2379, %v2375
        %v2440 = vpack.c.b16 %v2380, %v2376
        %v2441 = vpack.c.b16 %v2385, %v2381
        %v2442 = vpack.c.b16 %v2386, %v2382
        %v2443 = vpack.c.b16 %v2387, %v2383
        %v2444 = vpack.c.b16 %v2388, %v2384
        %v2445 = vpack.c.b16 %v2393, %v2389
        %v2446 = vpack.c.b16 %v2394, %v2390
        %v2447 = vpack.c.b16 %v2395, %v2391
        %v2448 = vpack.c.b16 %v2396, %v2392
        %v2449 = vpack.c.b16 %v2401, %v2397
        %v2450 = vpack.c.b16 %v2402, %v2398
        %v2451 = vpack.c.b16 %v2403, %v2399
        %v2452 = vpack.c.b16 %v2404, %v2400
        %v2453 = vpack.c.b16 %v2409, %v2405
        %v2454 = vpack.c.b16 %v2410, %v2406
        %v2455 = vpack.c.b16 %v2411, %v2407
        %v2456 = vpack.c.b16 %v2412, %v2408
        %v2457 = vpack.c.b16 %v2417, %v2413
        %v2458 = vpack.c.b16 %v2418, %v2414
        %v2459 = vpack.c.b16 %v2419, %v2415
        %v2460 = vpack.c.b16 %v2420, %v2416
        %v2461 = vpack.c.b16 %v2425, %v2421
        %v2462 = vpack.c.b16 %v2426, %v2422
        %v2463 = vpack.c.b16 %v2427, %v2423
        %v2464 = vpack.c.b16 %v2428, %v2424
        %v2465 = vpack.c.b16 %v2433, %v2429
        %v2466 = vpack.c.b16 %v2434, %v2430
        %v2467 = vpack.c.b16 %v2435, %v2431
        %v2468 = vpack.c.b16 %v2436, %v2432
        %2501 = vmatprep.subr.bf16.mxu0 %v2466
        %2502 = vmatpush1.bf16.msra.mxu0 %v2465
        %2503 = vmatprep.subr.bf16.mxu0 %v2462
        %2504 = vmatpush1.bf16.msra.mxu0 %v2461
        %2505 = vmatprep.subr.bf16.mxu0 %v2458
        %2506 = vmatpush1.bf16.msra.mxu0 %v2457
        %2507 = vmatprep.subr.bf16.mxu0 %v2454
        %2508 = vmatpush1.bf16.msra.mxu0 %v2453
        %2509 = vmatprep.subr.bf16.mxu0 %v2450
        %2510 = vmatpush1.bf16.msra.mxu0 %v2449
        %2511 = vmatprep.subr.bf16.mxu0 %v2446
        %2512 = vmatpush1.bf16.msra.mxu0 %v2445
        %2513 = vmatprep.subr.bf16.mxu0 %v2442
        %2514 = vmatpush1.bf16.msra.mxu0 %v2441
        %2515 = vmatprep.subr.bf16.mxu0 %v2438
        %2516 = vmatpush1.bf16.msra.mxu0 %v2437
        %2517 = vmatprep.subr.bf16.mxu0 0
        %2518 = vmatpush2.bf16.msra.mxu0 0
        %2519 = vmatprep.subr.bf16.mxu0 0
        %2520 = vmatpush2.bf16.msra.mxu0 0
        %2521 = vmatprep.subr.bf16.mxu0 0
        %2522 = vmatpush2.bf16.msra.mxu0 0
        %2523 = vmatprep.subr.bf16.mxu0 0
        %2524 = vmatpush2.bf16.msra.mxu0 0
        %2525 = vmatprep.subr.bf16.mxu0 0
        %2526 = vmatpush2.bf16.msra.mxu0 0
        %2527 = vmatprep.subr.bf16.mxu0 0
        %2528 = vmatpush2.bf16.msra.mxu0 0
        %2529 = vmatprep.subr.bf16.mxu0 0
        %2530 = vmatpush2.bf16.msra.mxu0 0
        %2531 = vmatprep.subr.bf16.mxu0 0
        %2532 = vmatpush2.bf16.msra.mxu0 0
        %2533 = vmatprep.mubr.bf16.mxu0 0
        %2534 = vmatmul.mubr.bf16.gmra.mxu0 %v2340
        %v2535 = vpop.f32.mrf.mxu0
        %v2536 = vadd.f32 0.0, %v2535
        %v2537 = vpop.f32.mrf.mxu0
        %v2538 = vadd.f32 0.0, %v2537
        %v2539 = vpop.f32.mrf.mxu0
        %v2540 = vpop.f32.mrf.mxu0
        %2541 = vdwg.mxu0
        %2542 = vmatprep.subr.bf16.mxu0 %v2468
        %2543 = vmatpush1.bf16.msra.mxu0 %v2467
        %2544 = vmatprep.subr.bf16.mxu0 %v2464
        %2545 = vmatpush1.bf16.msra.mxu0 %v2463
        %2546 = vmatprep.subr.bf16.mxu0 %v2460
        %2547 = vmatpush1.bf16.msra.mxu0 %v2459
        %2548 = vmatprep.subr.bf16.mxu0 %v2456
        %2549 = vmatpush1.bf16.msra.mxu0 %v2455
        %2550 = vmatprep.subr.bf16.mxu0 %v2452
        %2551 = vmatpush1.bf16.msra.mxu0 %v2451
        %2552 = vmatprep.subr.bf16.mxu0 %v2448
        %2553 = vmatpush1.bf16.msra.mxu0 %v2447
        %2554 = vmatprep.subr.bf16.mxu0 %v2444
        %2555 = vmatpush1.bf16.msra.mxu0 %v2443
        %2556 = vmatprep.subr.bf16.mxu0 %v2440
        %2557 = vmatpush1.bf16.msra.mxu0 %v2439
        %2558 = vmatprep.subr.bf16.mxu0 0
        %2559 = vmatpush2.bf16.msra.mxu0 0
        %2560 = vmatprep.subr.bf16.mxu0 0
        %2561 = vmatpush2.bf16.msra.mxu0 0
        %2562 = vmatprep.subr.bf16.mxu0 0
        %2563 = vmatpush2.bf16.msra.mxu0 0
        %2564 = vmatprep.subr.bf16.mxu0 0
        %2565 = vmatpush2.bf16.msra.mxu0 0
        %2566 = vmatprep.subr.bf16.mxu0 0
        %2567 = vmatpush2.bf16.msra.mxu0 0
        %2568 = vmatprep.subr.bf16.mxu0 0
        %2569 = vmatpush2.bf16.msra.mxu0 0
        %2570 = vmatprep.subr.bf16.mxu0 0
        %2571 = vmatpush2.bf16.msra.mxu0 0
        %2572 = vmatprep.subr.bf16.mxu0 0
        %2573 = vmatpush2.bf16.msra.mxu0 0
        %2574 = vmatprep.mubr.bf16.mxu0 0
        %2575 = vmatmul.mubr.bf16.gmra.mxu0 %v2340
        %v2576 = vpop.f32.mrf.mxu0
        %v2577 = vadd.f32 0.0, %v2576
        %v2578 = vpop.f32.mrf.mxu0
        %v2579 = vadd.f32 0.0, %v2578
        %v2580 = vpop.f32.mrf.mxu0
        %v2581 = vpop.f32.mrf.mxu0
        %2582 = vdwg.mxu0
        %v2583 = vadd.f32 %v2336, %v2536
        %v2584 = vadd.f32 %v2337, %v2538
        %v2585 = vadd.f32 %v2338, %v2577
        %v2586 = vadd.f32 %v2339, %v2579
        %v2587 = vmul.f32 %v2583, 0.5
        %v2588 = vtanh.pop %v2587
        %v2589 = vmul.f32 %v2588, 0.5
        %v2590 = vadd.f32 %v2589, 0.5
        %v2591 = vmul.f32 %v2584, 0.5
        %v2592 = vtanh.pop %v2591
        %v2593 = vmul.f32 %v2592, 0.5
        %v2594 = vadd.f32 %v2593, 0.5
        %v2595 = vtanh.pop %v2585
        %v2596 = vmul.f32 %v2586, 0.5
        %v2597 = vtanh.pop %v2596
        %v2598 = vmul.f32 %v2597, 0.5
        %v2599 = vadd.f32 %v2598, 0.5
        %v2600 = vmul.f32 %v2594, %v2335
        %v2601 = vmul.f32 %v2590, %v2595
        %v2602 = vadd.f32 %v2600, %v2601
        %v2603 = vtanh.pop %v2602
        %v2604 = vmul.f32 %v2599, %v2603
        %v2605 = vpack.c.bf16 %v2604, %v2604
        %2606 = vst [vmem:[#allocation5] sm:$0xf] %v2605
        %v2607 = vld [vmem:[%s1090] sm:$0xff]
        %v2608 = vld [vmem:[%s1090 + $0x8] sm:$0xff]
        %v2609 = vld [vmem:[%s1090 + $0x10] sm:$0xff]
        %v2610 = vld [vmem:[%s1090 + $0x18] sm:$0xff]
        %2611 = vmatprep.subr.bf16.mxu0 %v2466
        %2612 = vmatpush1.bf16.msra.mxu0 %v2465
        %2613 = vmatprep.subr.bf16.mxu0 %v2462
        %2614 = vmatpush1.bf16.msra.mxu0 %v2461
        %2615 = vmatprep.subr.bf16.mxu0 %v2458
        %2616 = vmatpush1.bf16.msra.mxu0 %v2457
        %2617 = vmatprep.subr.bf16.mxu0 %v2454
        %2618 = vmatpush1.bf16.msra.mxu0 %v2453
        %2619 = vmatprep.subr.bf16.mxu0 %v2450
        %2620 = vmatpush1.bf16.msra.mxu0 %v2449
        %2621 = vmatprep.subr.bf16.mxu0 %v2446
        %2622 = vmatpush1.bf16.msra.mxu0 %v2445
        %2623 = vmatprep.subr.bf16.mxu0 %v2442
        %2624 = vmatpush1.bf16.msra.mxu0 %v2441
        %2625 = vmatprep.subr.bf16.mxu0 %v2438
        %2626 = vmatpush1.bf16.msra.mxu0 %v2437
        %2627 = vmatprep.subr.bf16.mxu0 0
        %2628 = vmatpush2.bf16.msra.mxu0 0
        %2629 = vmatprep.subr.bf16.mxu0 0
        %2630 = vmatpush2.bf16.msra.mxu0 0
        %2631 = vmatprep.subr.bf16.mxu0 0
        %2632 = vmatpush2.bf16.msra.mxu0 0
        %2633 = vmatprep.subr.bf16.mxu0 0
        %2634 = vmatpush2.bf16.msra.mxu0 0
        %2635 = vmatprep.subr.bf16.mxu0 0
        %2636 = vmatpush2.bf16.msra.mxu0 0
        %2637 = vmatprep.subr.bf16.mxu0 0
        %2638 = vmatpush2.bf16.msra.mxu0 0
        %2639 = vmatprep.subr.bf16.mxu0 0
        %2640 = vmatpush2.bf16.msra.mxu0 0
        %2641 = vmatprep.subr.bf16.mxu0 0
        %2642 = vmatpush2.bf16.msra.mxu0 0
        %2643 = vmatprep.mubr.bf16.mxu0 0
        %2644 = vmatmul.mubr.bf16.gmra.mxu0 %v2605
        %v2645 = vpop.f32.mrf.mxu0
        %v2646 = vadd.f32 0.0, %v2645
        %v2647 = vpop.f32.mrf.mxu0
        %v2648 = vadd.f32 0.0, %v2647
        %v2649 = vpop.f32.mrf.mxu0
        %v2650 = vpop.f32.mrf.mxu0
        %2651 = vdwg.mxu0
        %2652 = vmatprep.subr.bf16.mxu0 %v2468
        %2653 = vmatpush1.bf16.msra.mxu0 %v2467
        %2654 = vmatprep.subr.bf16.mxu0 %v2464
        %2655 = vmatpush1.bf16.msra.mxu0 %v2463
        %2656 = vmatprep.subr.bf16.mxu0 %v2460
        %2657 = vmatpush1.bf16.msra.mxu0 %v2459
        %2658 = vmatprep.subr.bf16.mxu0 %v2456
        %2659 = vmatpush1.bf16.msra.mxu0 %v2455
        %2660 = vmatprep.subr.bf16.mxu0 %v2452
        %2661 = vmatpush1.bf16.msra.mxu0 %v2451
        %2662 = vmatprep.subr.bf16.mxu0 %v2448
        %2663 = vmatpush1.bf16.msra.mxu0 %v2447
        %2664 = vmatprep.subr.bf16.mxu0 %v2444
        %2665 = vmatpush1.bf16.msra.mxu0 %v2443
        %2666 = vmatprep.subr.bf16.mxu0 %v2440
        %2667 = vmatpush1.bf16.msra.mxu0 %v2439
        %2668 = vmatprep.subr.bf16.mxu0 0
        %2669 = vmatpush2.bf16.msra.mxu0 0
        %2670 = vmatprep.subr.bf16.mxu0 0
        %2671 = vmatpush2.bf16.msra.mxu0 0
        %2672 = vmatprep.subr.bf16.mxu0 0
        %2673 = vmatpush2.bf16.msra.mxu0 0
        %2674 = vmatprep.subr.bf16.mxu0 0
        %2675 = vmatpush2.bf16.msra.mxu0 0
        %2676 = vmatprep.subr.bf16.mxu0 0
        %2677 = vmatpush2.bf16.msra.mxu0 0
        %2678 = vmatprep.subr.bf16.mxu0 0
        %2679 = vmatpush2.bf16.msra.mxu0 0
        %2680 = vmatprep.subr.bf16.mxu0 0
        %2681 = vmatpush2.bf16.msra.mxu0 0
        %2682 = vmatprep.subr.bf16.mxu0 0
        %2683 = vmatpush2.bf16.msra.mxu0 0
        %2684 = vmatprep.mubr.bf16.mxu0 0
        %2685 = vmatmul.mubr.bf16.gmra.mxu0 %v2605
        %v2686 = vpop.f32.mrf.mxu0
        %v2687 = vadd.f32 0.0, %v2686
        %v2688 = vpop.f32.mrf.mxu0
        %v2689 = vadd.f32 0.0, %v2688
        %v2690 = vpop.f32.mrf.mxu0
        %v2691 = vpop.f32.mrf.mxu0
        %2692 = vdwg.mxu0
        %v2693 = vadd.f32 %v2607, %v2646
        %v2694 = vadd.f32 %v2608, %v2648
        %v2695 = vadd.f32 %v2609, %v2687
        %v2696 = vadd.f32 %v2610, %v2689
        %v2697 = vmul.f32 %v2693, 0.5
        %v2698 = vtanh.pop %v2697
        %v2699 = vmul.f32 %v2698, 0.5
        %v2700 = vadd.f32 %v2699, 0.5
        %v2701 = vmul.f32 %v2694, 0.5
        %v2702 = vtanh.pop %v2701
        %v2703 = vmul.f32 %v2702, 0.5
        %v2704 = vadd.f32 %v2703, 0.5
        %v2705 = vtanh.pop %v2695
        %v2706 = vmul.f32 %v2696, 0.5
        %v2707 = vtanh.pop %v2706
        %v2708 = vmul.f32 %v2707, 0.5
        %v2709 = vadd.f32 %v2708, 0.5
        %v2710 = vmul.f32 %v2704, %v2602
        %v2711 = vmul.f32 %v2700, %v2705
        %v2712 = vadd.f32 %v2710, %v2711
        %v2713 = vtanh.pop %v2712
        %v2714 = vmul.f32 %v2709, %v2713
        %v2715 = vpack.c.bf16 %v2714, %v2714
        %2716 = vst [vmem:[%s1200] sm:$0xf] %v2715
        %v2717 = vld [vmem:[%s1202] sm:$0xff]
        %v2718 = vld [vmem:[%s1202 + $0x8] sm:$0xff]
        %v2719 = vld [vmem:[%s1202 + $0x10] sm:$0xff]
        %v2720 = vld [vmem:[%s1202 + $0x18] sm:$0xff]
        %2721 = vmatprep.subr.bf16.mxu0 %v2466
        %2722 = vmatpush1.bf16.msra.mxu0 %v2465
        %2723 = vmatprep.subr.bf16.mxu0 %v2462
        %2724 = vmatpush1.bf16.msra.mxu0 %v2461
        %2725 = vmatprep.subr.bf16.mxu0 %v2458
        %2726 = vmatpush1.bf16.msra.mxu0 %v2457
        %2727 = vmatprep.subr.bf16.mxu0 %v2454
        %2728 = vmatpush1.bf16.msra.mxu0 %v2453
        %2729 = vmatprep.subr.bf16.mxu0 %v2450
        %2730 = vmatpush1.bf16.msra.mxu0 %v2449
        %2731 = vmatprep.subr.bf16.mxu0 %v2446
        %2732 = vmatpush1.bf16.msra.mxu0 %v2445
        %2733 = vmatprep.subr.bf16.mxu0 %v2442
        %2734 = vmatpush1.bf16.msra.mxu0 %v2441
        %2735 = vmatprep.subr.bf16.mxu0 %v2438
        %2736 = vmatpush1.bf16.msra.mxu0 %v2437
        %2737 = vmatprep.subr.bf16.mxu0 0
        %2738 = vmatpush2.bf16.msra.mxu0 0
        %2739 = vmatprep.subr.bf16.mxu0 0
        %2740 = vmatpush2.bf16.msra.mxu0 0
        %2741 = vmatprep.subr.bf16.mxu0 0
        %2742 = vmatpush2.bf16.msra.mxu0 0
        %2743 = vmatprep.subr.bf16.mxu0 0
        %2744 = vmatpush2.bf16.msra.mxu0 0
        %2745 = vmatprep.subr.bf16.mxu0 0
        %2746 = vmatpush2.bf16.msra.mxu0 0
        %2747 = vmatprep.subr.bf16.mxu0 0
        %2748 = vmatpush2.bf16.msra.mxu0 0
        %2749 = vmatprep.subr.bf16.mxu0 0
        %2750 = vmatpush2.bf16.msra.mxu0 0
        %2751 = vmatprep.subr.bf16.mxu0 0
        %2752 = vmatpush2.bf16.msra.mxu0 0
        %2753 = vmatprep.mubr.bf16.mxu0 0
        %2754 = vmatmul.mubr.bf16.gmra.mxu0 %v2715
        %v2755 = vpop.f32.mrf.mxu0
        %v2756 = vadd.f32 0.0, %v2755
        %v2757 = vpop.f32.mrf.mxu0
        %v2758 = vadd.f32 0.0, %v2757
        %v2759 = vpop.f32.mrf.mxu0
        %v2760 = vpop.f32.mrf.mxu0
        %2761 = vdwg.mxu0
        %2762 = vmatprep.subr.bf16.mxu0 %v2468
        %2763 = vmatpush1.bf16.msra.mxu0 %v2467
        %2764 = vmatprep.subr.bf16.mxu0 %v2464
        %2765 = vmatpush1.bf16.msra.mxu0 %v2463
        %2766 = vmatprep.subr.bf16.mxu0 %v2460
        %2767 = vmatpush1.bf16.msra.mxu0 %v2459
        %2768 = vmatprep.subr.bf16.mxu0 %v2456
        %2769 = vmatpush1.bf16.msra.mxu0 %v2455
        %2770 = vmatprep.subr.bf16.mxu0 %v2452
        %2771 = vmatpush1.bf16.msra.mxu0 %v2451
        %2772 = vmatprep.subr.bf16.mxu0 %v2448
        %2773 = vmatpush1.bf16.msra.mxu0 %v2447
        %2774 = vmatprep.subr.bf16.mxu0 %v2444
        %2775 = vmatpush1.bf16.msra.mxu0 %v2443
        %2776 = vmatprep.subr.bf16.mxu0 %v2440
        %2777 = vmatpush1.bf16.msra.mxu0 %v2439
        %2778 = vmatprep.subr.bf16.mxu0 0
        %2779 = vmatpush2.bf16.msra.mxu0 0
        %2780 = vmatprep.subr.bf16.mxu0 0
        %2781 = vmatpush2.bf16.msra.mxu0 0
        %2782 = vmatprep.subr.bf16.mxu0 0
        %2783 = vmatpush2.bf16.msra.mxu0 0
        %2784 = vmatprep.subr.bf16.mxu0 0
        %2785 = vmatpush2.bf16.msra.mxu0 0
        %2786 = vmatprep.subr.bf16.mxu0 0
        %2787 = vmatpush2.bf16.msra.mxu0 0
        %2788 = vmatprep.subr.bf16.mxu0 0
        %2789 = vmatpush2.bf16.msra.mxu0 0
        %2790 = vmatprep.subr.bf16.mxu0 0
        %2791 = vmatpush2.bf16.msra.mxu0 0
        %2792 = vmatprep.subr.bf16.mxu0 0
        %2793 = vmatpush2.bf16.msra.mxu0 0
        %2794 = vmatprep.mubr.bf16.mxu0 0
        %2795 = vmatmul.mubr.bf16.gmra.mxu0 %v2715
        %v2796 = vpop.f32.mrf.mxu0
        %v2797 = vadd.f32 0.0, %v2796
        %v2798 = vpop.f32.mrf.mxu0
        %v2799 = vadd.f32 0.0, %v2798
        %v2800 = vpop.f32.mrf.mxu0
        %v2801 = vpop.f32.mrf.mxu0
        %2802 = vdwg.mxu0
        %v2803 = vadd.f32 %v2717, %v2756
        %v2804 = vadd.f32 %v2718, %v2758
        %v2805 = vadd.f32 %v2719, %v2797
        %v2806 = vadd.f32 %v2720, %v2799
        %v2807 = vmul.f32 %v2803, 0.5
        %v2808 = vtanh.pop %v2807
        %v2809 = vmul.f32 %v2808, 0.5
        %v2810 = vadd.f32 %v2809, 0.5
        %v2811 = vmul.f32 %v2804, 0.5
        %v2812 = vtanh.pop %v2811
        %v2813 = vmul.f32 %v2812, 0.5
        %v2814 = vadd.f32 %v2813, 0.5
        %v2815 = vtanh.pop %v2805
        %v2816 = vmul.f32 %v2806, 0.5
        %v2817 = vtanh.pop %v2816
        %v2818 = vmul.f32 %v2817, 0.5
        %v2819 = vadd.f32 %v2818, 0.5
        %v2820 = vmul.f32 %v2814, %v2712
        %v2821 = vmul.f32 %v2810, %v2815
        %v2822 = vadd.f32 %v2820, %v2821
        %v2823 = vtanh.pop %v2822
        %v2824 = vmul.f32 %v2819, %v2823
        %v2825 = vpack.c.bf16 %v2824, %v2824
        %2826 = vst [vmem:[%s1312] sm:$0xf] %v2825
        %v2827 = vld [vmem:[%s1314] sm:$0xff]
        %v2828 = vld [vmem:[%s1314 + $0x8] sm:$0xff]
        %v2829 = vld [vmem:[%s1314 + $0x10] sm:$0xff]
        %v2830 = vld [vmem:[%s1314 + $0x18] sm:$0xff]
        %2831 = vmatprep.subr.bf16.mxu0 %v2466
        %2832 = vmatpush1.bf16.msra.mxu0 %v2465
        %2833 = vmatprep.subr.bf16.mxu0 %v2462
        %2834 = vmatpush1.bf16.msra.mxu0 %v2461
        %2835 = vmatprep.subr.bf16.mxu0 %v2458
        %2836 = vmatpush1.bf16.msra.mxu0 %v2457
        %2837 = vmatprep.subr.bf16.mxu0 %v2454
        %2838 = vmatpush1.bf16.msra.mxu0 %v2453
        %2839 = vmatprep.subr.bf16.mxu0 %v2450
        %2840 = vmatpush1.bf16.msra.mxu0 %v2449
        %2841 = vmatprep.subr.bf16.mxu0 %v2446
        %2842 = vmatpush1.bf16.msra.mxu0 %v2445
        %2843 = vmatprep.subr.bf16.mxu0 %v2442
        %2844 = vmatpush1.bf16.msra.mxu0 %v2441
        %2845 = vmatprep.subr.bf16.mxu0 %v2438
        %2846 = vmatpush1.bf16.msra.mxu0 %v2437
        %2847 = vmatprep.subr.bf16.mxu0 0
        %2848 = vmatpush2.bf16.msra.mxu0 0
        %2849 = vmatprep.subr.bf16.mxu0 0
        %2850 = vmatpush2.bf16.msra.mxu0 0
        %2851 = vmatprep.subr.bf16.mxu0 0
        %2852 = vmatpush2.bf16.msra.mxu0 0
        %2853 = vmatprep.subr.bf16.mxu0 0
        %2854 = vmatpush2.bf16.msra.mxu0 0
        %2855 = vmatprep.subr.bf16.mxu0 0
        %2856 = vmatpush2.bf16.msra.mxu0 0
        %2857 = vmatprep.subr.bf16.mxu0 0
        %2858 = vmatpush2.bf16.msra.mxu0 0
        %2859 = vmatprep.subr.bf16.mxu0 0
        %2860 = vmatpush2.bf16.msra.mxu0 0
        %2861 = vmatprep.subr.bf16.mxu0 0
        %2862 = vmatpush2.bf16.msra.mxu0 0
        %2863 = vmatprep.mubr.bf16.mxu0 0
        %2864 = vmatmul.mubr.bf16.gmra.mxu0 %v2825
        %v2865 = vpop.f32.mrf.mxu0
        %v2866 = vadd.f32 0.0, %v2865
        %v2867 = vpop.f32.mrf.mxu0
        %v2868 = vadd.f32 0.0, %v2867
        %v2869 = vpop.f32.mrf.mxu0
        %v2870 = vpop.f32.mrf.mxu0
        %2871 = vdwg.mxu0
        %2872 = vmatprep.subr.bf16.mxu0 %v2468
        %2873 = vmatpush1.bf16.msra.mxu0 %v2467
        %2874 = vmatprep.subr.bf16.mxu0 %v2464
        %2875 = vmatpush1.bf16.msra.mxu0 %v2463
        %2876 = vmatprep.subr.bf16.mxu0 %v2460
        %2877 = vmatpush1.bf16.msra.mxu0 %v2459
        %2878 = vmatprep.subr.bf16.mxu0 %v2456
        %2879 = vmatpush1.bf16.msra.mxu0 %v2455
        %2880 = vmatprep.subr.bf16.mxu0 %v2452
        %2881 = vmatpush1.bf16.msra.mxu0 %v2451
        %2882 = vmatprep.subr.bf16.mxu0 %v2448
        %2883 = vmatpush1.bf16.msra.mxu0 %v2447
        %2884 = vmatprep.subr.bf16.mxu0 %v2444
        %2885 = vmatpush1.bf16.msra.mxu0 %v2443
        %2886 = vmatprep.subr.bf16.mxu0 %v2440
        %2887 = vmatpush1.bf16.msra.mxu0 %v2439
        %2888 = vmatprep.subr.bf16.mxu0 0
        %2889 = vmatpush2.bf16.msra.mxu0 0
        %2890 = vmatprep.subr.bf16.mxu0 0
        %2891 = vmatpush2.bf16.msra.mxu0 0
        %2892 = vmatprep.subr.bf16.mxu0 0
        %2893 = vmatpush2.bf16.msra.mxu0 0
        %2894 = vmatprep.subr.bf16.mxu0 0
        %2895 = vmatpush2.bf16.msra.mxu0 0
        %2896 = vmatprep.subr.bf16.mxu0 0
        %2897 = vmatpush2.bf16.msra.mxu0 0
        %2898 = vmatprep.subr.bf16.mxu0 0
        %2899 = vmatpush2.bf16.msra.mxu0 0
        %2900 = vmatprep.subr.bf16.mxu0 0
        %2901 = vmatpush2.bf16.msra.mxu0 0
        %2902 = vmatprep.subr.bf16.mxu0 0
        %2903 = vmatpush2.bf16.msra.mxu0 0
        %2904 = vmatprep.mubr.bf16.mxu0 0
        %2905 = vmatmul.mubr.bf16.gmra.mxu0 %v2825
        %v2906 = vpop.f32.mrf.mxu0
        %v2907 = vadd.f32 0.0, %v2906
        %v2908 = vpop.f32.mrf.mxu0
        %v2909 = vadd.f32 0.0, %v2908
        %v2910 = vpop.f32.mrf.mxu0
        %v2911 = vpop.f32.mrf.mxu0
        %2912 = vdwg.mxu0
        %v2913 = vadd.f32 %v2827, %v2866
        %v2914 = vadd.f32 %v2828, %v2868
        %v2915 = vadd.f32 %v2829, %v2907
        %v2916 = vadd.f32 %v2830, %v2909
        %v2917 = vmul.f32 %v2913, 0.5
        %v2918 = vtanh.pop %v2917
        %v2919 = vmul.f32 %v2918, 0.5
        %v2920 = vadd.f32 %v2919, 0.5
        %v2921 = vmul.f32 %v2914, 0.5
        %v2922 = vtanh.pop %v2921
        %v2923 = vmul.f32 %v2922, 0.5
        %v2924 = vadd.f32 %v2923, 0.5
        %v2925 = vtanh.pop %v2915
        %v2926 = vmul.f32 %v2916, 0.5
        %v2927 = vtanh.pop %v2926
        %v2928 = vmul.f32 %v2927, 0.5
        %v2929 = vadd.f32 %v2928, 0.5
        %v2930 = vmul.f32 %v2924, %v2822
        %v2931 = vmul.f32 %v2920, %v2925
        %v2932 = vadd.f32 %v2930, %v2931
        %v2933 = vtanh.pop %v2932
        %v2934 = vmul.f32 %v2929, %v2933
        %v2935 = vpack.c.bf16 %v2934, %v2934
        %2936 = vst [vmem:[%s1424] sm:$0xf] %v2935
        %v2937 = vld [vmem:[%s1426] sm:$0xff]
        %v2938 = vld [vmem:[%s1426 + $0x8] sm:$0xff]
        %v2939 = vld [vmem:[%s1426 + $0x10] sm:$0xff]
        %v2940 = vld [vmem:[%s1426 + $0x18] sm:$0xff]
        %2941 = vmatprep.subr.bf16.mxu0 %v2466
        %2942 = vmatpush1.bf16.msra.mxu0 %v2465
        %2943 = vmatprep.subr.bf16.mxu0 %v2462
        %2944 = vmatpush1.bf16.msra.mxu0 %v2461
        %2945 = vmatprep.subr.bf16.mxu0 %v2458
        %2946 = vmatpush1.bf16.msra.mxu0 %v2457
        %2947 = vmatprep.subr.bf16.mxu0 %v2454
        %2948 = vmatpush1.bf16.msra.mxu0 %v2453
        %2949 = vmatprep.subr.bf16.mxu0 %v2450
        %2950 = vmatpush1.bf16.msra.mxu0 %v2449
        %2951 = vmatprep.subr.bf16.mxu0 %v2446
        %2952 = vmatpush1.bf16.msra.mxu0 %v2445
        %2953 = vmatprep.subr.bf16.mxu0 %v2442
        %2954 = vmatpush1.bf16.msra.mxu0 %v2441
        %2955 = vmatprep.subr.bf16.mxu0 %v2438
        %2956 = vmatpush1.bf16.msra.mxu0 %v2437
        %2957 = vmatprep.subr.bf16.mxu0 0
        %2958 = vmatpush2.bf16.msra.mxu0 0
        %2959 = vmatprep.subr.bf16.mxu0 0
        %2960 = vmatpush2.bf16.msra.mxu0 0
        %2961 = vmatprep.subr.bf16.mxu0 0
        %2962 = vmatpush2.bf16.msra.mxu0 0
        %2963 = vmatprep.subr.bf16.mxu0 0
        %2964 = vmatpush2.bf16.msra.mxu0 0
        %2965 = vmatprep.subr.bf16.mxu0 0
        %2966 = vmatpush2.bf16.msra.mxu0 0
        %2967 = vmatprep.subr.bf16.mxu0 0
        %2968 = vmatpush2.bf16.msra.mxu0 0
        %2969 = vmatprep.subr.bf16.mxu0 0
        %2970 = vmatpush2.bf16.msra.mxu0 0
        %2971 = vmatprep.subr.bf16.mxu0 0
        %2972 = vmatpush2.bf16.msra.mxu0 0
        %2973 = vmatprep.mubr.bf16.mxu0 0
        %2974 = vmatmul.mubr.bf16.gmra.mxu0 %v2935
        %v2975 = vpop.f32.mrf.mxu0
        %v2976 = vadd.f32 0.0, %v2975
        %v2977 = vpop.f32.mrf.mxu0
        %v2978 = vadd.f32 0.0, %v2977
        %v2979 = vpop.f32.mrf.mxu0
        %v2980 = vpop.f32.mrf.mxu0
        %2981 = vdwg.mxu0
        %2982 = vmatprep.subr.bf16.mxu0 %v2468
        %2983 = vmatpush1.bf16.msra.mxu0 %v2467
        %2984 = vmatprep.subr.bf16.mxu0 %v2464
        %2985 = vmatpush1.bf16.msra.mxu0 %v2463
        %2986 = vmatprep.subr.bf16.mxu0 %v2460
        %2987 = vmatpush1.bf16.msra.mxu0 %v2459
        %2988 = vmatprep.subr.bf16.mxu0 %v2456
        %2989 = vmatpush1.bf16.msra.mxu0 %v2455
        %2990 = vmatprep.subr.bf16.mxu0 %v2452
        %2991 = vmatpush1.bf16.msra.mxu0 %v2451
        %2992 = vmatprep.subr.bf16.mxu0 %v2448
        %2993 = vmatpush1.bf16.msra.mxu0 %v2447
        %2994 = vmatprep.subr.bf16.mxu0 %v2444
        %2995 = vmatpush1.bf16.msra.mxu0 %v2443
        %2996 = vmatprep.subr.bf16.mxu0 %v2440
        %2997 = vmatpush1.bf16.msra.mxu0 %v2439
        %2998 = vmatprep.subr.bf16.mxu0 0
        %2999 = vmatpush2.bf16.msra.mxu0 0
        %3000 = vmatprep.subr.bf16.mxu0 0
        %3001 = vmatpush2.bf16.msra.mxu0 0
        %3002 = vmatprep.subr.bf16.mxu0 0
        %3003 = vmatpush2.bf16.msra.mxu0 0
        %3004 = vmatprep.subr.bf16.mxu0 0
        %3005 = vmatpush2.bf16.msra.mxu0 0
        %3006 = vmatprep.subr.bf16.mxu0 0
        %3007 = vmatpush2.bf16.msra.mxu0 0
        %3008 = vmatprep.subr.bf16.mxu0 0
        %3009 = vmatpush2.bf16.msra.mxu0 0
        %3010 = vmatprep.subr.bf16.mxu0 0
        %3011 = vmatpush2.bf16.msra.mxu0 0
        %3012 = vmatprep.subr.bf16.mxu0 0
        %3013 = vmatpush2.bf16.msra.mxu0 0
        %3014 = vmatprep.mubr.bf16.mxu0 0
        %3015 = vmatmul.mubr.bf16.gmra.mxu0 %v2935
        %v3016 = vpop.f32.mrf.mxu0
        %v3017 = vadd.f32 0.0, %v3016
        %v3018 = vpop.f32.mrf.mxu0
        %v3019 = vadd.f32 0.0, %v3018
        %v3020 = vpop.f32.mrf.mxu0
        %v3021 = vpop.f32.mrf.mxu0
        %3022 = vdwg.mxu0
        %v3023 = vadd.f32 %v2937, %v2976
        %v3024 = vadd.f32 %v2938, %v2978
        %v3025 = vadd.f32 %v2939, %v3017
        %v3026 = vadd.f32 %v2940, %v3019
        %v3027 = vmul.f32 %v3023, 0.5
        %v3028 = vtanh.pop %v3027
        %v3029 = vmul.f32 %v3028, 0.5
        %v3030 = vadd.f32 %v3029, 0.5
        %v3031 = vmul.f32 %v3024, 0.5
        %v3032 = vtanh.pop %v3031
        %v3033 = vmul.f32 %v3032, 0.5
        %v3034 = vadd.f32 %v3033, 0.5
        %v3035 = vtanh.pop %v3025
        %v3036 = vmul.f32 %v3026, 0.5
        %v3037 = vtanh.pop %v3036
        %v3038 = vmul.f32 %v3037, 0.5
        %v3039 = vadd.f32 %v3038, 0.5
        %v3040 = vmul.f32 %v3034, %v2932
        %v3041 = vmul.f32 %v3030, %v3035
        %v3042 = vadd.f32 %v3040, %v3041
        %v3043 = vtanh.pop %v3042
        %v3044 = vmul.f32 %v3039, %v3043
        %v3045 = vpack.c.bf16 %v3044, %v3044
        %3046 = vst [vmem:[%s1536] sm:$0xf] %v3045
        %v3047 = vld [vmem:[%s1538] sm:$0xff]
        %v3048 = vld [vmem:[%s1538 + $0x8] sm:$0xff]
        %v3049 = vld [vmem:[%s1538 + $0x10] sm:$0xff]
        %v3050 = vld [vmem:[%s1538 + $0x18] sm:$0xff]
        %3051 = vmatprep.subr.bf16.mxu0 %v2466
        %3052 = vmatpush1.bf16.msra.mxu0 %v2465
        %3053 = vmatprep.subr.bf16.mxu0 %v2462
        %3054 = vmatpush1.bf16.msra.mxu0 %v2461
        %3055 = vmatprep.subr.bf16.mxu0 %v2458
        %3056 = vmatpush1.bf16.msra.mxu0 %v2457
        %3057 = vmatprep.subr.bf16.mxu0 %v2454
        %3058 = vmatpush1.bf16.msra.mxu0 %v2453
        %3059 = vmatprep.subr.bf16.mxu0 %v2450
        %3060 = vmatpush1.bf16.msra.mxu0 %v2449
        %3061 = vmatprep.subr.bf16.mxu0 %v2446
        %3062 = vmatpush1.bf16.msra.mxu0 %v2445
        %3063 = vmatprep.subr.bf16.mxu0 %v2442
        %3064 = vmatpush1.bf16.msra.mxu0 %v2441
        %3065 = vmatprep.subr.bf16.mxu0 %v2438
        %3066 = vmatpush1.bf16.msra.mxu0 %v2437
        %3067 = vmatprep.subr.bf16.mxu0 0
        %3068 = vmatpush2.bf16.msra.mxu0 0
        %3069 = vmatprep.subr.bf16.mxu0 0
        %3070 = vmatpush2.bf16.msra.mxu0 0
        %3071 = vmatprep.subr.bf16.mxu0 0
        %3072 = vmatpush2.bf16.msra.mxu0 0
        %3073 = vmatprep.subr.bf16.mxu0 0
        %3074 = vmatpush2.bf16.msra.mxu0 0
        %3075 = vmatprep.subr.bf16.mxu0 0
        %3076 = vmatpush2.bf16.msra.mxu0 0
        %3077 = vmatprep.subr.bf16.mxu0 0
        %3078 = vmatpush2.bf16.msra.mxu0 0
        %3079 = vmatprep.subr.bf16.mxu0 0
        %3080 = vmatpush2.bf16.msra.mxu0 0
        %3081 = vmatprep.subr.bf16.mxu0 0
        %3082 = vmatpush2.bf16.msra.mxu0 0
        %3083 = vmatprep.mubr.bf16.mxu0 0
        %3084 = vmatmul.mubr.bf16.gmra.mxu0 %v3045
        %v3085 = vpop.f32.mrf.mxu0
        %v3086 = vadd.f32 0.0, %v3085
        %v3087 = vpop.f32.mrf.mxu0
        %v3088 = vadd.f32 0.0, %v3087
        %v3089 = vpop.f32.mrf.mxu0
        %v3090 = vpop.f32.mrf.mxu0
        %3091 = vdwg.mxu0
        %3092 = vmatprep.subr.bf16.mxu0 %v2468
        %3093 = vmatpush1.bf16.msra.mxu0 %v2467
        %3094 = vmatprep.subr.bf16.mxu0 %v2464
        %3095 = vmatpush1.bf16.msra.mxu0 %v2463
        %3096 = vmatprep.subr.bf16.mxu0 %v2460
        %3097 = vmatpush1.bf16.msra.mxu0 %v2459
        %3098 = vmatprep.subr.bf16.mxu0 %v2456
        %3099 = vmatpush1.bf16.msra.mxu0 %v2455
        %3100 = vmatprep.subr.bf16.mxu0 %v2452
        %3101 = vmatpush1.bf16.msra.mxu0 %v2451
        %3102 = vmatprep.subr.bf16.mxu0 %v2448
        %3103 = vmatpush1.bf16.msra.mxu0 %v2447
        %3104 = vmatprep.subr.bf16.mxu0 %v2444
        %3105 = vmatpush1.bf16.msra.mxu0 %v2443
        %3106 = vmatprep.subr.bf16.mxu0 %v2440
        %3107 = vmatpush1.bf16.msra.mxu0 %v2439
        %3108 = vmatprep.subr.bf16.mxu0 0
        %3109 = vmatpush2.bf16.msra.mxu0 0
        %3110 = vmatprep.subr.bf16.mxu0 0
        %3111 = vmatpush2.bf16.msra.mxu0 0
        %3112 = vmatprep.subr.bf16.mxu0 0
        %3113 = vmatpush2.bf16.msra.mxu0 0
        %3114 = vmatprep.subr.bf16.mxu0 0
        %3115 = vmatpush2.bf16.msra.mxu0 0
        %3116 = vmatprep.subr.bf16.mxu0 0
        %3117 = vmatpush2.bf16.msra.mxu0 0
        %3118 = vmatprep.subr.bf16.mxu0 0
        %3119 = vmatpush2.bf16.msra.mxu0 0
        %3120 = vmatprep.subr.bf16.mxu0 0
        %3121 = vmatpush2.bf16.msra.mxu0 0
        %3122 = vmatprep.subr.bf16.mxu0 0
        %3123 = vmatpush2.bf16.msra.mxu0 0
        %3124 = vmatprep.mubr.bf16.mxu0 0
        %3125 = vmatmul.mubr.bf16.gmra.mxu0 %v3045
        %v3126 = vpop.f32.mrf.mxu0
        %v3127 = vadd.f32 0.0, %v3126
        %v3128 = vpop.f32.mrf.mxu0
        %v3129 = vadd.f32 0.0, %v3128
        %v3130 = vpop.f32.mrf.mxu0
        %v3131 = vpop.f32.mrf.mxu0
        %3132 = vdwg.mxu0
        %v3133 = vadd.f32 %v3047, %v3086
        %v3134 = vadd.f32 %v3048, %v3088
        %v3135 = vadd.f32 %v3049, %v3127
        %v3136 = vadd.f32 %v3050, %v3129
        %v3137 = vmul.f32 %v3133, 0.5
        %v3138 = vtanh.pop %v3137
        %v3139 = vmul.f32 %v3138, 0.5
        %v3140 = vadd.f32 %v3139, 0.5
        %v3141 = vmul.f32 %v3134, 0.5
        %v3142 = vtanh.pop %v3141
        %v3143 = vmul.f32 %v3142, 0.5
        %v3144 = vadd.f32 %v3143, 0.5
        %v3145 = vtanh.pop %v3135
        %v3146 = vmul.f32 %v3136, 0.5
        %v3147 = vtanh.pop %v3146
        %v3148 = vmul.f32 %v3147, 0.5
        %v3149 = vadd.f32 %v3148, 0.5
        %v3150 = vmul.f32 %v3144, %v3042
        %v3151 = vmul.f32 %v3140, %v3145
        %v3152 = vadd.f32 %v3150, %v3151
        %v3153 = vtanh.pop %v3152
        %v3154 = vmul.f32 %v3149, %v3153
        %v3155 = vpack.c.bf16 %v3154, %v3154
        %3156 = vst [vmem:[%s1648] sm:$0xf] %v3155
        %v3157 = vld [vmem:[%s1650] sm:$0xff]
        %v3158 = vld [vmem:[%s1650 + $0x8] sm:$0xff]
        %v3159 = vld [vmem:[%s1650 + $0x10] sm:$0xff]
        %v3160 = vld [vmem:[%s1650 + $0x18] sm:$0xff]
        %3161 = vmatprep.subr.bf16.mxu0 %v2466
        %3162 = vmatpush1.bf16.msra.mxu0 %v2465
        %3163 = vmatprep.subr.bf16.mxu0 %v2462
        %3164 = vmatpush1.bf16.msra.mxu0 %v2461
        %3165 = vmatprep.subr.bf16.mxu0 %v2458
        %3166 = vmatpush1.bf16.msra.mxu0 %v2457
        %3167 = vmatprep.subr.bf16.mxu0 %v2454
        %3168 = vmatpush1.bf16.msra.mxu0 %v2453
        %3169 = vmatprep.subr.bf16.mxu0 %v2450
        %3170 = vmatpush1.bf16.msra.mxu0 %v2449
        %3171 = vmatprep.subr.bf16.mxu0 %v2446
        %3172 = vmatpush1.bf16.msra.mxu0 %v2445
        %3173 = vmatprep.subr.bf16.mxu0 %v2442
        %3174 = vmatpush1.bf16.msra.mxu0 %v2441
        %3175 = vmatprep.subr.bf16.mxu0 %v2438
        %3176 = vmatpush1.bf16.msra.mxu0 %v2437
        %3177 = vmatprep.subr.bf16.mxu0 0
        %3178 = vmatpush2.bf16.msra.mxu0 0
        %3179 = vmatprep.subr.bf16.mxu0 0
        %3180 = vmatpush2.bf16.msra.mxu0 0
        %3181 = vmatprep.subr.bf16.mxu0 0
        %3182 = vmatpush2.bf16.msra.mxu0 0
        %3183 = vmatprep.subr.bf16.mxu0 0
        %3184 = vmatpush2.bf16.msra.mxu0 0
        %3185 = vmatprep.subr.bf16.mxu0 0
        %3186 = vmatpush2.bf16.msra.mxu0 0
        %3187 = vmatprep.subr.bf16.mxu0 0
        %3188 = vmatpush2.bf16.msra.mxu0 0
        %3189 = vmatprep.subr.bf16.mxu0 0
        %3190 = vmatpush2.bf16.msra.mxu0 0
        %3191 = vmatprep.subr.bf16.mxu0 0
        %3192 = vmatpush2.bf16.msra.mxu0 0
        %3193 = vmatprep.mubr.bf16.mxu0 0
        %3194 = vmatmul.mubr.bf16.gmra.mxu0 %v3155
        %v3195 = vpop.f32.mrf.mxu0
        %v3196 = vadd.f32 0.0, %v3195
        %v3197 = vpop.f32.mrf.mxu0
        %v3198 = vadd.f32 0.0, %v3197
        %v3199 = vpop.f32.mrf.mxu0
        %v3200 = vpop.f32.mrf.mxu0
        %3201 = vdwg.mxu0
        %3202 = vmatprep.subr.bf16.mxu0 %v2468
        %3203 = vmatpush1.bf16.msra.mxu0 %v2467
        %3204 = vmatprep.subr.bf16.mxu0 %v2464
        %3205 = vmatpush1.bf16.msra.mxu0 %v2463
        %3206 = vmatprep.subr.bf16.mxu0 %v2460
        %3207 = vmatpush1.bf16.msra.mxu0 %v2459
        %3208 = vmatprep.subr.bf16.mxu0 %v2456
        %3209 = vmatpush1.bf16.msra.mxu0 %v2455
        %3210 = vmatprep.subr.bf16.mxu0 %v2452
        %3211 = vmatpush1.bf16.msra.mxu0 %v2451
        %3212 = vmatprep.subr.bf16.mxu0 %v2448
        %3213 = vmatpush1.bf16.msra.mxu0 %v2447
        %3214 = vmatprep.subr.bf16.mxu0 %v2444
        %3215 = vmatpush1.bf16.msra.mxu0 %v2443
        %3216 = vmatprep.subr.bf16.mxu0 %v2440
        %3217 = vmatpush1.bf16.msra.mxu0 %v2439
        %3218 = vmatprep.subr.bf16.mxu0 0
        %3219 = vmatpush2.bf16.msra.mxu0 0
        %3220 = vmatprep.subr.bf16.mxu0 0
        %3221 = vmatpush2.bf16.msra.mxu0 0
        %3222 = vmatprep.subr.bf16.mxu0 0
        %3223 = vmatpush2.bf16.msra.mxu0 0
        %3224 = vmatprep.subr.bf16.mxu0 0
        %3225 = vmatpush2.bf16.msra.mxu0 0
        %3226 = vmatprep.subr.bf16.mxu0 0
        %3227 = vmatpush2.bf16.msra.mxu0 0
        %3228 = vmatprep.subr.bf16.mxu0 0
        %3229 = vmatpush2.bf16.msra.mxu0 0
        %3230 = vmatprep.subr.bf16.mxu0 0
        %3231 = vmatpush2.bf16.msra.mxu0 0
        %3232 = vmatprep.subr.bf16.mxu0 0
        %3233 = vmatpush2.bf16.msra.mxu0 0
        %3234 = vmatprep.mubr.bf16.mxu0 0
        %3235 = vmatmul.mubr.bf16.gmra.mxu0 %v3155
        %v3236 = vpop.f32.mrf.mxu0
        %v3237 = vadd.f32 0.0, %v3236
        %v3238 = vpop.f32.mrf.mxu0
        %v3239 = vadd.f32 0.0, %v3238
        %v3240 = vpop.f32.mrf.mxu0
        %v3241 = vpop.f32.mrf.mxu0
        %3242 = vdwg.mxu0
        %v3243 = vadd.f32 %v3157, %v3196
        %v3244 = vadd.f32 %v3158, %v3198
        %v3245 = vadd.f32 %v3159, %v3237
        %v3246 = vadd.f32 %v3160, %v3239
        %v3247 = vmul.f32 %v3243, 0.5
        %v3248 = vtanh.pop %v3247
        %v3249 = vmul.f32 %v3248, 0.5
        %v3250 = vadd.f32 %v3249, 0.5
        %v3251 = vmul.f32 %v3244, 0.5
        %v3252 = vtanh.pop %v3251
        %v3253 = vmul.f32 %v3252, 0.5
        %v3254 = vadd.f32 %v3253, 0.5
        %v3255 = vtanh.pop %v3245
        %v3256 = vmul.f32 %v3246, 0.5
        %v3257 = vtanh.pop %v3256
        %v3258 = vmul.f32 %v3257, 0.5
        %v3259 = vadd.f32 %v3258, 0.5
        %v3260 = vmul.f32 %v3254, %v3152
        %v3261 = vmul.f32 %v3250, %v3255
        %v3262 = vadd.f32 %v3260, %v3261
        %v3263 = vtanh.pop %v3262
        %v3264 = vmul.f32 %v3259, %v3263
        %v3265 = vpack.c.bf16 %v3264, %v3264
        %3266 = vst [vmem:[%s1760] sm:$0xf] %v3265
        %v3267 = vld [vmem:[%s1762] sm:$0xff]
        %v3268 = vld [vmem:[%s1762 + $0x8] sm:$0xff]
        %v3269 = vld [vmem:[%s1762 + $0x10] sm:$0xff]
        %v3270 = vld [vmem:[%s1762 + $0x18] sm:$0xff]
        %3271 = vmatprep.subr.bf16.mxu0 %v2466
        %3272 = vmatpush1.bf16.msra.mxu0 %v2465
        %3273 = vmatprep.subr.bf16.mxu0 %v2462
        %3274 = vmatpush1.bf16.msra.mxu0 %v2461
        %3275 = vmatprep.subr.bf16.mxu0 %v2458
        %3276 = vmatpush1.bf16.msra.mxu0 %v2457
        %3277 = vmatprep.subr.bf16.mxu0 %v2454
        %3278 = vmatpush1.bf16.msra.mxu0 %v2453
        %3279 = vmatprep.subr.bf16.mxu0 %v2450
        %3280 = vmatpush1.bf16.msra.mxu0 %v2449
        %3281 = vmatprep.subr.bf16.mxu0 %v2446
        %3282 = vmatpush1.bf16.msra.mxu0 %v2445
        %3283 = vmatprep.subr.bf16.mxu0 %v2442
        %3284 = vmatpush1.bf16.msra.mxu0 %v2441
        %3285 = vmatprep.subr.bf16.mxu0 %v2438
        %3286 = vmatpush1.bf16.msra.mxu0 %v2437
        %3287 = vmatprep.subr.bf16.mxu0 0
        %3288 = vmatpush2.bf16.msra.mxu0 0
        %3289 = vmatprep.subr.bf16.mxu0 0
        %3290 = vmatpush2.bf16.msra.mxu0 0
        %3291 = vmatprep.subr.bf16.mxu0 0
        %3292 = vmatpush2.bf16.msra.mxu0 0
        %3293 = vmatprep.subr.bf16.mxu0 0
        %3294 = vmatpush2.bf16.msra.mxu0 0
        %3295 = vmatprep.subr.bf16.mxu0 0
        %3296 = vmatpush2.bf16.msra.mxu0 0
        %3297 = vmatprep.subr.bf16.mxu0 0
        %3298 = vmatpush2.bf16.msra.mxu0 0
        %3299 = vmatprep.subr.bf16.mxu0 0
        %3300 = vmatpush2.bf16.msra.mxu0 0
        %3301 = vmatprep.subr.bf16.mxu0 0
        %3302 = vmatpush2.bf16.msra.mxu0 0
        %3303 = vmatprep.mubr.bf16.mxu0 0
        %3304 = vmatmul.mubr.bf16.gmra.mxu0 %v3265
        %v3305 = vpop.f32.mrf.mxu0
        %v3306 = vadd.f32 0.0, %v3305
        %v3307 = vpop.f32.mrf.mxu0
        %v3308 = vadd.f32 0.0, %v3307
        %v3309 = vpop.f32.mrf.mxu0
        %v3310 = vpop.f32.mrf.mxu0
        %3311 = vdwg.mxu0
        %3312 = vmatprep.subr.bf16.mxu0 %v2468
        %3313 = vmatpush1.bf16.msra.mxu0 %v2467
        %3314 = vmatprep.subr.bf16.mxu0 %v2464
        %3315 = vmatpush1.bf16.msra.mxu0 %v2463
        %3316 = vmatprep.subr.bf16.mxu0 %v2460
        %3317 = vmatpush1.bf16.msra.mxu0 %v2459
        %3318 = vmatprep.subr.bf16.mxu0 %v2456
        %3319 = vmatpush1.bf16.msra.mxu0 %v2455
        %3320 = vmatprep.subr.bf16.mxu0 %v2452
        %3321 = vmatpush1.bf16.msra.mxu0 %v2451
        %3322 = vmatprep.subr.bf16.mxu0 %v2448
        %3323 = vmatpush1.bf16.msra.mxu0 %v2447
        %3324 = vmatprep.subr.bf16.mxu0 %v2444
        %3325 = vmatpush1.bf16.msra.mxu0 %v2443
        %3326 = vmatprep.subr.bf16.mxu0 %v2440
        %3327 = vmatpush1.bf16.msra.mxu0 %v2439
        %3328 = vmatprep.subr.bf16.mxu0 0
        %3329 = vmatpush2.bf16.msra.mxu0 0
        %3330 = vmatprep.subr.bf16.mxu0 0
        %3331 = vmatpush2.bf16.msra.mxu0 0
        %3332 = vmatprep.subr.bf16.mxu0 0
        %3333 = vmatpush2.bf16.msra.mxu0 0
        %3334 = vmatprep.subr.bf16.mxu0 0
        %3335 = vmatpush2.bf16.msra.mxu0 0
        %3336 = vmatprep.subr.bf16.mxu0 0
        %3337 = vmatpush2.bf16.msra.mxu0 0
        %3338 = vmatprep.subr.bf16.mxu0 0
        %3339 = vmatpush2.bf16.msra.mxu0 0
        %3340 = vmatprep.subr.bf16.mxu0 0
        %3341 = vmatpush2.bf16.msra.mxu0 0
        %3342 = vmatprep.subr.bf16.mxu0 0
        %3343 = vmatpush2.bf16.msra.mxu0 0
        %3344 = vmatprep.mubr.bf16.mxu0 0
        %3345 = vmatmul.mubr.bf16.gmra.mxu0 %v3265
        %v3346 = vpop.f32.mrf.mxu0
        %v3347 = vadd.f32 0.0, %v3346
        %v3348 = vpop.f32.mrf.mxu0
        %v3349 = vadd.f32 0.0, %v3348
        %v3350 = vpop.f32.mrf.mxu0
        %v3351 = vpop.f32.mrf.mxu0
        %3352 = vdwg.mxu0
        %v3353 = vadd.f32 %v3267, %v3306
        %v3354 = vadd.f32 %v3268, %v3308
        %v3355 = vadd.f32 %v3269, %v3347
        %v3356 = vadd.f32 %v3270, %v3349
        %v3357 = vmul.f32 %v3353, 0.5
        %v3358 = vtanh.pop %v3357
        %v3359 = vmul.f32 %v3358, 0.5
        %v3360 = vadd.f32 %v3359, 0.5
        %v3361 = vmul.f32 %v3354, 0.5
        %v3362 = vtanh.pop %v3361
        %v3363 = vmul.f32 %v3362, 0.5
        %v3364 = vadd.f32 %v3363, 0.5
        %v3365 = vtanh.pop %v3355
        %v3366 = vmul.f32 %v3356, 0.5
        %v3367 = vtanh.pop %v3366
        %v3368 = vmul.f32 %v3367, 0.5
        %v3369 = vadd.f32 %v3368, 0.5
        %v3370 = vmul.f32 %v3364, %v3262
        %v3371 = vmul.f32 %v3360, %v3365
        %v3372 = vadd.f32 %v3370, %v3371
        %v3373 = vtanh.pop %v3372
        %v3374 = vmul.f32 %v3369, %v3373
        %v3375 = vpack.c.bf16 %v3374, %v3374
        %3376 = vst [vmem:[%s1872] sm:$0xf] %v3375
        %3377 = vst [vmem:[%s2332] sm:$0xff] %v3374
        %3378 = vst [vmem:[%s2334] sm:$0xff] %v3372
        %p3379 = scmp.eq.s32.totalorder %s24, 1
        // Predicated region
        $region73: #{tpu_custom_call.1} parent=47 // pred_check
          %p3380 = pneg %p3379
        $region74: #{tpu_custom_call.1} parent=47 // pred_check_branch
          %3382 = sbr.rel (%p3380) target = $region76
        $region75: #{tpu_custom_call.1} parent=47 // pred_region
          %3383 = vst [vmem:[#allocation15] sm:$0xff] %v3374
        $region76: #{tpu_custom_call.1} parent=47 // pred_fallthru
          _
        // Predicated region
        $region77: #{tpu_custom_call.1} parent=47 // pred_check
          %p3384 = pneg %p189
        $region78: #{tpu_custom_call.1} parent=47 // pred_check_branch
          %3386 = sbr.rel (%p3384) target = $region80
        $region79: #{tpu_custom_call.1} parent=47 // pred_region
          %s3388 = ssub.s32 128, 128
          %3389 = vsyncadd [#allocation8], %s3388
          %s3391 = sshll.u32 [#allocation15], 4
          %s3392 = int_to_ptr.vmem [resolvable:$true] %s3391
          %3394 = dma.vmem_to_hbm [thread:$0]  %s3392, 128, %s7, [#allocation8]
        $region80: #{tpu_custom_call.1} parent=47 // pred_fallthru
          _
        // Predicated region
        $region81: #{tpu_custom_call.1} parent=47 // pred_check
          %p3395 = pneg %p189
        $region82: #{tpu_custom_call.1} parent=47 // pred_check_branch
          %3397 = sbr.rel (%p3395) target = $region84
        $region83: #{tpu_custom_call.1} parent=47 // pred_region
          %3398 = dma.done [#allocation8], 128
        $region84: #{tpu_custom_call.1} parent=47 // pred_fallthru
          _
      $region48: #{tpu_custom_call.1} parent=5 // pred_fallthru
        _
      %p3399 = scmp.le.s32.totalorder 2, %s19
      // Predicated region
      $region85: #{tpu_custom_call.1} parent=5 // pred_check
        %p3400 = pneg %p3399
      $region86: #{tpu_custom_call.1} parent=5 // pred_check_branch
        %3402 = sbr.rel (%p3400) target = $region88
      $region87: #{tpu_custom_call.1} parent=5 // pred_region
        %s3403 = ssub.s32 %s19, 2
      $region88: #{tpu_custom_call.1} parent=5 // pred_fallthru
        _
    $region6: #{tpu_custom_call.1} parent=1 // loop_footer
      %s23 = sadd.s32 1, %s19
    $region7: #{tpu_custom_call.1} parent=1 // loop_footer_branch
      %18 = sbr.rel target = $region3
    $region8: #{tpu_custom_call.1} parent=1 // loop_exit
      _
    %3404 = vsyncpa [#allocation7], 1
    %s3405 = scalar_lea.sflag [#allocation7], 1
    %3406 = vsyncpa %s3405, 1
    %3407 = vsyncpa [#allocation10], 1
    %3408 = vsyncpa [#allocation13], 1
    %3409 = vsyncpa [#allocation8], 1
    %s3410 = scalar_lea.sflag [#allocation8], 1
    %3411 = vsyncpa %s3410, 1

</llo_original>
